<compile_context>
chip_gen: v7x
topology: tpu7x:2x2x1
jax: 0.10.0
libtpu: 0.0.40
codegen_flags: <defaults>
</compile_context>

<pallas_src>
import numpy as np

import jax
import jax.numpy as jnp
from jax.experimental import pallas as pl
from jax.experimental.pallas import tpu as pltpu


# ----------------------- scaled-down synthetic config ---------------------- #
N_BATCH = 2
IN_C = 32                    # layer3 output channels (scaled down from 1024)
WIDTH = 16                   # bottleneck width       (scaled down from 512)
EXPANSION = 4
OUT_C = WIDTH * EXPANSION    # 64                     (scaled down from 2048)
H_IN = W_IN = 8              # spatial size entering layer4
NUM_CLASSES = 10
LANE = 128                   # lane-dense padding for the classifier output


# ------------------- constant selection matrices (host-side) --------------- #

def _conv3x3_tap_selectors(h, w, stride):
    """Per-sample (9, Ho*Wo, H*W) 0/1 matrices: tap t = dy*3+dx gathers
    x_pad[stride*oy+dy, stride*ox+dx] (padding & stride encoded here)."""
    ho = (h + 2 - 3) // stride + 1
    wo = (w + 2 - 3) // stride + 1
    taps = np.zeros((9, ho * wo, h * w), np.float32)
    for dy in range(3):
        for dx in range(3):
            t = dy * 3 + dx
            for oy in range(ho):
                for ox in range(wo):
                    iy = stride * oy + dy - 1
                    ix = stride * ox + dx - 1
                    if 0 <= iy < h and 0 <= ix < w:
                        taps[t, oy * wo + ox, iy * w + ix] = 1.0
    return taps


# ------------------------------ Pallas kernel ------------------------------- #

def _make_kernel(wlay, blay, num_blocks):
    """Kernel factory; wlay / blay are static {name: (row_off, rows, cols)} /
    {name: (row, cols)} layouts into the packed weight / bias slabs."""
    bf16 = jnp.bfloat16

    def kernel(x_ref, t0_ref, t1_ref, w_ref, b_ref, o_ref):
        def getw(name):                      # bf16 weight, read at point of use
            off, r, c = wlay[name]
            return w_ref[off:off + r, :c]

        def getb(name):                      # (1, c) f32 bias row
            row, c = blay[name]
            return b_ref[row:row + 1, :c]

        def dotf(a, b):                      # MXU matmul, f32 accumulation
            return jnp.dot(a, b, preferred_element_type=jnp.float32)

        def conv3x3(h_bf, taps_ref, i):
            # 9 per-sample selector gathers, lane-concatenated into an im2col
            # slab, then ONE K = 9*width MXU matmul vs. the stacked weight.
            cols = [dotf(taps_ref[t], h_bf) for t in range(9)]
            col = jnp.concatenate(cols, axis=-1).astype(bf16)      # cast once
            return jnp.maximum(dotf(col, getw(f"w2_{i}")) + getb(f"b2_{i}"), 0.0)

        def bottleneck(x_bf, taps_ref, i, identity):
            # torchvision Bottleneck: relu(bn3(conv3(relu(bn2(conv2(relu(
            # bn1(conv1(x)))))))) + identity); BN scale folded into weights.
            h = jnp.maximum(dotf(x_bf, getw(f"w1_{i}")) + getb(f"b1_{i}"), 0.0)
            h2 = conv3x3(h.astype(bf16), taps_ref, i)
            return jnp.maximum(
                dotf(h2.astype(bf16), getw(f"w3_{i}")) + getb(f"b3_{i}")
                + identity, 0.0)

        x = x_ref[0]                                     # (H*W, Cin) bf16
        # Block 0: stride-2, projection shortcut.  The stride-2 1x1 shortcut's
        # spatial subsample is exactly the centre tap (dy=dx=1) of the
        # stride-2 3x3 selectors, so reuse taps0[4] (no separate selector).
        xs = dotf(t0_ref[4], x).astype(bf16)             # (Ho*Wo, Cin)
        identity = dotf(xs, getw("wd_0")) + getb("bd_0")  # f32
        out = bottleneck(x, t0_ref, 0, identity)
        # Blocks 1..: stride-1, identity shortcut (residual kept in f32).
        for i in range(1, num_blocks):
            out = bottleneck(out.astype(bf16), t1_ref, i, out)

        # features' AvgPool + module's AdaptiveAvgPool2d((1,1)) collapse into
        # one global mean; kept in f32 (1/49 is inexact in bf16 at real size).
        pooled = jnp.mean(out, axis=0, keepdims=True)    # (1, out_c) f32
        logits = dotf(pooled.astype(bf16), getw("fc_w")) + getb("fc_b")
        o_ref[0] = logits                                 # lane-dense (1, 128)

    return kernel


def resnet152_deep_forward(x_nchw, prep):
    """Full ResNet152Deep forward: one pallas_call, grid=(batch,), parallel."""
    n, c, h, w = x_nchw.shape
    # NCHW -> per-sample (H*W, C) rows; cast to bf16 once at the wrapper.
    x_rows = jnp.transpose(x_nchw, (0, 2, 3, 1)).reshape(n, h * w, c)
    x_rows = x_rows.astype(jnp.bfloat16)
    args = (x_rows, prep["t0"], prep["t1"], prep["w_slab"], prep["b_slab"])

    def full_spec(a):    # whole array resident, constant block index
        return pl.BlockSpec(tuple(a.shape), lambda b, _nd=a.ndim: (0,) * _nd)

    bytes_accessed = sum(int(np.prod(a.shape)) * a.dtype.itemsize for a in args)
    bytes_accessed += n * LANE * 4
    cost = pl.CostEstimate(flops=2 * n * prep["macs_per_sample"],
                           transcendentals=0, bytes_accessed=int(bytes_accessed))

    # TODO(synk): at real layer4 sizes (Cin=1024, 2048 ch, 7x7, 1000 classes)
    # tile the row dimension with a grid axis + index_map, keep weights
    # resident, and set vmem_limit_bytes explicitly (v7x has only 64 MiB VMEM).
    out = pl.pallas_call(
        _make_kernel(prep["wlay"], prep["blay"], prep["num_blocks"]),
        out_shape=jax.ShapeDtypeStruct((n, 1, LANE), jnp.float32),
        grid=(n,),
        in_specs=[
            pl.BlockSpec((1, h * w, c), lambda b: (b, 0, 0)),   # one sample/step
            full_spec(prep["t0"]), full_spec(prep["t1"]),
            full_spec(prep["w_slab"]), full_spec(prep["b_slab"]),
        ],
        out_specs=pl.BlockSpec((1, 1, LANE), lambda b: (b, 0, 0)),
        compiler_params=pltpu.CompilerParams(
            dimension_semantics=("parallel",)),
        cost_estimate=cost,
    )(*args)
    return out[:, 0, :prep["num_classes"]]


# ------------------------ parameters & one-time prep ------------------------ #

def init_params(key, in_c=IN_C, width=WIDTH, expansion=EXPANSION,
                num_blocks=3, num_classes=NUM_CLASSES):
    """Deterministic synthetic params with ResNet-152 layer4-like structure."""
    out_c = width * expansion
    keys = jax.random.split(key, 64)
    it = iter(keys)

    def wmat(shape):
        return 0.05 * jax.random.normal(next(it), shape, jnp.float32)

    def bn(c):  # eval-mode BN folded to (scale, bias)
        gamma = 1.0 + 0.1 * jax.random.normal(next(it), (c,), jnp.float32)
        beta = 0.1 * jax.random.normal(next(it), (c,), jnp.float32)
        mean = 0.1 * jax.random.normal(next(it), (c,), jnp.float32)
        var = 1.0 + 0.5 * jax.random.uniform(next(it), (c,), jnp.float32)
        scale = gamma / jnp.sqrt(var + 1e-5)
        return scale, beta - mean * scale

    blocks = []
    c_in = in_c
    for b in range(num_blocks):
        blk = {}
        blk["w1"] = wmat((c_in, width));      blk["s1"], blk["b1"] = bn(width)
        blk["w2"] = wmat((9, width, width));  blk["s2"], blk["b2"] = bn(width)
        blk["w3"] = wmat((width, out_c));     blk["s3"], blk["b3"] = bn(out_c)
        if b == 0:  # first block of layer4: stride-2 downsample (1x1 conv+BN)
            blk["wd"] = wmat((c_in, out_c));  blk["sd"], blk["bd"] = bn(out_c)
        blocks.append(blk)
        c_in = out_c

    fc_w = wmat((out_c, num_classes))
    fc_b = 0.1 * jax.random.normal(next(it), (num_classes,), jnp.float32)
    return {"blocks": blocks, "fc_w": fc_w, "fc_b": fc_b}


def prepare_params(params, h=H_IN, w=W_IN,
                   matmul_dtype=jnp.bfloat16, lane=LANE):
    """Fold BN scale into weights, stack w2 taps for the K=9*width im2col
    matmul, pack all weights into one bf16 slab and all biases into one f32
    slab, and build per-sample tap selectors."""
    blocks = params["blocks"]
    num_blocks = len(blocks)
    cin = blocks[0]["w1"].shape[0]
    width = blocks[0]["w1"].shape[1]
    out_c = blocks[0]["w3"].shape[1]
    num_classes = params["fc_w"].shape[1]
    assert num_classes <= lane  # TODO(synk): cdiv lane padding + tiled fc head

    # ---------------- weight slab: one bf16 (rows, lane) array ---------------
    segs = []
    for i, blk in enumerate(blocks):
        segs.append((f"w1_{i}", blk["w1"] * blk["s1"][None, :]))
        segs.append((f"w2_{i}",
                     (blk["w2"] * blk["s2"][None, None, :]
                      ).reshape(9 * width, width)))              # stacked taps
        segs.append((f"w3_{i}", blk["w3"] * blk["s3"][None, :]))
        if i == 0:
            segs.append((f"wd_{i}", blk["wd"] * blk["sd"][None, :]))
    fcw = jnp.zeros((out_c, lane), jnp.float32)
    fcw = fcw.at[:, :num_classes].set(params["fc_w"])
    segs.append(("fc_w", fcw))

    wlay, rows, off = {}, [], 0
    for name, arr in segs:
        r, c = arr.shape
        r_pad = ((r + 15) // 16) * 16      # keep segments (16,128)-tile aligned
        wlay[name] = (off, r, c)
        rows.append(jnp.zeros((r_pad, lane), jnp.float32).at[:r, :c].set(arr))
        off += r_pad
    w_slab = jnp.concatenate(rows, axis=0).astype(matmul_dtype)

    # ---------------- bias slab: one f32 (rows, lane) array -------------------
    blay, brows = {}, []

    def _bias(name, vec):
        blay[name] = (len(brows), int(vec.shape[0]))
        brows.append(jnp.zeros((lane,), jnp.float32).at[:vec.shape[0]].set(vec))

    for i, blk in enumerate(blocks):
        _bias(f"b1_{i}", blk["b1"])
        _bias(f"b2_{i}", blk["b2"])
        _bias(f"b3_{i}", blk["b3"])
        if i == 0:
            _bias(f"bd_{i}", blk["bd"])
    _bias("fc_b",
          jnp.zeros((lane,), jnp.float32).at[:num_classes].set(params["fc_b"]))
    b_slab = jnp.stack(brows, axis=0)                       # f32 (n_bias, lane)

    # ---------------- per-sample tap selectors (0/1, exact in bf16) ----------
    ho, wo = h // 2, w // 2
    t0 = jnp.asarray(_conv3x3_tap_selectors(h, w, 2), matmul_dtype)
    t1 = jnp.asarray(_conv3x3_tap_selectors(ho, wo, 1), matmul_dtype)

    hw, hw2 = h * w, ho * wo
    macs = (hw * cin * width + 9 * hw2 * hw * width + hw2 * 9 * width * width
            + hw2 * width * out_c + hw2 * hw * cin + hw2 * cin * out_c)
    macs += (num_blocks - 1) * (hw2 * out_c * width + 9 * hw2 * hw2 * width
                                + hw2 * 9 * width * width + hw2 * width * out_c)
    macs += out_c * lane

    return {"w_slab": w_slab, "b_slab": b_slab, "t0": t0, "t1": t1,
            "wlay": wlay, "blay": blay, "num_blocks": num_blocks,
            "num_classes": num_classes, "macs_per_sample": int(macs)}


# ---------------------------- pure-JAX reference ---------------------------- #

def reference_forward(x_nchw, params):
    """Independent f32 reference via lax.conv (real convs, BN applied post-conv)."""
    def bn(y, s, b):
        return y * s[None, :, None, None] + b[None, :, None, None]

    def conv(x, w4, stride, padding):
        return jax.lax.conv_general_dilated(
            x, w4, (stride, stride), padding,
            dimension_numbers=("NCHW", "OIHW", "NCHW"))

    def c1x1(x, wm, stride=1):                      # wm: (cin, cout)
        return conv(x, jnp.transpose(wm)[:, :, None, None], stride, "VALID")

    def c3x3(x, wm, stride):                        # wm: (9, cin, cout), t=dy*3+dx
        w4 = jnp.transpose(wm.reshape(3, 3, wm.shape[1], wm.shape[2]),
                           (3, 2, 0, 1))
        return conv(x, w4, stride, ((1, 1), (1, 1)))

    out = x_nchw
    for i, blk in enumerate(params["blocks"]):
        stride = 2 if i == 0 else 1
        identity = (bn(c1x1(out, blk["wd"], 2), blk["sd"], blk["bd"])
                    if i == 0 else out)
        h = jax.nn.relu(bn(c1x1(out, blk["w1"]), blk["s1"], blk["b1"]))
        h = jax.nn.relu(bn(c3x3(h, blk["w2"], stride), blk["s2"], blk["b2"]))
        h = bn(c1x1(h, blk["w3"]), blk["s3"], blk["b3"])
        out = jax.nn.relu(h + identity)
    pooled = jnp.mean(out, axis=(2, 3))             # both avg-pools collapse
    return pooled @ params["fc_w"] + params["fc_b"][None, :]


# ------------------------------------ main ---------------------------------- #

if __name__ == "__main__":
    key = jax.random.PRNGKey(0)
    params = init_params(key)

    # Input = output of ResNet-152 layer3 at scaled-down shapes: (N, C, H, W)
    x = jax.random.normal(jax.random.PRNGKey(0),
                          (N_BATCH, IN_C, H_IN, W_IN), dtype=jnp.float32)

    prep = prepare_params(params, H_IN, W_IN)
    fwd = jax.jit(lambda xx: resnet152_deep_forward(xx, prep))

    logits = fwd(x)
    jax.block_until_ready(logits)

    assert logits.shape == (N_BATCH, NUM_CLASSES), logits.shape
    assert logits.dtype == jnp.float32
    assert bool(jnp.all(jnp.isfinite(logits)))

    # Numerics check vs an independent f32 lax.conv reference
    # (gap = bf16 MXU operands / bf16 activations).
    ref = reference_forward(x, params)
    err = float(jnp.max(jnp.abs(logits - ref)))
    assert bool(jnp.allclose(logits, ref, rtol=5e-2, atol=5e-2)), err

    print("KERNEL_OK")
</pallas_src>

<mosaic_0001>
module attributes {stable_mosaic.version = 11 : i64} {
  func.func @kernel(%arg0: i32, %arg1: memref<1x64x32xbf16, #tpu.memory_space<vmem>>, %arg2: memref<9x16x64xbf16, #tpu.memory_space<vmem>>, %arg3: memref<9x16x16xbf16, #tpu.memory_space<vmem>>, %arg4: memref<736x128xbf16, #tpu.memory_space<vmem>>, %arg5: memref<11x128xf32, #tpu.memory_space<vmem>>, %arg6: memref<1x1x128xf32, #tpu.memory_space<vmem>>) attributes {dimension_semantics = [#tpu.dimension_semantics<parallel>], iteration_bounds = array<i64: 2>, scalar_prefetch = 0 : i64, scratch_operands = 0 : i64, tpu.core_type = #tpu.core_type<tc>, window_params = [{transform_indices = @transform_0, window_bounds = array<i64: 1, 64, 32>}, {pipeline_mode = #tpu.pipeline_mode<synchronous>, transform_indices = @transform_1, window_bounds = array<i64: 9, 16, 64>}, {pipeline_mode = #tpu.pipeline_mode<synchronous>, transform_indices = @transform_2, window_bounds = array<i64: 9, 16, 16>}, {pipeline_mode = #tpu.pipeline_mode<synchronous>, transform_indices = @transform_3, window_bounds = array<i64: 736, 128>}, {pipeline_mode = #tpu.pipeline_mode<synchronous>, transform_indices = @transform_4, window_bounds = array<i64: 11, 128>}, {transform_indices = @transform_5, window_bounds = array<i64: 1, 1, 128>}]} {
    %c0 = arith.constant 0 : index
    %c0_0 = arith.constant 0 : index
    %c0_1 = arith.constant 0 : index
    %0 = vector.load %arg1[%c0, %c0_0, %c0_1] : memref<1x64x32xbf16, #tpu.memory_space<vmem>>, vector<1x64x32xbf16>
    %1 = vector.shape_cast %0 : vector<1x64x32xbf16> to vector<64x32xbf16>
    %c4 = arith.constant 4 : index
    %c0_2 = arith.constant 0 : index
    %c0_3 = arith.constant 0 : index
    %2 = vector.load %arg2[%c4, %c0_2, %c0_3] : memref<9x16x64xbf16, #tpu.memory_space<vmem>>, vector<1x16x64xbf16>
    %3 = vector.shape_cast %2 : vector<1x16x64xbf16> to vector<16x64xbf16>
    %cst = arith.constant dense<0.000000e+00> : vector<16x32xf32>
    %4 = tpu.matmul %3, %1, %cst {dimension_numbers = #tpu.dot_dimension_numbers<[1], [0], [0], [1], [0, 0, 1, 1], [], []>} : vector<16x64xbf16>, vector<64x32xbf16>, vector<16x32xf32> -> vector<16x32xf32>
    %5 = arith.truncf %4 : vector<16x32xf32> to vector<16x32xbf16>
    %c192 = arith.constant 192 : index
    %c0_4 = arith.constant 0 : index
    %6 = vector.load %arg4[%c192, %c0_4] : memref<736x128xbf16, #tpu.memory_space<vmem>>, vector<32x64xbf16>
    %cst_5 = arith.constant dense<0.000000e+00> : vector<16x64xf32>
    %7 = tpu.matmul %5, %6, %cst_5 {dimension_numbers = #tpu.dot_dimension_numbers<[1], [0], [0], [1], [0, 0, 1, 1], [], []>} : vector<16x32xbf16>, vector<32x64xbf16>, vector<16x64xf32> -> vector<16x64xf32>
    %c3 = arith.constant 3 : index
    %c0_6 = arith.constant 0 : index
    %8 = vector.load %arg5[%c3, %c0_6] : memref<11x128xf32, #tpu.memory_space<vmem>>, vector<1x64xf32>
    %9 = vector.broadcast %8 : vector<1x64xf32> to vector<16x64xf32>
    %10 = arith.addf %7, %9 : vector<16x64xf32>
    %c0_7 = arith.constant 0 : index
    %c0_8 = arith.constant 0 : index
    %11 = vector.load %arg4[%c0_7, %c0_8] : memref<736x128xbf16, #tpu.memory_space<vmem>>, vector<32x16xbf16>
    %cst_9 = arith.constant dense<0.000000e+00> : vector<64x16xf32>
    %12 = tpu.matmul %1, %11, %cst_9 {dimension_numbers = #tpu.dot_dimension_numbers<[1], [0], [0], [1], [0, 0, 1, 1], [], []>} : vector<64x32xbf16>, vector<32x16xbf16>, vector<64x16xf32> -> vector<64x16xf32>
    %c0_10 = arith.constant 0 : index
    %c0_11 = arith.constant 0 : index
    %13 = vector.load %arg5[%c0_10, %c0_11] : memref<11x128xf32, #tpu.memory_space<vmem>>, vector<1x16xf32>
    %14 = vector.broadcast %13 : vector<1x16xf32> to vector<64x16xf32>
    %15 = arith.addf %12, %14 : vector<64x16xf32>
    %cst_12 = arith.constant 0.000000e+00 : f32
    %16 = vector.broadcast %cst_12 : f32 to vector<64x16xf32>
    %17 = arith.maximumf %15, %16 : vector<64x16xf32>
    %18 = arith.truncf %17 : vector<64x16xf32> to vector<64x16xbf16>
    %c0_13 = arith.constant 0 : index
    %c0_14 = arith.constant 0 : index
    %c0_15 = arith.constant 0 : index
    %19 = vector.load %arg2[%c0_13, %c0_14, %c0_15] : memref<9x16x64xbf16, #tpu.memory_space<vmem>>, vector<1x16x64xbf16>
    %20 = vector.shape_cast %19 : vector<1x16x64xbf16> to vector<16x64xbf16>
    %cst_16 = arith.constant dense<0.000000e+00> : vector<16x16xf32>
    %21 = tpu.matmul %20, %18, %cst_16 {dimension_numbers = #tpu.dot_dimension_numbers<[1], [0], [0], [1], [0, 0, 1, 1], [], []>} : vector<16x64xbf16>, vector<64x16xbf16>, vector<16x16xf32> -> vector<16x16xf32>
    %c1 = arith.constant 1 : index
    %c0_17 = arith.constant 0 : index
    %c0_18 = arith.constant 0 : index
    %22 = vector.load %arg2[%c1, %c0_17, %c0_18] : memref<9x16x64xbf16, #tpu.memory_space<vmem>>, vector<1x16x64xbf16>
    %23 = vector.shape_cast %22 : vector<1x16x64xbf16> to vector<16x64xbf16>
    %cst_19 = arith.constant dense<0.000000e+00> : vector<16x16xf32>
    %24 = tpu.matmul %23, %18, %cst_19 {dimension_numbers = #tpu.dot_dimension_numbers<[1], [0], [0], [1], [0, 0, 1, 1], [], []>} : vector<16x64xbf16>, vector<64x16xbf16>, vector<16x16xf32> -> vector<16x16xf32>
    %c2 = arith.constant 2 : index
    %c0_20 = arith.constant 0 : index
    %c0_21 = arith.constant 0 : index
    %25 = vector.load %arg2[%c2, %c0_20, %c0_21] : memref<9x16x64xbf16, #tpu.memory_space<vmem>>, vector<1x16x64xbf16>
    %26 = vector.shape_cast %25 : vector<1x16x64xbf16> to vector<16x64xbf16>
    %cst_22 = arith.constant dense<0.000000e+00> : vector<16x16xf32>
    %27 = tpu.matmul %26, %18, %cst_22 {dimension_numbers = #tpu.dot_dimension_numbers<[1], [0], [0], [1], [0, 0, 1, 1], [], []>} : vector<16x64xbf16>, vector<64x16xbf16>, vector<16x16xf32> -> vector<16x16xf32>
    %c3_23 = arith.constant 3 : index
    %c0_24 = arith.constant 0 : index
    %c0_25 = arith.constant 0 : index
    %28 = vector.load %arg2[%c3_23, %c0_24, %c0_25] : memref<9x16x64xbf16, #tpu.memory_space<vmem>>, vector<1x16x64xbf16>
    %29 = vector.shape_cast %28 : vector<1x16x64xbf16> to vector<16x64xbf16>
    %cst_26 = arith.constant dense<0.000000e+00> : vector<16x16xf32>
    %30 = tpu.matmul %29, %18, %cst_26 {dimension_numbers = #tpu.dot_dimension_numbers<[1], [0], [0], [1], [0, 0, 1, 1], [], []>} : vector<16x64xbf16>, vector<64x16xbf16>, vector<16x16xf32> -> vector<16x16xf32>
    %c4_27 = arith.constant 4 : index
    %c0_28 = arith.constant 0 : index
    %c0_29 = arith.constant 0 : index
    %31 = vector.load %arg2[%c4_27, %c0_28, %c0_29] : memref<9x16x64xbf16, #tpu.memory_space<vmem>>, vector<1x16x64xbf16>
    %32 = vector.shape_cast %31 : vector<1x16x64xbf16> to vector<16x64xbf16>
    %cst_30 = arith.constant dense<0.000000e+00> : vector<16x16xf32>
    %33 = tpu.matmul %32, %18, %cst_30 {dimension_numbers = #tpu.dot_dimension_numbers<[1], [0], [0], [1], [0, 0, 1, 1], [], []>} : vector<16x64xbf16>, vector<64x16xbf16>, vector<16x16xf32> -> vector<16x16xf32>
    %c5 = arith.constant 5 : index
    %c0_31 = arith.constant 0 : index
    %c0_32 = arith.constant 0 : index
    %34 = vector.load %arg2[%c5, %c0_31, %c0_32] : memref<9x16x64xbf16, #tpu.memory_space<vmem>>, vector<1x16x64xbf16>
    %35 = vector.shape_cast %34 : vector<1x16x64xbf16> to vector<16x64xbf16>
    %cst_33 = arith.constant dense<0.000000e+00> : vector<16x16xf32>
    %36 = tpu.matmul %35, %18, %cst_33 {dimension_numbers = #tpu.dot_dimension_numbers<[1], [0], [0], [1], [0, 0, 1, 1], [], []>} : vector<16x64xbf16>, vector<64x16xbf16>, vector<16x16xf32> -> vector<16x16xf32>
    %c6 = arith.constant 6 : index
    %c0_34 = arith.constant 0 : index
    %c0_35 = arith.constant 0 : index
    %37 = vector.load %arg2[%c6, %c0_34, %c0_35] : memref<9x16x64xbf16, #tpu.memory_space<vmem>>, vector<1x16x64xbf16>
    %38 = vector.shape_cast %37 : vector<1x16x64xbf16> to vector<16x64xbf16>
    %cst_36 = arith.constant dense<0.000000e+00> : vector<16x16xf32>
    %39 = tpu.matmul %38, %18, %cst_36 {dimension_numbers = #tpu.dot_dimension_numbers<[1], [0], [0], [1], [0, 0, 1, 1], [], []>} : vector<16x64xbf16>, vector<64x16xbf16>, vector<16x16xf32> -> vector<16x16xf32>
    %c7 = arith.constant 7 : index
    %c0_37 = arith.constant 0 : index
    %c0_38 = arith.constant 0 : index
    %40 = vector.load %arg2[%c7, %c0_37, %c0_38] : memref<9x16x64xbf16, #tpu.memory_space<vmem>>, vector<1x16x64xbf16>
    %41 = vector.shape_cast %40 : vector<1x16x64xbf16> to vector<16x64xbf16>
    %cst_39 = arith.constant dense<0.000000e+00> : vector<16x16xf32>
    %42 = tpu.matmul %41, %18, %cst_39 {dimension_numbers = #tpu.dot_dimension_numbers<[1], [0], [0], [1], [0, 0, 1, 1], [], []>} : vector<16x64xbf16>, vector<64x16xbf16>, vector<16x16xf32> -> vector<16x16xf32>
    %c8 = arith.constant 8 : index
    %c0_40 = arith.constant 0 : index
    %c0_41 = arith.constant 0 : index
    %43 = vector.load %arg2[%c8, %c0_40, %c0_41] : memref<9x16x64xbf16, #tpu.memory_space<vmem>>, vector<1x16x64xbf16>
    %44 = vector.shape_cast %43 : vector<1x16x64xbf16> to vector<16x64xbf16>
    %cst_42 = arith.constant dense<0.000000e+00> : vector<16x16xf32>
    %45 = tpu.matmul %44, %18, %cst_42 {dimension_numbers = #tpu.dot_dimension_numbers<[1], [0], [0], [1], [0, 0, 1, 1], [], []>} : vector<16x64xbf16>, vector<64x16xbf16>, vector<16x16xf32> -> vector<16x16xf32>
    %46 = tpu.concatenate %21, %24, %27, %30, %33, %36, %39, %42, %45 in 1 : vector<16x16xf32>, vector<16x16xf32>, vector<16x16xf32>, vector<16x16xf32>, vector<16x16xf32>, vector<16x16xf32>, vector<16x16xf32>, vector<16x16xf32>, vector<16x16xf32> -> vector<16x144xf32>
    %47 = arith.truncf %46 : vector<16x144xf32> to vector<16x144xbf16>
    %c32 = arith.constant 32 : index
    %c0_43 = arith.constant 0 : index
    %48 = vector.load %arg4[%c32, %c0_43] : memref<736x128xbf16, #tpu.memory_space<vmem>>, vector<144x16xbf16>
    %cst_44 = arith.constant dense<0.000000e+00> : vector<16x16xf32>
    %49 = tpu.matmul %47, %48, %cst_44 {dimension_numbers = #tpu.dot_dimension_numbers<[1], [0], [0], [1], [0, 0, 1, 1], [], []>} : vector<16x144xbf16>, vector<144x16xbf16>, vector<16x16xf32> -> vector<16x16xf32>
    %c1_45 = arith.constant 1 : index
    %c0_46 = arith.constant 0 : index
    %50 = vector.load %arg5[%c1_45, %c0_46] : memref<11x128xf32, #tpu.memory_space<vmem>>, vector<1x16xf32>
    %51 = vector.broadcast %50 : vector<1x16xf32> to vector<16x16xf32>
    %52 = arith.addf %49, %51 : vector<16x16xf32>
    %cst_47 = arith.constant 0.000000e+00 : f32
    %53 = vector.broadcast %cst_47 : f32 to vector<16x16xf32>
    %54 = arith.maximumf %52, %53 : vector<16x16xf32>
    %55 = arith.truncf %54 : vector<16x16xf32> to vector<16x16xbf16>
    %c176 = arith.constant 176 : index
    %c0_48 = arith.constant 0 : index
    %56 = vector.load %arg4[%c176, %c0_48] : memref<736x128xbf16, #tpu.memory_space<vmem>>, vector<16x64xbf16>
    %cst_49 = arith.constant dense<0.000000e+00> : vector<16x64xf32>
    %57 = tpu.matmul %55, %56, %cst_49 {dimension_numbers = #tpu.dot_dimension_numbers<[1], [0], [0], [1], [0, 0, 1, 1], [], []>} : vector<16x16xbf16>, vector<16x64xbf16>, vector<16x64xf32> -> vector<16x64xf32>
    %c2_50 = arith.constant 2 : index
    %c0_51 = arith.constant 0 : index
    %58 = vector.load %arg5[%c2_50, %c0_51] : memref<11x128xf32, #tpu.memory_space<vmem>>, vector<1x64xf32>
    %59 = vector.broadcast %58 : vector<1x64xf32> to vector<16x64xf32>
    %60 = arith.addf %57, %59 : vector<16x64xf32>
    %61 = arith.addf %60, %10 : vector<16x64xf32>
    %cst_52 = arith.constant 0.000000e+00 : f32
    %62 = vector.broadcast %cst_52 : f32 to vector<16x64xf32>
    %63 = arith.maximumf %61, %62 : vector<16x64xf32>
    %64 = arith.truncf %63 : vector<16x64xf32> to vector<16x64xbf16>
    %c224 = arith.constant 224 : index
    %c0_53 = arith.constant 0 : index
    %65 = vector.load %arg4[%c224, %c0_53] : memref<736x128xbf16, #tpu.memory_space<vmem>>, vector<64x16xbf16>
    %cst_54 = arith.constant dense<0.000000e+00> : vector<16x16xf32>
    %66 = tpu.matmul %64, %65, %cst_54 {dimension_numbers = #tpu.dot_dimension_numbers<[1], [0], [0], [1], [0, 0, 1, 1], [], []>} : vector<16x64xbf16>, vector<64x16xbf16>, vector<16x16xf32> -> vector<16x16xf32>
    %c4_55 = arith.constant 4 : index
    %c0_56 = arith.constant 0 : index
    %67 = vector.load %arg5[%c4_55, %c0_56] : memref<11x128xf32, #tpu.memory_space<vmem>>, vector<1x16xf32>
    %68 = vector.broadcast %67 : vector<1x16xf32> to vector<16x16xf32>
    %69 = arith.addf %66, %68 : vector<16x16xf32>
    %cst_57 = arith.constant 0.000000e+00 : f32
    %70 = vector.broadcast %cst_57 : f32 to vector<16x16xf32>
    %71 = arith.maximumf %69, %70 : vector<16x16xf32>
    %72 = arith.truncf %71 : vector<16x16xf32> to vector<16x16xbf16>
    %c0_58 = arith.constant 0 : index
    %c0_59 = arith.constant 0 : index
    %c0_60 = arith.constant 0 : index
    %73 = vector.load %arg3[%c0_58, %c0_59, %c0_60] : memref<9x16x16xbf16, #tpu.memory_space<vmem>>, vector<1x16x16xbf16>
    %74 = vector.shape_cast %73 : vector<1x16x16xbf16> to vector<16x16xbf16>
    %cst_61 = arith.constant dense<0.000000e+00> : vector<16x16xf32>
    %75 = tpu.matmul %74, %72, %cst_61 {dimension_numbers = #tpu.dot_dimension_numbers<[1], [0], [0], [1], [0, 0, 1, 1], [], []>} : vector<16x16xbf16>, vector<16x16xbf16>, vector<16x16xf32> -> vector<16x16xf32>
    %c1_62 = arith.constant 1 : index
    %c0_63 = arith.constant 0 : index
    %c0_64 = arith.constant 0 : index
    %76 = vector.load %arg3[%c1_62, %c0_63, %c0_64] : memref<9x16x16xbf16, #tpu.memory_space<vmem>>, vector<1x16x16xbf16>
    %77 = vector.shape_cast %76 : vector<1x16x16xbf16> to vector<16x16xbf16>
    %cst_65 = arith.constant dense<0.000000e+00> : vector<16x16xf32>
    %78 = tpu.matmul %77, %72, %cst_65 {dimension_numbers = #tpu.dot_dimension_numbers<[1], [0], [0], [1], [0, 0, 1, 1], [], []>} : vector<16x16xbf16>, vector<16x16xbf16>, vector<16x16xf32> -> vector<16x16xf32>
    %c2_66 = arith.constant 2 : index
    %c0_67 = arith.constant 0 : index
    %c0_68 = arith.constant 0 : index
    %79 = vector.load %arg3[%c2_66, %c0_67, %c0_68] : memref<9x16x16xbf16, #tpu.memory_space<vmem>>, vector<1x16x16xbf16>
    %80 = vector.shape_cast %79 : vector<1x16x16xbf16> to vector<16x16xbf16>
    %cst_69 = arith.constant dense<0.000000e+00> : vector<16x16xf32>
    %81 = tpu.matmul %80, %72, %cst_69 {dimension_numbers = #tpu.dot_dimension_numbers<[1], [0], [0], [1], [0, 0, 1, 1], [], []>} : vector<16x16xbf16>, vector<16x16xbf16>, vector<16x16xf32> -> vector<16x16xf32>
    %c3_70 = arith.constant 3 : index
    %c0_71 = arith.constant 0 : index
    %c0_72 = arith.constant 0 : index
    %82 = vector.load %arg3[%c3_70, %c0_71, %c0_72] : memref<9x16x16xbf16, #tpu.memory_space<vmem>>, vector<1x16x16xbf16>
    %83 = vector.shape_cast %82 : vector<1x16x16xbf16> to vector<16x16xbf16>
    %cst_73 = arith.constant dense<0.000000e+00> : vector<16x16xf32>
    %84 = tpu.matmul %83, %72, %cst_73 {dimension_numbers = #tpu.dot_dimension_numbers<[1], [0], [0], [1], [0, 0, 1, 1], [], []>} : vector<16x16xbf16>, vector<16x16xbf16>, vector<16x16xf32> -> vector<16x16xf32>
    %c4_74 = arith.constant 4 : index
    %c0_75 = arith.constant 0 : index
    %c0_76 = arith.constant 0 : index
    %85 = vector.load %arg3[%c4_74, %c0_75, %c0_76] : memref<9x16x16xbf16, #tpu.memory_space<vmem>>, vector<1x16x16xbf16>
    %86 = vector.shape_cast %85 : vector<1x16x16xbf16> to vector<16x16xbf16>
    %cst_77 = arith.constant dense<0.000000e+00> : vector<16x16xf32>
    %87 = tpu.matmul %86, %72, %cst_77 {dimension_numbers = #tpu.dot_dimension_numbers<[1], [0], [0], [1], [0, 0, 1, 1], [], []>} : vector<16x16xbf16>, vector<16x16xbf16>, vector<16x16xf32> -> vector<16x16xf32>
    %c5_78 = arith.constant 5 : index
    %c0_79 = arith.constant 0 : index
    %c0_80 = arith.constant 0 : index
    %88 = vector.load %arg3[%c5_78, %c0_79, %c0_80] : memref<9x16x16xbf16, #tpu.memory_space<vmem>>, vector<1x16x16xbf16>
    %89 = vector.shape_cast %88 : vector<1x16x16xbf16> to vector<16x16xbf16>
    %cst_81 = arith.constant dense<0.000000e+00> : vector<16x16xf32>
    %90 = tpu.matmul %89, %72, %cst_81 {dimension_numbers = #tpu.dot_dimension_numbers<[1], [0], [0], [1], [0, 0, 1, 1], [], []>} : vector<16x16xbf16>, vector<16x16xbf16>, vector<16x16xf32> -> vector<16x16xf32>
    %c6_82 = arith.constant 6 : index
    %c0_83 = arith.constant 0 : index
    %c0_84 = arith.constant 0 : index
    %91 = vector.load %arg3[%c6_82, %c0_83, %c0_84] : memref<9x16x16xbf16, #tpu.memory_space<vmem>>, vector<1x16x16xbf16>
    %92 = vector.shape_cast %91 : vector<1x16x16xbf16> to vector<16x16xbf16>
    %cst_85 = arith.constant dense<0.000000e+00> : vector<16x16xf32>
    %93 = tpu.matmul %92, %72, %cst_85 {dimension_numbers = #tpu.dot_dimension_numbers<[1], [0], [0], [1], [0, 0, 1, 1], [], []>} : vector<16x16xbf16>, vector<16x16xbf16>, vector<16x16xf32> -> vector<16x16xf32>
    %c7_86 = arith.constant 7 : index
    %c0_87 = arith.constant 0 : index
    %c0_88 = arith.constant 0 : index
    %94 = vector.load %arg3[%c7_86, %c0_87, %c0_88] : memref<9x16x16xbf16, #tpu.memory_space<vmem>>, vector<1x16x16xbf16>
    %95 = vector.shape_cast %94 : vector<1x16x16xbf16> to vector<16x16xbf16>
    %cst_89 = arith.constant dense<0.000000e+00> : vector<16x16xf32>
    %96 = tpu.matmul %95, %72, %cst_89 {dimension_numbers = #tpu.dot_dimension_numbers<[1], [0], [0], [1], [0, 0, 1, 1], [], []>} : vector<16x16xbf16>, vector<16x16xbf16>, vector<16x16xf32> -> vector<16x16xf32>
    %c8_90 = arith.constant 8 : index
    %c0_91 = arith.constant 0 : index
    %c0_92 = arith.constant 0 : index
    %97 = vector.load %arg3[%c8_90, %c0_91, %c0_92] : memref<9x16x16xbf16, #tpu.memory_space<vmem>>, vector<1x16x16xbf16>
    %98 = vector.shape_cast %97 : vector<1x16x16xbf16> to vector<16x16xbf16>
    %cst_93 = arith.constant dense<0.000000e+00> : vector<16x16xf32>
    %99 = tpu.matmul %98, %72, %cst_93 {dimension_numbers = #tpu.dot_dimension_numbers<[1], [0], [0], [1], [0, 0, 1, 1], [], []>} : vector<16x16xbf16>, vector<16x16xbf16>, vector<16x16xf32> -> vector<16x16xf32>
    %100 = tpu.concatenate %75, %78, %81, %84, %87, %90, %93, %96, %99 in 1 : vector<16x16xf32>, vector<16x16xf32>, vector<16x16xf32>, vector<16x16xf32>, vector<16x16xf32>, vector<16x16xf32>, vector<16x16xf32>, vector<16x16xf32>, vector<16x16xf32> -> vector<16x144xf32>
    %101 = arith.truncf %100 : vector<16x144xf32> to vector<16x144xbf16>
    %c288 = arith.constant 288 : index
    %c0_94 = arith.constant 0 : index
    %102 = vector.load %arg4[%c288, %c0_94] : memref<736x128xbf16, #tpu.memory_space<vmem>>, vector<144x16xbf16>
    %cst_95 = arith.constant dense<0.000000e+00> : vector<16x16xf32>
    %103 = tpu.matmul %101, %102, %cst_95 {dimension_numbers = #tpu.dot_dimension_numbers<[1], [0], [0], [1], [0, 0, 1, 1], [], []>} : vector<16x144xbf16>, vector<144x16xbf16>, vector<16x16xf32> -> vector<16x16xf32>
    %c5_96 = arith.constant 5 : index
    %c0_97 = arith.constant 0 : index
    %104 = vector.load %arg5[%c5_96, %c0_97] : memref<11x128xf32, #tpu.memory_space<vmem>>, vector<1x16xf32>
    %105 = vector.broadcast %104 : vector<1x16xf32> to vector<16x16xf32>
    %106 = arith.addf %103, %105 : vector<16x16xf32>
    %cst_98 = arith.constant 0.000000e+00 : f32
    %107 = vector.broadcast %cst_98 : f32 to vector<16x16xf32>
    %108 = arith.maximumf %106, %107 : vector<16x16xf32>
    %109 = arith.truncf %108 : vector<16x16xf32> to vector<16x16xbf16>
    %c432 = arith.constant 432 : index
    %c0_99 = arith.constant 0 : index
    %110 = vector.load %arg4[%c432, %c0_99] : memref<736x128xbf16, #tpu.memory_space<vmem>>, vector<16x64xbf16>
    %cst_100 = arith.constant dense<0.000000e+00> : vector<16x64xf32>
    %111 = tpu.matmul %109, %110, %cst_100 {dimension_numbers = #tpu.dot_dimension_numbers<[1], [0], [0], [1], [0, 0, 1, 1], [], []>} : vector<16x16xbf16>, vector<16x64xbf16>, vector<16x64xf32> -> vector<16x64xf32>
    %c6_101 = arith.constant 6 : index
    %c0_102 = arith.constant 0 : index
    %112 = vector.load %arg5[%c6_101, %c0_102] : memref<11x128xf32, #tpu.memory_space<vmem>>, vector<1x64xf32>
    %113 = vector.broadcast %112 : vector<1x64xf32> to vector<16x64xf32>
    %114 = arith.addf %111, %113 : vector<16x64xf32>
    %115 = arith.addf %114, %63 : vector<16x64xf32>
    %cst_103 = arith.constant 0.000000e+00 : f32
    %116 = vector.broadcast %cst_103 : f32 to vector<16x64xf32>
    %117 = arith.maximumf %115, %116 : vector<16x64xf32>
    %118 = arith.truncf %117 : vector<16x64xf32> to vector<16x64xbf16>
    %c448 = arith.constant 448 : index
    %c0_104 = arith.constant 0 : index
    %119 = vector.load %arg4[%c448, %c0_104] : memref<736x128xbf16, #tpu.memory_space<vmem>>, vector<64x16xbf16>
    %cst_105 = arith.constant dense<0.000000e+00> : vector<16x16xf32>
    %120 = tpu.matmul %118, %119, %cst_105 {dimension_numbers = #tpu.dot_dimension_numbers<[1], [0], [0], [1], [0, 0, 1, 1], [], []>} : vector<16x64xbf16>, vector<64x16xbf16>, vector<16x16xf32> -> vector<16x16xf32>
    %c7_106 = arith.constant 7 : index
    %c0_107 = arith.constant 0 : index
    %121 = vector.load %arg5[%c7_106, %c0_107] : memref<11x128xf32, #tpu.memory_space<vmem>>, vector<1x16xf32>
    %122 = vector.broadcast %121 : vector<1x16xf32> to vector<16x16xf32>
    %123 = arith.addf %120, %122 : vector<16x16xf32>
    %cst_108 = arith.constant 0.000000e+00 : f32
    %124 = vector.broadcast %cst_108 : f32 to vector<16x16xf32>
    %125 = arith.maximumf %123, %124 : vector<16x16xf32>
    %126 = arith.truncf %125 : vector<16x16xf32> to vector<16x16xbf16>
    %c0_109 = arith.constant 0 : index
    %c0_110 = arith.constant 0 : index
    %c0_111 = arith.constant 0 : index
    %127 = vector.load %arg3[%c0_109, %c0_110, %c0_111] : memref<9x16x16xbf16, #tpu.memory_space<vmem>>, vector<1x16x16xbf16>
    %128 = vector.shape_cast %127 : vector<1x16x16xbf16> to vector<16x16xbf16>
    %cst_112 = arith.constant dense<0.000000e+00> : vector<16x16xf32>
    %129 = tpu.matmul %128, %126, %cst_112 {dimension_numbers = #tpu.dot_dimension_numbers<[1], [0], [0], [1], [0, 0, 1, 1], [], []>} : vector<16x16xbf16>, vector<16x16xbf16>, vector<16x16xf32> -> vector<16x16xf32>
    %c1_113 = arith.constant 1 : index
    %c0_114 = arith.constant 0 : index
    %c0_115 = arith.constant 0 : index
    %130 = vector.load %arg3[%c1_113, %c0_114, %c0_115] : memref<9x16x16xbf16, #tpu.memory_space<vmem>>, vector<1x16x16xbf16>
    %131 = vector.shape_cast %130 : vector<1x16x16xbf16> to vector<16x16xbf16>
    %cst_116 = arith.constant dense<0.000000e+00> : vector<16x16xf32>
    %132 = tpu.matmul %131, %126, %cst_116 {dimension_numbers = #tpu.dot_dimension_numbers<[1], [0], [0], [1], [0, 0, 1, 1], [], []>} : vector<16x16xbf16>, vector<16x16xbf16>, vector<16x16xf32> -> vector<16x16xf32>
    %c2_117 = arith.constant 2 : index
    %c0_118 = arith.constant 0 : index
    %c0_119 = arith.constant 0 : index
    %133 = vector.load %arg3[%c2_117, %c0_118, %c0_119] : memref<9x16x16xbf16, #tpu.memory_space<vmem>>, vector<1x16x16xbf16>
    %134 = vector.shape_cast %133 : vector<1x16x16xbf16> to vector<16x16xbf16>
    %cst_120 = arith.constant dense<0.000000e+00> : vector<16x16xf32>
    %135 = tpu.matmul %134, %126, %cst_120 {dimension_numbers = #tpu.dot_dimension_numbers<[1], [0], [0], [1], [0, 0, 1, 1], [], []>} : vector<16x16xbf16>, vector<16x16xbf16>, vector<16x16xf32> -> vector<16x16xf32>
    %c3_121 = arith.constant 3 : index
    %c0_122 = arith.constant 0 : index
    %c0_123 = arith.constant 0 : index
    %136 = vector.load %arg3[%c3_121, %c0_122, %c0_123] : memref<9x16x16xbf16, #tpu.memory_space<vmem>>, vector<1x16x16xbf16>
    %137 = vector.shape_cast %136 : vector<1x16x16xbf16> to vector<16x16xbf16>
    %cst_124 = arith.constant dense<0.000000e+00> : vector<16x16xf32>
    %138 = tpu.matmul %137, %126, %cst_124 {dimension_numbers = #tpu.dot_dimension_numbers<[1], [0], [0], [1], [0, 0, 1, 1], [], []>} : vector<16x16xbf16>, vector<16x16xbf16>, vector<16x16xf32> -> vector<16x16xf32>
    %c4_125 = arith.constant 4 : index
    %c0_126 = arith.constant 0 : index
    %c0_127 = arith.constant 0 : index
    %139 = vector.load %arg3[%c4_125, %c0_126, %c0_127] : memref<9x16x16xbf16, #tpu.memory_space<vmem>>, vector<1x16x16xbf16>
    %140 = vector.shape_cast %139 : vector<1x16x16xbf16> to vector<16x16xbf16>
    %cst_128 = arith.constant dense<0.000000e+00> : vector<16x16xf32>
    %141 = tpu.matmul %140, %126, %cst_128 {dimension_numbers = #tpu.dot_dimension_numbers<[1], [0], [0], [1], [0, 0, 1, 1], [], []>} : vector<16x16xbf16>, vector<16x16xbf16>, vector<16x16xf32> -> vector<16x16xf32>
    %c5_129 = arith.constant 5 : index
    %c0_130 = arith.constant 0 : index
    %c0_131 = arith.constant 0 : index
    %142 = vector.load %arg3[%c5_129, %c0_130, %c0_131] : memref<9x16x16xbf16, #tpu.memory_space<vmem>>, vector<1x16x16xbf16>
    %143 = vector.shape_cast %142 : vector<1x16x16xbf16> to vector<16x16xbf16>
    %cst_132 = arith.constant dense<0.000000e+00> : vector<16x16xf32>
    %144 = tpu.matmul %143, %126, %cst_132 {dimension_numbers = #tpu.dot_dimension_numbers<[1], [0], [0], [1], [0, 0, 1, 1], [], []>} : vector<16x16xbf16>, vector<16x16xbf16>, vector<16x16xf32> -> vector<16x16xf32>
    %c6_133 = arith.constant 6 : index
    %c0_134 = arith.constant 0 : index
    %c0_135 = arith.constant 0 : index
    %145 = vector.load %arg3[%c6_133, %c0_134, %c0_135] : memref<9x16x16xbf16, #tpu.memory_space<vmem>>, vector<1x16x16xbf16>
    %146 = vector.shape_cast %145 : vector<1x16x16xbf16> to vector<16x16xbf16>
    %cst_136 = arith.constant dense<0.000000e+00> : vector<16x16xf32>
    %147 = tpu.matmul %146, %126, %cst_136 {dimension_numbers = #tpu.dot_dimension_numbers<[1], [0], [0], [1], [0, 0, 1, 1], [], []>} : vector<16x16xbf16>, vector<16x16xbf16>, vector<16x16xf32> -> vector<16x16xf32>
    %c7_137 = arith.constant 7 : index
    %c0_138 = arith.constant 0 : index
    %c0_139 = arith.constant 0 : index
    %148 = vector.load %arg3[%c7_137, %c0_138, %c0_139] : memref<9x16x16xbf16, #tpu.memory_space<vmem>>, vector<1x16x16xbf16>
    %149 = vector.shape_cast %148 : vector<1x16x16xbf16> to vector<16x16xbf16>
    %cst_140 = arith.constant dense<0.000000e+00> : vector<16x16xf32>
    %150 = tpu.matmul %149, %126, %cst_140 {dimension_numbers = #tpu.dot_dimension_numbers<[1], [0], [0], [1], [0, 0, 1, 1], [], []>} : vector<16x16xbf16>, vector<16x16xbf16>, vector<16x16xf32> -> vector<16x16xf32>
    %c8_141 = arith.constant 8 : index
    %c0_142 = arith.constant 0 : index
    %c0_143 = arith.constant 0 : index
    %151 = vector.load %arg3[%c8_141, %c0_142, %c0_143] : memref<9x16x16xbf16, #tpu.memory_space<vmem>>, vector<1x16x16xbf16>
    %152 = vector.shape_cast %151 : vector<1x16x16xbf16> to vector<16x16xbf16>
    %cst_144 = arith.constant dense<0.000000e+00> : vector<16x16xf32>
    %153 = tpu.matmul %152, %126, %cst_144 {dimension_numbers = #tpu.dot_dimension_numbers<[1], [0], [0], [1], [0, 0, 1, 1], [], []>} : vector<16x16xbf16>, vector<16x16xbf16>, vector<16x16xf32> -> vector<16x16xf32>
    %154 = tpu.concatenate %129, %132, %135, %138, %141, %144, %147, %150, %153 in 1 : vector<16x16xf32>, vector<16x16xf32>, vector<16x16xf32>, vector<16x16xf32>, vector<16x16xf32>, vector<16x16xf32>, vector<16x16xf32>, vector<16x16xf32>, vector<16x16xf32> -> vector<16x144xf32>
    %155 = arith.truncf %154 : vector<16x144xf32> to vector<16x144xbf16>
    %c512 = arith.constant 512 : index
    %c0_145 = arith.constant 0 : index
    %156 = vector.load %arg4[%c512, %c0_145] : memref<736x128xbf16, #tpu.memory_space<vmem>>, vector<144x16xbf16>
    %cst_146 = arith.constant dense<0.000000e+00> : vector<16x16xf32>
    %157 = tpu.matmul %155, %156, %cst_146 {dimension_numbers = #tpu.dot_dimension_numbers<[1], [0], [0], [1], [0, 0, 1, 1], [], []>} : vector<16x144xbf16>, vector<144x16xbf16>, vector<16x16xf32> -> vector<16x16xf32>
    %c8_147 = arith.constant 8 : index
    %c0_148 = arith.constant 0 : index
    %158 = vector.load %arg5[%c8_147, %c0_148] : memref<11x128xf32, #tpu.memory_space<vmem>>, vector<1x16xf32>
    %159 = vector.broadcast %158 : vector<1x16xf32> to vector<16x16xf32>
    %160 = arith.addf %157, %159 : vector<16x16xf32>
    %cst_149 = arith.constant 0.000000e+00 : f32
    %161 = vector.broadcast %cst_149 : f32 to vector<16x16xf32>
    %162 = arith.maximumf %160, %161 : vector<16x16xf32>
    %163 = arith.truncf %162 : vector<16x16xf32> to vector<16x16xbf16>
    %c656 = arith.constant 656 : index
    %c0_150 = arith.constant 0 : index
    %164 = vector.load %arg4[%c656, %c0_150] : memref<736x128xbf16, #tpu.memory_space<vmem>>, vector<16x64xbf16>
    %cst_151 = arith.constant dense<0.000000e+00> : vector<16x64xf32>
    %165 = tpu.matmul %163, %164, %cst_151 {dimension_numbers = #tpu.dot_dimension_numbers<[1], [0], [0], [1], [0, 0, 1, 1], [], []>} : vector<16x16xbf16>, vector<16x64xbf16>, vector<16x64xf32> -> vector<16x64xf32>
    %c9 = arith.constant 9 : index
    %c0_152 = arith.constant 0 : index
    %166 = vector.load %arg5[%c9, %c0_152] : memref<11x128xf32, #tpu.memory_space<vmem>>, vector<1x64xf32>
    %167 = vector.broadcast %166 : vector<1x64xf32> to vector<16x64xf32>
    %168 = arith.addf %165, %167 : vector<16x64xf32>
    %169 = arith.addf %168, %117 : vector<16x64xf32>
    %cst_153 = arith.constant 0.000000e+00 : f32
    %170 = vector.broadcast %cst_153 : f32 to vector<16x64xf32>
    %171 = arith.maximumf %169, %170 : vector<16x64xf32>
    %cst_154 = arith.constant dense<0.000000e+00> : vector<64xf32>
    %172 = vector.multi_reduction <add>, %171, %cst_154 [0] : vector<16x64xf32> to vector<64xf32>
    %173 = vector.shape_cast %172 : vector<64xf32> to vector<1x64xf32>
    %cst_155 = arith.constant 1.600000e+01 : f32
    %174 = vector.broadcast %cst_155 : f32 to vector<1x64xf32>
    %175 = arith.divf %173, %174 : vector<1x64xf32>
    %176 = arith.truncf %175 : vector<1x64xf32> to vector<1x64xbf16>
    %c672 = arith.constant 672 : index
    %c0_156 = arith.constant 0 : index
    %177 = vector.load %arg4[%c672, %c0_156] : memref<736x128xbf16, #tpu.memory_space<vmem>>, vector<64x128xbf16>
    %cst_157 = arith.constant dense<0.000000e+00> : vector<1x128xf32>
    %178 = tpu.matmul %176, %177, %cst_157 {dimension_numbers = #tpu.dot_dimension_numbers<[1], [0], [0], [1], [0, 0, 1, 1], [], []>} : vector<1x64xbf16>, vector<64x128xbf16>, vector<1x128xf32> -> vector<1x128xf32>
    %c10 = arith.constant 10 : index
    %c0_158 = arith.constant 0 : index
    %179 = vector.load %arg5[%c10, %c0_158] : memref<11x128xf32, #tpu.memory_space<vmem>>, vector<1x128xf32>
    %180 = arith.addf %178, %179 : vector<1x128xf32>
    %c0_159 = arith.constant 0 : index
    %c0_160 = arith.constant 0 : index
    %c0_161 = arith.constant 0 : index
    %181 = vector.load %arg6[%c0_159, %c0_160, %c0_161] : memref<1x1x128xf32, #tpu.memory_space<vmem>>, vector<1x1x128xf32>
    %182 = vector.shape_cast %181 : vector<1x1x128xf32> to vector<1x128xf32>
    %183 = vector.shape_cast %180 : vector<1x128xf32> to vector<1x1x128xf32>
    tpu.vector_store %arg6[%c0_159, %c0_160, %c0_161], %183 {strides = array<i32>} : memref<1x1x128xf32, #tpu.memory_space<vmem>>, vector<1x1x128xf32>,
    return
  }
  func.func @transform_0(%arg0: i32) -> (i32, i32, i32) {
    %c0_i32 = arith.constant 0 : i32
    %c0_i32_0 = arith.constant 0 : i32
    %c0_i32_1 = arith.constant 0 : i32
    return %arg0, %c0_i32, %c0_i32_0 : i32, i32, i32
  }
  func.func @transform_1(%arg0: i32) -> (i32, i32, i32) {
    %c0_i32 = arith.constant 0 : i32
    %c0_i32_0 = arith.constant 0 : i32
    %c0_i32_1 = arith.constant 0 : i32
    %c0_i32_2 = arith.constant 0 : i32
    return %c0_i32, %c0_i32_0, %c0_i32_1 : i32, i32, i32
  }
  func.func @transform_2(%arg0: i32) -> (i32, i32, i32) {
    %c0_i32 = arith.constant 0 : i32
    %c0_i32_0 = arith.constant 0 : i32
    %c0_i32_1 = arith.constant 0 : i32
    %c0_i32_2 = arith.constant 0 : i32
    return %c0_i32, %c0_i32_0, %c0_i32_1 : i32, i32, i32
  }
  func.func @transform_3(%arg0: i32) -> (i32, i32) {
    %c0_i32 = arith.constant 0 : i32
    %c0_i32_0 = arith.constant 0 : i32
    %c0_i32_1 = arith.constant 0 : i32
    return %c0_i32, %c0_i32_0 : i32, i32
  }
  func.func @transform_4(%arg0: i32) -> (i32, i32) {
    %c0_i32 = arith.constant 0 : i32
    %c0_i32_0 = arith.constant 0 : i32
    %c0_i32_1 = arith.constant 0 : i32
    return %c0_i32, %c0_i32_0 : i32, i32
  }
  func.func @transform_5(%arg0: i32) -> (i32, i32, i32) {
    %c0_i32 = arith.constant 0 : i32
    %c0_i32_0 = arith.constant 0 : i32
    %c0_i32_1 = arith.constant 0 : i32
    return %arg0, %c0_i32, %c0_i32_0 : i32, i32, i32
  }
}

</mosaic_0001>

<llo_original>
// kernel: _lambda_.1
$region0: #{_lambda_.1}
  #allocation0 [shape = 'u32[]', space=smem, size = 0x4, offset = 0x4, fixed_abs, tag = 'smem constant byte address 0x4 - core index']
  #allocation1 [shape = 'u32[144,128]{1,0:T(1,128)}', space=vmem, size = 0x12000, scoped, tag = 'internal scratch']
  %s0 = inlined_call_operand.vmem [shape: bf16[2,64,32], index: 0, kind: input, shape index: {}]
  %s1 = inlined_call_operand.vmem [shape: bf16[9,16,64], index: 1, kind: input, shape index: {}]
  %s2 = inlined_call_operand.vmem [shape: bf16[9,16,16], index: 2, kind: input, shape index: {}]
  %s3 = inlined_call_operand.hbm [shape: bf16[736,128], index: 3, kind: input, shape index: {}]
  %s4 = inlined_call_operand.vmem [shape: f32[11,128], index: 4, kind: input, shape index: {}]
  %s5 = inlined_call_operand.hbm [shape: f32[2,1,128], index: 5, kind: output, shape index: {}]
  %s6 = sld [smem:[#allocation0]]
  $region57: #{_lambda_.1} parent=0
    _
  %s8 = ssub.s32 1, %s6
  %s9 = scalar_select 0, %s8, %s6
  $region1: #{_lambda_.1} parent=0
    #allocation2 [shape = 'u8[188416]{0}', space=vmem, size = 0x2e000, scoped, tag = 'input window, operand 3, single buffered']
    #allocation3 [shape = 's32[2]{0}', space=sflag, size = 0x8, scoped, tag = 'scoped memory for _lambda_.1']
    #allocation4 [shape = 's32[2]{0}', space=sflag, size = 0x8, scoped, tag = 'scoped memory for _lambda_.1']
    #allocation5 [shape = 'u8[1024]{0}', space=vmem, size = 0x400, scoped, tag = 'output window, operand 0']
    %10 = vsyncpa [#allocation3], 0
    %11 = vsyncpa [#allocation4], 0
    %s12 = scalar_lea.sflag [#allocation4], 1
    %13 = vsyncpa %s12, 0
    loop: start=0, step=1, limit=4
    $region2: #{_lambda_.1} parent=1 // loop_pre_header
      _
    $region3: #{_lambda_.1} parent=1 // loop_header
      %s15 = sphi 0, %s19
      %p16 = scmp.ge.s32.totalorder %s15, 4
      %s25 = sphi 0, %s27
      %s28 = sphi 0, %s25
      %s29 = sphi 0, %s28
      %s45 = sphi 0, %s29
      %s49 = sphi 0, %s49
      %s51 = sphi 0, %s49
      %s52 = sphi 0, %s51
      %s66 = sphi 0, %s52
      %s70 = sphi 0, %s70
      %s72 = sphi 0, %s70
      %s73 = sphi 0, %s72
      %s87 = sphi 0, %s73
      %s91 = sphi 0, %s91
      %s93 = sphi 0, %s91
      %s94 = sphi 0, %s93
      %s108 = sphi 0, %s94
      %s112 = sphi 0, %s112
      %s114 = sphi 0, %s112
      %s115 = sphi 0, %s114
      %s129 = sphi 0, %s115
      %s135 = sphi 0, %s137
      %s138 = sphi 0, %s135
      %s139 = sphi 0, %s138
      %s155 = sphi 0, %s139
    $region4: #{_lambda_.1} parent=1 // loop_header_branch
      %18 = sbr.rel (%p16) target = $region8
    $region5: #{_lambda_.1} parent=1 // loop_body
      %s20 = ssub.s32 %s15, 1
      %s21 = ssub.s32 %s15, 2
      %s22 = sadd.s32 %s15, 1
      %s23 = ssub.s32 %s15, %s22
      %p24 = scmp.eq.s32.totalorder %s23, 0
      %s26 = sadd.s32 %s25, 1
      %s27 = scalar_select %p24, %s25, %s26
      %p30 = pneg %p24
      %p31 = scmp.eq.s32.totalorder %s15, 1
      %p32 = por %p30, %p31
      %p33 = scmp.ne.s32.totalorder %s25, %s28
      %p34 = scmp.eq.s32.totalorder %s15, 0
      %p35 = por %p33, %p34
      %p36 = scmp.ne.s32.totalorder %s25, %s28
      %p37 = scmp.eq.s32.totalorder %s20, 1
      %p38 = por %p36, %p37
      %p39 = scmp.ne.s32.totalorder %s28, %s29
      %p40 = scmp.eq.s32.totalorder %s20, 0
      %p41 = por %p39, %p40
      %p42 = scmp.ne.s32.totalorder %s28, %s29
      %p43 = scmp.eq.s32.totalorder %s21, 1
      %p44 = por %p42, %p43
      %p46 = scmp.ne.s32.totalorder %s29, %s45
      %p47 = scmp.eq.s32.totalorder %s21, 0
      %p48 = por %p46, %p47
      %s50 = sadd.s32 %s49, 1
      %p53 = scmp.eq.s32.totalorder %s15, 1
      %p54 = scmp.ne.s32.totalorder %s49, %s51
      %p55 = scmp.eq.s32.totalorder %s15, 0
      %p56 = por %p54, %p55
      %p57 = scmp.ne.s32.totalorder %s49, %s51
      %p58 = scmp.eq.s32.totalorder %s20, 1
      %p59 = por %p57, %p58
      %p60 = scmp.ne.s32.totalorder %s51, %s52
      %p61 = scmp.eq.s32.totalorder %s20, 0
      %p62 = por %p60, %p61
      %p63 = scmp.ne.s32.totalorder %s51, %s52
      %p64 = scmp.eq.s32.totalorder %s21, 1
      %p65 = por %p63, %p64
      %p67 = scmp.ne.s32.totalorder %s52, %s66
      %p68 = scmp.eq.s32.totalorder %s21, 0
      %p69 = por %p67, %p68
      %s71 = sadd.s32 %s70, 1
      %p74 = scmp.eq.s32.totalorder %s15, 1
      %p75 = scmp.ne.s32.totalorder %s70, %s72
      %p76 = scmp.eq.s32.totalorder %s15, 0
      %p77 = por %p75, %p76
      %p78 = scmp.ne.s32.totalorder %s70, %s72
      %p79 = scmp.eq.s32.totalorder %s20, 1
      %p80 = por %p78, %p79
      %p81 = scmp.ne.s32.totalorder %s72, %s73
      %p82 = scmp.eq.s32.totalorder %s20, 0
      %p83 = por %p81, %p82
      %p84 = scmp.ne.s32.totalorder %s72, %s73
      %p85 = scmp.eq.s32.totalorder %s21, 1
      %p86 = por %p84, %p85
      %p88 = scmp.ne.s32.totalorder %s73, %s87
      %p89 = scmp.eq.s32.totalorder %s21, 0
      %p90 = por %p88, %p89
      %s92 = sadd.s32 %s91, 1
      %p95 = scmp.eq.s32.totalorder %s15, 1
      %p96 = scmp.ne.s32.totalorder %s91, %s93
      %p97 = scmp.eq.s32.totalorder %s15, 0
      %p98 = por %p96, %p97
      %p99 = scmp.ne.s32.totalorder %s91, %s93
      %p100 = scmp.eq.s32.totalorder %s20, 1
      %p101 = por %p99, %p100
      %p102 = scmp.ne.s32.totalorder %s93, %s94
      %p103 = scmp.eq.s32.totalorder %s20, 0
      %p104 = por %p102, %p103
      %p105 = scmp.ne.s32.totalorder %s93, %s94
      %p106 = scmp.eq.s32.totalorder %s21, 1
      %p107 = por %p105, %p106
      %p109 = scmp.ne.s32.totalorder %s94, %s108
      %p110 = scmp.eq.s32.totalorder %s21, 0
      %p111 = por %p109, %p110
      %s113 = sadd.s32 %s112, 1
      %p116 = scmp.eq.s32.totalorder %s15, 1
      %p117 = scmp.ne.s32.totalorder %s112, %s114
      %p118 = scmp.eq.s32.totalorder %s15, 0
      %p119 = por %p117, %p118
      %p120 = scmp.ne.s32.totalorder %s112, %s114
      %p121 = scmp.eq.s32.totalorder %s20, 1
      %p122 = por %p120, %p121
      %p123 = scmp.ne.s32.totalorder %s114, %s115
      %p124 = scmp.eq.s32.totalorder %s20, 0
      %p125 = por %p123, %p124
      %p126 = scmp.ne.s32.totalorder %s114, %s115
      %p127 = scmp.eq.s32.totalorder %s21, 1
      %p128 = por %p126, %p127
      %p130 = scmp.ne.s32.totalorder %s115, %s129
      %p131 = scmp.eq.s32.totalorder %s21, 0
      %p132 = por %p130, %p131
      %s133 = ssub.s32 %s15, %s22
      %p134 = scmp.eq.s32.totalorder %s133, 0
      %s136 = sadd.s32 %s135, 1
      %s137 = scalar_select %p134, %s135, %s136
      %p140 = pneg %p134
      %p141 = scmp.eq.s32.totalorder %s15, 1
      %p142 = por %p140, %p141
      %p143 = scmp.ne.s32.totalorder %s135, %s138
      %p144 = scmp.eq.s32.totalorder %s15, 0
      %p145 = por %p143, %p144
      %p146 = scmp.ne.s32.totalorder %s135, %s138
      %p147 = scmp.eq.s32.totalorder %s20, 1
      %p148 = por %p146, %p147
      %p149 = scmp.ne.s32.totalorder %s138, %s139
      %p150 = scmp.eq.s32.totalorder %s20, 0
      %p151 = por %p149, %p150
      %p152 = scmp.ne.s32.totalorder %s138, %s139
      %p153 = scmp.eq.s32.totalorder %s21, 1
      %p154 = por %p152, %p153
      %p156 = scmp.ne.s32.totalorder %s139, %s155
      %p157 = scmp.eq.s32.totalorder %s21, 0
      %p158 = por %p156, %p157
      %p159 = scmp.le.s32.totalorder 1, %s15
      %p160 = scmp.lt.s32.totalorder %s15, 3
      %p161 = pnand %p159, %p160
      %p162 = pneg %p161
      // Predicated region
      $region9: #{_lambda_.1} parent=5 // pred_check
        _
      $region10: #{_lambda_.1} parent=5 // pred_check_branch
        %164 = sbr.rel (%p161) target = $region12
      $region11: #{_lambda_.1} parent=5 // pred_region
        %s165 = ssub.s32 %s15, 1
        // Predicated region
        $region13: #{_lambda_.1} parent=11 // pred_check
          %p166 = pneg %p62
        $region14: #{_lambda_.1} parent=11 // pred_check_branch
          %168 = sbr.rel (%p166) target = $region16
        $region15: #{_lambda_.1} parent=11 // pred_region
          _
        $region16: #{_lambda_.1} parent=11 // pred_fallthru
          _
        // Predicated region
        $region17: #{_lambda_.1} parent=11 // pred_check
          %p169 = pneg %p83
        $region18: #{_lambda_.1} parent=11 // pred_check_branch
          %171 = sbr.rel (%p169) target = $region20
        $region19: #{_lambda_.1} parent=11 // pred_region
          _
        $region20: #{_lambda_.1} parent=11 // pred_fallthru
          _
        // Predicated region
        $region21: #{_lambda_.1} parent=11 // pred_check
          %p172 = pneg %p104
        $region22: #{_lambda_.1} parent=11 // pred_check_branch
          %174 = sbr.rel (%p172) target = $region24
        $region23: #{_lambda_.1} parent=11 // pred_region
          %s176 = ssub.s32 5888, 5888
          %177 = vsyncadd [#allocation3], %s176
          %s178 = sshll.u32 [#allocation2], 4
          %s179 = int_to_ptr.vmem [resolvable:$true] %s178
          %184 = dma.hbm_to_vmem [thread:$0]  %s3, 5888, %s179, [#allocation3], 64, 64, 4
        $region24: #{_lambda_.1} parent=11 // pred_fallthru
          _
        // Predicated region
        $region25: #{_lambda_.1} parent=11 // pred_check
          %p185 = pneg %p125
        $region26: #{_lambda_.1} parent=11 // pred_check_branch
          %187 = sbr.rel (%p185) target = $region28
        $region27: #{_lambda_.1} parent=11 // pred_region
          _
        $region28: #{_lambda_.1} parent=11 // pred_fallthru
          _
      $region12: #{_lambda_.1} parent=5 // pred_fallthru
        _
      %p188 = scmp.lt.s32.totalorder %s15, 2
      // Predicated region
      $region29: #{_lambda_.1} parent=5 // pred_check
        %p189 = pneg %p188
      $region30: #{_lambda_.1} parent=5 // pred_check_branch
        %191 = sbr.rel (%p189) target = $region32
      $region31: #{_lambda_.1} parent=5 // pred_region
        // Predicated region
        $region33: #{_lambda_.1} parent=31 // pred_check
          %p192 = pneg %p35
        $region34: #{_lambda_.1} parent=31 // pred_check_branch
          %194 = sbr.rel (%p192) target = $region36
        $region35: #{_lambda_.1} parent=31 // pred_region
          %p195 = scmp.lt.s32.totalorder %s15, 1
          %s196 = scalar_select %p195, %s15, 1
          %s197 = smul.addr %s196, 8
          %s198 = smul.addr %s197, 4
          %s199 = scalar_lea.vmem %s0, %s198
        $region36: #{_lambda_.1} parent=31 // pred_fallthru
          _
      $region32: #{_lambda_.1} parent=5 // pred_fallthru
        _
      %p200 = scmp.le.s32.totalorder 1, %s15
      %p201 = scmp.lt.s32.totalorder %s15, 3
      %p202 = pnand %p200, %p201
      %p203 = pneg %p202
      // Predicated region
      $region37: #{_lambda_.1} parent=5 // pred_check
        _
      $region38: #{_lambda_.1} parent=5 // pred_check_branch
        %205 = sbr.rel (%p202) target = $region40
      $region39: #{_lambda_.1} parent=5 // pred_region
        %s206 = ssub.s32 %s15, 1
        // Predicated region
        $region41: #{_lambda_.1} parent=39 // pred_check
          %p207 = pneg %p104
        $region42: #{_lambda_.1} parent=39 // pred_check_branch
          %209 = sbr.rel (%p207) target = $region44
        $region43: #{_lambda_.1} parent=39 // pred_region
          %210 = dma.done [#allocation3], 5888
        $region44: #{_lambda_.1} parent=39 // pred_fallthru
          _
        %p211 = scmp.lt.s32.totalorder %s20, 1
        %s212 = scalar_select %p211, %s20, 1
        %s213 = smul.addr %s212, 8
        %s214 = smul.addr %s213, 4
        %s215 = scalar_lea.vmem %s0, %s214
        %p216 = pneg %p41
        %p217 = pneg %p38
        %p218 = pneg %p62
        %p219 = pneg %p59
        %p220 = pneg %p83
        %p221 = pneg %p80
        %p222 = pneg %p104
        %p223 = pneg %p101
        %p224 = pneg %p125
        %p225 = pneg %p122
        %p226 = pneg %p151
        %p227 = pneg %p148
        %s228 = sand.u32 %s138, 1
        %s229 = scalar_lea.sflag [#allocation4], %s228
        %s230 = sand.u32 %s138, 1
        %s231 = scalar_lea.vmem [#allocation5], %s230
        %p232 = scmp.lt.s32.totalorder %s20, 1
        %s233 = scalar_select %p232, %s20, 1
        %s234 = smul.addr %s233, 8
        %s235 = smul.addr %s234, 4
        %s236 = scalar_lea.vmem %s0, %s235
        %v238 = vld [vmem:[%s236] sm:$0xf]
        %v239 = vld [vmem:[%s236 + $0x4] sm:$0xf]
        %v240 = vld [vmem:[%s236 + $0x8] sm:$0xf]
        %v241 = vld [vmem:[%s236 + $0xc] sm:$0xf]
        %v242 = vld [vmem:[%s236 + $0x10] sm:$0xf]
        %v243 = vld [vmem:[%s236 + $0x14] sm:$0xf]
        %v244 = vld [vmem:[%s236 + $0x18] sm:$0xf]
        %v245 = vld [vmem:[%s236 + $0x1c] sm:$0xf]
        %s246 = scalar_lea.vmem %s1, 32
        %v247 = vld [vmem:[%s246] sm:$0xf]
        %v248 = vld [vmem:[%s246 + $0x4] sm:$0xf]
        %v251 = vunpack.c.l.b16 %v247
        %v252 = vunpack.c.l.b16 %v248
        %v253 = vpack.c.b16 %v252, %v251
        %v262 = vunpack.c.l.b16 %v238
        %v263 = vunpack.c.l.b16 %v239
        %v264 = vunpack.c.l.b16 %v240
        %v265 = vunpack.c.l.b16 %v241
        %v266 = vunpack.c.l.b16 %v242
        %v267 = vunpack.c.l.b16 %v243
        %v268 = vunpack.c.l.b16 %v244
        %v269 = vunpack.c.l.b16 %v245
        %v270 = vpack.c.b16 %v263, %v262
        %v271 = vpack.c.b16 %v265, %v264
        %v272 = vpack.c.b16 %v267, %v266
        %v273 = vpack.c.b16 %v269, %v268
        %vm278 = vcmask 523264
        %v280 = vsel %vm278, %v253, 0
        %282 = vmatprep.subr.bf16.mxu0 0
        %283 = vmatpush1.bf16.msra.mxu0 %v270
        %284 = vmatprep.subr.bf16.mxu0 0
        %285 = vmatpush1.bf16.msra.mxu0 %v271
        %286 = vmatprep.subr.bf16.mxu0 0
        %287 = vmatpush1.bf16.msra.mxu0 %v272
        %288 = vmatprep.subr.bf16.mxu0 0
        %289 = vmatpush1.bf16.msra.mxu0 %v273
        %290 = vmatprep.subr.bf16.mxu0 0
        %291 = vmatpush1.bf16.msra.mxu0 0
        %292 = vmatprep.subr.bf16.mxu0 0
        %293 = vmatpush1.bf16.msra.mxu0 0
        %294 = vmatprep.subr.bf16.mxu0 0
        %295 = vmatpush1.bf16.msra.mxu0 0
        %296 = vmatprep.subr.bf16.mxu0 0
        %297 = vmatpush1.bf16.msra.mxu0 0
        %298 = vmatprep.subr.bf16.mxu0 0
        %299 = vmatpush1.bf16.msra.mxu0 0
        %300 = vmatprep.subr.bf16.mxu0 0
        %301 = vmatpush1.bf16.msra.mxu0 0
        %302 = vmatprep.subr.bf16.mxu0 0
        %303 = vmatpush1.bf16.msra.mxu0 0
        %304 = vmatprep.subr.bf16.mxu0 0
        %305 = vmatpush1.bf16.msra.mxu0 0
        %306 = vmatprep.subr.bf16.mxu0 0
        %307 = vmatpush1.bf16.msra.mxu0 0
        %308 = vmatprep.subr.bf16.mxu0 0
        %309 = vmatpush1.bf16.msra.mxu0 0
        %310 = vmatprep.subr.bf16.mxu0 0
        %311 = vmatpush1.bf16.msra.mxu0 0
        %312 = vmatprep.subr.bf16.mxu0 0
        %313 = vmatpush1.bf16.msra.mxu0 0
        %314 = vmatprep.mubr.bf16.mxu0 0
        %315 = vmatmul.mubr.bf16.gmra.mrb[0].mxu0 %v280
        %v316 = vpop.f32.mrb[0].mxu0
        %v317 = vadd.f32 0.0, %v316
        %v318 = vpop.f32.mrb[0].mxu0
        %v319 = vpop.f32.mrb[0].mxu0
        %v320 = vadd.f32 0.0, %v319
        %v321 = vpop.f32.mrb[0].mxu0
        %322 = vdwg.mxu0
        %v323 = vpack.c.bf16 %v320, %v317
        %v324 = vld [vmem:[#allocation2 + $0x60] sm:$0xf]
        %v325 = vld [vmem:[#allocation2 + $0x64] sm:$0xf]
        %v326 = vld [vmem:[#allocation2 + $0x68] sm:$0xf]
        %v327 = vld [vmem:[#allocation2 + $0x6c] sm:$0xf]
        %v328 = vld [vmem:[%s4 + $0x3] sm:$0x1]
        %v329 = vlaneseq
        %v330 = vshrl.u32 %v329, 7
        %v331 = vsub.s32 0, %v330
        %v332 = vrot.slane %v328, %v331
        %v337 = vunpack.c.l.b16 %v324
        %v338 = vunpack.c.l.b16 %v325
        %v339 = vunpack.c.l.b16 %v326
        %v340 = vunpack.c.l.b16 %v327
        %v341 = vpack.c.b16 %v338, %v337
        %v342 = vpack.c.b16 %v340, %v339
        %vm345 = vcmask 261120
        %v347 = vsel %vm345, %v323, 0
        %349 = vmatprep.subr.bf16.mxu0 0
        %350 = vmatpush1.bf16.msra.mxu0 %v341
        %351 = vmatprep.subr.bf16.mxu0 0
        %352 = vmatpush1.bf16.msra.mxu0 %v342
        %353 = vmatprep.subr.bf16.mxu0 0
        %354 = vmatpush1.bf16.msra.mxu0 0
        %355 = vmatprep.subr.bf16.mxu0 0
        %356 = vmatpush1.bf16.msra.mxu0 0
        %357 = vmatprep.subr.bf16.mxu0 0
        %358 = vmatpush1.bf16.msra.mxu0 0
        %359 = vmatprep.subr.bf16.mxu0 0
        %360 = vmatpush1.bf16.msra.mxu0 0
        %361 = vmatprep.subr.bf16.mxu0 0
        %362 = vmatpush1.bf16.msra.mxu0 0
        %363 = vmatprep.subr.bf16.mxu0 0
        %364 = vmatpush1.bf16.msra.mxu0 0
        %365 = vmatprep.subr.bf16.mxu0 0
        %366 = vmatpush1.bf16.msra.mxu0 0
        %367 = vmatprep.subr.bf16.mxu0 0
        %368 = vmatpush1.bf16.msra.mxu0 0
        %369 = vmatprep.subr.bf16.mxu0 0
        %370 = vmatpush1.bf16.msra.mxu0 0
        %371 = vmatprep.subr.bf16.mxu0 0
        %372 = vmatpush1.bf16.msra.mxu0 0
        %373 = vmatprep.subr.bf16.mxu0 0
        %374 = vmatpush1.bf16.msra.mxu0 0
        %375 = vmatprep.subr.bf16.mxu0 0
        %376 = vmatpush1.bf16.msra.mxu0 0
        %377 = vmatprep.subr.bf16.mxu0 0
        %378 = vmatpush1.bf16.msra.mxu0 0
        %379 = vmatprep.subr.bf16.mxu0 0
        %380 = vmatpush1.bf16.msra.mxu0 0
        %381 = vmatprep.mubr.bf16.mxu0 0
        %382 = vmatmul.mubr.bf16.gmra.mrb[0].mxu0 %v347
        %v383 = vpop.f32.mrb[0].mxu0
        %v384 = vadd.f32 %v332, %v383
        %v385 = vpop.f32.mrb[0].mxu0
        %v386 = vpop.f32.mrb[0].mxu0
        %v387 = vadd.f32 %v332, %v386
        %v388 = vpop.f32.mrb[0].mxu0
        %389 = vdwg.mxu0
        %v390 = vld [vmem:[#allocation2] sm:$0xf]
        %v391 = vld [vmem:[#allocation2 + $0x4] sm:$0xf]
        %v392 = vld [vmem:[#allocation2 + $0x8] sm:$0xf]
        %v393 = vld [vmem:[#allocation2 + $0xc] sm:$0xf]
        %v394 = vld [vmem:[%s4] sm:$0x1]
        %v395 = vlaneseq
        %v396 = vshrl.u32 %v395, 7
        %v397 = vsub.s32 0, %v396
        %v398 = vrot.slane %v394, %v397
        %v403 = vunpack.c.l.b16 %v390
        %v404 = vunpack.c.l.b16 %v391
        %v405 = vunpack.c.l.b16 %v392
        %v406 = vunpack.c.l.b16 %v393
        %v407 = vpack.c.b16 %v404, %v403
        %v408 = vpack.c.b16 %v406, %v405
        %v412 = vsel %vm345, %v270, 0
        %v415 = vsel %vm345, %v271, 0
        %v418 = vsel %vm345, %v272, 0
        %v421 = vsel %vm345, %v273, 0
        %423 = vmatprep.subr.bf16.mxu0 0
        %424 = vmatpush1.bf16.msra.mxu0 %v407
        %425 = vmatprep.subr.bf16.mxu0 0
        %426 = vmatpush1.bf16.msra.mxu0 %v408
        %427 = vmatprep.subr.bf16.mxu0 0
        %428 = vmatpush1.bf16.msra.mxu0 0
        %429 = vmatprep.subr.bf16.mxu0 0
        %430 = vmatpush1.bf16.msra.mxu0 0
        %431 = vmatprep.subr.bf16.mxu0 0
        %432 = vmatpush1.bf16.msra.mxu0 0
        %433 = vmatprep.subr.bf16.mxu0 0
        %434 = vmatpush1.bf16.msra.mxu0 0
        %435 = vmatprep.subr.bf16.mxu0 0
        %436 = vmatpush1.bf16.msra.mxu0 0
        %437 = vmatprep.subr.bf16.mxu0 0
        %438 = vmatpush1.bf16.msra.mxu0 0
        %439 = vmatprep.subr.bf16.mxu0 0
        %440 = vmatpush1.bf16.msra.mxu0 0
        %441 = vmatprep.subr.bf16.mxu0 0
        %442 = vmatpush1.bf16.msra.mxu0 0
        %443 = vmatprep.subr.bf16.mxu0 0
        %444 = vmatpush1.bf16.msra.mxu0 0
        %445 = vmatprep.subr.bf16.mxu0 0
        %446 = vmatpush1.bf16.msra.mxu0 0
        %447 = vmatprep.subr.bf16.mxu0 0
        %448 = vmatpush1.bf16.msra.mxu0 0
        %449 = vmatprep.subr.bf16.mxu0 0
        %450 = vmatpush1.bf16.msra.mxu0 0
        %451 = vmatprep.subr.bf16.mxu0 0
        %452 = vmatpush1.bf16.msra.mxu0 0
        %453 = vmatprep.subr.bf16.mxu0 0
        %454 = vmatpush1.bf16.msra.mxu0 0
        %455 = vmatprep.mubr.bf16.mxu0 0
        %456 = vmatmul.mubr.bf16.gmra.mrb[0].mxu0 %v412
        %v457 = vpop.f32.mrb[0].mxu0
        %v458 = vadd.f32 %v398, %v457
        %v459 = vpop.f32.mrb[0].mxu0
        %v460 = vpop.f32.mrb[0].mxu0
        %v461 = vadd.f32 %v398, %v460
        %v462 = vpop.f32.mrb[0].mxu0
        %463 = vmatprep.mubr.bf16.mxu0 0
        %464 = vmatmul.mubr.bf16.gmra.mrb[0].mxu0 %v415
        %v465 = vpop.f32.mrb[0].mxu0
        %v466 = vadd.f32 %v398, %v465
        %v467 = vpop.f32.mrb[0].mxu0
        %v468 = vpop.f32.mrb[0].mxu0
        %v469 = vadd.f32 %v398, %v468
        %v470 = vpop.f32.mrb[0].mxu0
        %471 = vmatprep.mubr.bf16.mxu0 0
        %472 = vmatmul.mubr.bf16.gmra.mrb[0].mxu0 %v418
        %v473 = vpop.f32.mrb[0].mxu0
        %v474 = vadd.f32 %v398, %v473
        %v475 = vpop.f32.mrb[0].mxu0
        %v476 = vpop.f32.mrb[0].mxu0
        %v477 = vadd.f32 %v398, %v476
        %v478 = vpop.f32.mrb[0].mxu0
        %479 = vmatprep.mubr.bf16.mxu0 0
        %480 = vmatmul.mubr.bf16.gmra.mrb[0].mxu0 %v421
        %v481 = vpop.f32.mrb[0].mxu0
        %v482 = vadd.f32 %v398, %v481
        %v483 = vpop.f32.mrb[0].mxu0
        %v484 = vpop.f32.mrb[0].mxu0
        %v485 = vadd.f32 %v398, %v484
        %v486 = vpop.f32.mrb[0].mxu0
        %487 = vdwg.mxu0
        %v488 = vmax.f32 %v458, 0.0
        %v489 = vmax.f32 %v461, 0.0
        %v490 = vmax.f32 %v466, 0.0
        %v491 = vmax.f32 %v469, 0.0
        %v492 = vmax.f32 %v474, 0.0
        %v493 = vmax.f32 %v477, 0.0
        %v494 = vmax.f32 %v482, 0.0
        %v495 = vmax.f32 %v485, 0.0
        %v496 = vpack.c.bf16 %v489, %v488
        %v497 = vpack.c.bf16 %v491, %v490
        %v498 = vpack.c.bf16 %v493, %v492
        %v499 = vpack.c.bf16 %v495, %v494
        %v500 = vld [vmem:[%s1] sm:$0xf]
        %v501 = vld [vmem:[%s1 + $0x4] sm:$0xf]
        %v504 = vunpack.c.l.b16 %v500
        %v505 = vunpack.c.l.b16 %v501
        %v506 = vpack.c.b16 %v505, %v504
        %v508 = vsel %vm278, %v506, 0
        %510 = vmatprep.subr.bf16.mxu0 0
        %511 = vmatpush1.bf16.msra.mxu0 %v496
        %512 = vmatprep.subr.bf16.mxu0 0
        %513 = vmatpush1.bf16.msra.mxu0 %v497
        %514 = vmatprep.subr.bf16.mxu0 0
        %515 = vmatpush1.bf16.msra.mxu0 %v498
        %516 = vmatprep.subr.bf16.mxu0 0
        %517 = vmatpush1.bf16.msra.mxu0 %v499
        %518 = vmatprep.subr.bf16.mxu0 0
        %519 = vmatpush1.bf16.msra.mxu0 0
        %520 = vmatprep.subr.bf16.mxu0 0
        %521 = vmatpush1.bf16.msra.mxu0 0
        %522 = vmatprep.subr.bf16.mxu0 0
        %523 = vmatpush1.bf16.msra.mxu0 0
        %524 = vmatprep.subr.bf16.mxu0 0
        %525 = vmatpush1.bf16.msra.mxu0 0
        %526 = vmatprep.subr.bf16.mxu0 0
        %527 = vmatpush1.bf16.msra.mxu0 0
        %528 = vmatprep.subr.bf16.mxu0 0
        %529 = vmatpush1.bf16.msra.mxu0 0
        %530 = vmatprep.subr.bf16.mxu0 0
        %531 = vmatpush1.bf16.msra.mxu0 0
        %532 = vmatprep.subr.bf16.mxu0 0
        %533 = vmatpush1.bf16.msra.mxu0 0
        %534 = vmatprep.subr.bf16.mxu0 0
        %535 = vmatpush1.bf16.msra.mxu0 0
        %536 = vmatprep.subr.bf16.mxu0 0
        %537 = vmatpush1.bf16.msra.mxu0 0
        %538 = vmatprep.subr.bf16.mxu0 0
        %539 = vmatpush1.bf16.msra.mxu0 0
        %540 = vmatprep.subr.bf16.mxu0 0
        %541 = vmatpush1.bf16.msra.mxu0 0
        %542 = vmatprep.mubr.bf16.mxu0 0
        %543 = vmatmul.mubr.bf16.gmra.mrb[0].mxu0 %v508
        %v544 = vpop.f32.mrb[0].mxu0
        %v545 = vadd.f32 0.0, %v544
        %v546 = vpop.f32.mrb[0].mxu0
        %v547 = vpop.f32.mrb[0].mxu0
        %v548 = vadd.f32 0.0, %v547
        %v549 = vpop.f32.mrb[0].mxu0
        %550 = vdwg.mxu0
        %s551 = scalar_lea.vmem %s1, 8
        %v552 = vld [vmem:[%s551] sm:$0xf]
        %v553 = vld [vmem:[%s551 + $0x4] sm:$0xf]
        %v556 = vunpack.c.l.b16 %v552
        %v557 = vunpack.c.l.b16 %v553
        %v558 = vpack.c.b16 %v557, %v556
        %v560 = vsel %vm278, %v558, 0
        %562 = vmatprep.subr.bf16.mxu0 0
        %563 = vmatpush1.bf16.msra.mxu0 %v496
        %564 = vmatprep.subr.bf16.mxu0 0
        %565 = vmatpush1.bf16.msra.mxu0 %v497
        %566 = vmatprep.subr.bf16.mxu0 0
        %567 = vmatpush1.bf16.msra.mxu0 %v498
        %568 = vmatprep.subr.bf16.mxu0 0
        %569 = vmatpush1.bf16.msra.mxu0 %v499
        %570 = vmatprep.subr.bf16.mxu0 0
        %571 = vmatpush1.bf16.msra.mxu0 0
        %572 = vmatprep.subr.bf16.mxu0 0
        %573 = vmatpush1.bf16.msra.mxu0 0
        %574 = vmatprep.subr.bf16.mxu0 0
        %575 = vmatpush1.bf16.msra.mxu0 0
        %576 = vmatprep.subr.bf16.mxu0 0
        %577 = vmatpush1.bf16.msra.mxu0 0
        %578 = vmatprep.subr.bf16.mxu0 0
        %579 = vmatpush1.bf16.msra.mxu0 0
        %580 = vmatprep.subr.bf16.mxu0 0
        %581 = vmatpush1.bf16.msra.mxu0 0
        %582 = vmatprep.subr.bf16.mxu0 0
        %583 = vmatpush1.bf16.msra.mxu0 0
        %584 = vmatprep.subr.bf16.mxu0 0
        %585 = vmatpush1.bf16.msra.mxu0 0
        %586 = vmatprep.subr.bf16.mxu0 0
        %587 = vmatpush1.bf16.msra.mxu0 0
        %588 = vmatprep.subr.bf16.mxu0 0
        %589 = vmatpush1.bf16.msra.mxu0 0
        %590 = vmatprep.subr.bf16.mxu0 0
        %591 = vmatpush1.bf16.msra.mxu0 0
        %592 = vmatprep.subr.bf16.mxu0 0
        %593 = vmatpush1.bf16.msra.mxu0 0
        %594 = vmatprep.mubr.bf16.mxu0 0
        %595 = vmatmul.mubr.bf16.gmra.mrb[0].mxu0 %v560
        %v596 = vpop.f32.mrb[0].mxu0
        %v597 = vadd.f32 0.0, %v596
        %v598 = vpop.f32.mrb[0].mxu0
        %v599 = vpop.f32.mrb[0].mxu0
        %v600 = vadd.f32 0.0, %v599
        %v601 = vpop.f32.mrb[0].mxu0
        %602 = vdwg.mxu0
        %s603 = scalar_lea.vmem %s1, 16
        %v604 = vld [vmem:[%s603] sm:$0xf]
        %v605 = vld [vmem:[%s603 + $0x4] sm:$0xf]
        %v608 = vunpack.c.l.b16 %v604
        %v609 = vunpack.c.l.b16 %v605
        %v610 = vpack.c.b16 %v609, %v608
        %v612 = vsel %vm278, %v610, 0
        %614 = vmatprep.subr.bf16.mxu0 0
        %615 = vmatpush1.bf16.msra.mxu0 %v496
        %616 = vmatprep.subr.bf16.mxu0 0
        %617 = vmatpush1.bf16.msra.mxu0 %v497
        %618 = vmatprep.subr.bf16.mxu0 0
        %619 = vmatpush1.bf16.msra.mxu0 %v498
        %620 = vmatprep.subr.bf16.mxu0 0
        %621 = vmatpush1.bf16.msra.mxu0 %v499
        %622 = vmatprep.subr.bf16.mxu0 0
        %623 = vmatpush1.bf16.msra.mxu0 0
        %624 = vmatprep.subr.bf16.mxu0 0
        %625 = vmatpush1.bf16.msra.mxu0 0
        %626 = vmatprep.subr.bf16.mxu0 0
        %627 = vmatpush1.bf16.msra.mxu0 0
        %628 = vmatprep.subr.bf16.mxu0 0
        %629 = vmatpush1.bf16.msra.mxu0 0
        %630 = vmatprep.subr.bf16.mxu0 0
        %631 = vmatpush1.bf16.msra.mxu0 0
        %632 = vmatprep.subr.bf16.mxu0 0
        %633 = vmatpush1.bf16.msra.mxu0 0
        %634 = vmatprep.subr.bf16.mxu0 0
        %635 = vmatpush1.bf16.msra.mxu0 0
        %636 = vmatprep.subr.bf16.mxu0 0
        %637 = vmatpush1.bf16.msra.mxu0 0
        %638 = vmatprep.subr.bf16.mxu0 0
        %639 = vmatpush1.bf16.msra.mxu0 0
        %640 = vmatprep.subr.bf16.mxu0 0
        %641 = vmatpush1.bf16.msra.mxu0 0
        %642 = vmatprep.subr.bf16.mxu0 0
        %643 = vmatpush1.bf16.msra.mxu0 0
        %644 = vmatprep.subr.bf16.mxu0 0
        %645 = vmatpush1.bf16.msra.mxu0 0
        %646 = vmatprep.mubr.bf16.mxu0 0
        %647 = vmatmul.mubr.bf16.gmra.mrb[0].mxu0 %v612
        %v648 = vpop.f32.mrb[0].mxu0
        %v649 = vadd.f32 0.0, %v648
        %v650 = vpop.f32.mrb[0].mxu0
        %v651 = vpop.f32.mrb[0].mxu0
        %v652 = vadd.f32 0.0, %v651
        %v653 = vpop.f32.mrb[0].mxu0
        %654 = vdwg.mxu0
        %s655 = scalar_lea.vmem %s1, 24
        %v656 = vld [vmem:[%s655] sm:$0xf]
        %v657 = vld [vmem:[%s655 + $0x4] sm:$0xf]
        %v660 = vunpack.c.l.b16 %v656
        %v661 = vunpack.c.l.b16 %v657
        %v662 = vpack.c.b16 %v661, %v660
        %v664 = vsel %vm278, %v662, 0
        %666 = vmatprep.subr.bf16.mxu0 0
        %667 = vmatpush1.bf16.msra.mxu0 %v496
        %668 = vmatprep.subr.bf16.mxu0 0
        %669 = vmatpush1.bf16.msra.mxu0 %v497
        %670 = vmatprep.subr.bf16.mxu0 0
        %671 = vmatpush1.bf16.msra.mxu0 %v498
        %672 = vmatprep.subr.bf16.mxu0 0
        %673 = vmatpush1.bf16.msra.mxu0 %v499
        %674 = vmatprep.subr.bf16.mxu0 0
        %675 = vmatpush1.bf16.msra.mxu0 0
        %676 = vmatprep.subr.bf16.mxu0 0
        %677 = vmatpush1.bf16.msra.mxu0 0
        %678 = vmatprep.subr.bf16.mxu0 0
        %679 = vmatpush1.bf16.msra.mxu0 0
        %680 = vmatprep.subr.bf16.mxu0 0
        %681 = vmatpush1.bf16.msra.mxu0 0
        %682 = vmatprep.subr.bf16.mxu0 0
        %683 = vmatpush1.bf16.msra.mxu0 0
        %684 = vmatprep.subr.bf16.mxu0 0
        %685 = vmatpush1.bf16.msra.mxu0 0
        %686 = vmatprep.subr.bf16.mxu0 0
        %687 = vmatpush1.bf16.msra.mxu0 0
        %688 = vmatprep.subr.bf16.mxu0 0
        %689 = vmatpush1.bf16.msra.mxu0 0
        %690 = vmatprep.subr.bf16.mxu0 0
        %691 = vmatpush1.bf16.msra.mxu0 0
        %692 = vmatprep.subr.bf16.mxu0 0
        %693 = vmatpush1.bf16.msra.mxu0 0
        %694 = vmatprep.subr.bf16.mxu0 0
        %695 = vmatpush1.bf16.msra.mxu0 0
        %696 = vmatprep.subr.bf16.mxu0 0
        %697 = vmatpush1.bf16.msra.mxu0 0
        %698 = vmatprep.mubr.bf16.mxu0 0
        %699 = vmatmul.mubr.bf16.gmra.mrb[0].mxu0 %v664
        %v700 = vpop.f32.mrb[0].mxu0
        %v701 = vadd.f32 0.0, %v700
        %v702 = vpop.f32.mrb[0].mxu0
        %v703 = vpop.f32.mrb[0].mxu0
        %v704 = vadd.f32 0.0, %v703
        %v705 = vpop.f32.mrb[0].mxu0
        %706 = vdwg.mxu0
        %707 = vmatprep.subr.bf16.mxu0 0
        %708 = vmatpush1.bf16.msra.mxu0 %v496
        %709 = vmatprep.subr.bf16.mxu0 0
        %710 = vmatpush1.bf16.msra.mxu0 %v497
        %711 = vmatprep.subr.bf16.mxu0 0
        %712 = vmatpush1.bf16.msra.mxu0 %v498
        %713 = vmatprep.subr.bf16.mxu0 0
        %714 = vmatpush1.bf16.msra.mxu0 %v499
        %715 = vmatprep.subr.bf16.mxu0 0
        %716 = vmatpush1.bf16.msra.mxu0 0
        %717 = vmatprep.subr.bf16.mxu0 0
        %718 = vmatpush1.bf16.msra.mxu0 0
        %719 = vmatprep.subr.bf16.mxu0 0
        %720 = vmatpush1.bf16.msra.mxu0 0
        %721 = vmatprep.subr.bf16.mxu0 0
        %722 = vmatpush1.bf16.msra.mxu0 0
        %723 = vmatprep.subr.bf16.mxu0 0
        %724 = vmatpush1.bf16.msra.mxu0 0
        %725 = vmatprep.subr.bf16.mxu0 0
        %726 = vmatpush1.bf16.msra.mxu0 0
        %727 = vmatprep.subr.bf16.mxu0 0
        %728 = vmatpush1.bf16.msra.mxu0 0
        %729 = vmatprep.subr.bf16.mxu0 0
        %730 = vmatpush1.bf16.msra.mxu0 0
        %731 = vmatprep.subr.bf16.mxu0 0
        %732 = vmatpush1.bf16.msra.mxu0 0
        %733 = vmatprep.subr.bf16.mxu0 0
        %734 = vmatpush1.bf16.msra.mxu0 0
        %735 = vmatprep.subr.bf16.mxu0 0
        %736 = vmatpush1.bf16.msra.mxu0 0
        %737 = vmatprep.subr.bf16.mxu0 0
        %738 = vmatpush1.bf16.msra.mxu0 0
        %739 = vmatprep.mubr.bf16.mxu0 0
        %740 = vmatmul.mubr.bf16.gmra.mrb[0].mxu0 %v280
        %v741 = vpop.f32.mrb[0].mxu0
        %v742 = vadd.f32 0.0, %v741
        %v743 = vpop.f32.mrb[0].mxu0
        %v744 = vpop.f32.mrb[0].mxu0
        %v745 = vadd.f32 0.0, %v744
        %v746 = vpop.f32.mrb[0].mxu0
        %747 = vdwg.mxu0
        %s748 = scalar_lea.vmem %s1, 40
        %v749 = vld [vmem:[%s748] sm:$0xf]
        %v750 = vld [vmem:[%s748 + $0x4] sm:$0xf]
        %v753 = vunpack.c.l.b16 %v749
        %v754 = vunpack.c.l.b16 %v750
        %v755 = vpack.c.b16 %v754, %v753
        %v757 = vsel %vm278, %v755, 0
        %759 = vmatprep.subr.bf16.mxu0 0
        %760 = vmatpush1.bf16.msra.mxu0 %v496
        %761 = vmatprep.subr.bf16.mxu0 0
        %762 = vmatpush1.bf16.msra.mxu0 %v497
        %763 = vmatprep.subr.bf16.mxu0 0
        %764 = vmatpush1.bf16.msra.mxu0 %v498
        %765 = vmatprep.subr.bf16.mxu0 0
        %766 = vmatpush1.bf16.msra.mxu0 %v499
        %767 = vmatprep.subr.bf16.mxu0 0
        %768 = vmatpush1.bf16.msra.mxu0 0
        %769 = vmatprep.subr.bf16.mxu0 0
        %770 = vmatpush1.bf16.msra.mxu0 0
        %771 = vmatprep.subr.bf16.mxu0 0
        %772 = vmatpush1.bf16.msra.mxu0 0
        %773 = vmatprep.subr.bf16.mxu0 0
        %774 = vmatpush1.bf16.msra.mxu0 0
        %775 = vmatprep.subr.bf16.mxu0 0
        %776 = vmatpush1.bf16.msra.mxu0 0
        %777 = vmatprep.subr.bf16.mxu0 0
        %778 = vmatpush1.bf16.msra.mxu0 0
        %779 = vmatprep.subr.bf16.mxu0 0
        %780 = vmatpush1.bf16.msra.mxu0 0
        %781 = vmatprep.subr.bf16.mxu0 0
        %782 = vmatpush1.bf16.msra.mxu0 0
        %783 = vmatprep.subr.bf16.mxu0 0
        %784 = vmatpush1.bf16.msra.mxu0 0
        %785 = vmatprep.subr.bf16.mxu0 0
        %786 = vmatpush1.bf16.msra.mxu0 0
        %787 = vmatprep.subr.bf16.mxu0 0
        %788 = vmatpush1.bf16.msra.mxu0 0
        %789 = vmatprep.subr.bf16.mxu0 0
        %790 = vmatpush1.bf16.msra.mxu0 0
        %791 = vmatprep.mubr.bf16.mxu0 0
        %792 = vmatmul.mubr.bf16.gmra.mrb[0].mxu0 %v757
        %v793 = vpop.f32.mrb[0].mxu0
        %v794 = vadd.f32 0.0, %v793
        %v795 = vpop.f32.mrb[0].mxu0
        %v796 = vpop.f32.mrb[0].mxu0
        %v797 = vadd.f32 0.0, %v796
        %v798 = vpop.f32.mrb[0].mxu0
        %799 = vdwg.mxu0
        %s800 = scalar_lea.vmem %s1, 48
        %v801 = vld [vmem:[%s800] sm:$0xf]
        %v802 = vld [vmem:[%s800 + $0x4] sm:$0xf]
        %v805 = vunpack.c.l.b16 %v801
        %v806 = vunpack.c.l.b16 %v802
        %v807 = vpack.c.b16 %v806, %v805
        %v809 = vsel %vm278, %v807, 0
        %811 = vmatprep.subr.bf16.mxu0 0
        %812 = vmatpush1.bf16.msra.mxu0 %v496
        %813 = vmatprep.subr.bf16.mxu0 0
        %814 = vmatpush1.bf16.msra.mxu0 %v497
        %815 = vmatprep.subr.bf16.mxu0 0
        %816 = vmatpush1.bf16.msra.mxu0 %v498
        %817 = vmatprep.subr.bf16.mxu0 0
        %818 = vmatpush1.bf16.msra.mxu0 %v499
        %819 = vmatprep.subr.bf16.mxu0 0
        %820 = vmatpush1.bf16.msra.mxu0 0
        %821 = vmatprep.subr.bf16.mxu0 0
        %822 = vmatpush1.bf16.msra.mxu0 0
        %823 = vmatprep.subr.bf16.mxu0 0
        %824 = vmatpush1.bf16.msra.mxu0 0
        %825 = vmatprep.subr.bf16.mxu0 0
        %826 = vmatpush1.bf16.msra.mxu0 0
        %827 = vmatprep.subr.bf16.mxu0 0
        %828 = vmatpush1.bf16.msra.mxu0 0
        %829 = vmatprep.subr.bf16.mxu0 0
        %830 = vmatpush1.bf16.msra.mxu0 0
        %831 = vmatprep.subr.bf16.mxu0 0
        %832 = vmatpush1.bf16.msra.mxu0 0
        %833 = vmatprep.subr.bf16.mxu0 0
        %834 = vmatpush1.bf16.msra.mxu0 0
        %835 = vmatprep.subr.bf16.mxu0 0
        %836 = vmatpush1.bf16.msra.mxu0 0
        %837 = vmatprep.subr.bf16.mxu0 0
        %838 = vmatpush1.bf16.msra.mxu0 0
        %839 = vmatprep.subr.bf16.mxu0 0
        %840 = vmatpush1.bf16.msra.mxu0 0
        %841 = vmatprep.subr.bf16.mxu0 0
        %842 = vmatpush1.bf16.msra.mxu0 0
        %843 = vmatprep.mubr.bf16.mxu0 0
        %844 = vmatmul.mubr.bf16.gmra.mrb[0].mxu0 %v809
        %v845 = vpop.f32.mrb[0].mxu0
        %v846 = vadd.f32 0.0, %v845
        %v847 = vpop.f32.mrb[0].mxu0
        %v848 = vpop.f32.mrb[0].mxu0
        %v849 = vadd.f32 0.0, %v848
        %v850 = vpop.f32.mrb[0].mxu0
        %851 = vdwg.mxu0
        %s852 = scalar_lea.vmem %s1, 56
        %v853 = vld [vmem:[%s852] sm:$0xf]
        %v854 = vld [vmem:[%s852 + $0x4] sm:$0xf]
        %v857 = vunpack.c.l.b16 %v853
        %v858 = vunpack.c.l.b16 %v854
        %v859 = vpack.c.b16 %v858, %v857
        %v861 = vsel %vm278, %v859, 0
        %863 = vmatprep.subr.bf16.mxu0 0
        %864 = vmatpush1.bf16.msra.mxu0 %v496
        %865 = vmatprep.subr.bf16.mxu0 0
        %866 = vmatpush1.bf16.msra.mxu0 %v497
        %867 = vmatprep.subr.bf16.mxu0 0
        %868 = vmatpush1.bf16.msra.mxu0 %v498
        %869 = vmatprep.subr.bf16.mxu0 0
        %870 = vmatpush1.bf16.msra.mxu0 %v499
        %871 = vmatprep.subr.bf16.mxu0 0
        %872 = vmatpush1.bf16.msra.mxu0 0
        %873 = vmatprep.subr.bf16.mxu0 0
        %874 = vmatpush1.bf16.msra.mxu0 0
        %875 = vmatprep.subr.bf16.mxu0 0
        %876 = vmatpush1.bf16.msra.mxu0 0
        %877 = vmatprep.subr.bf16.mxu0 0
        %878 = vmatpush1.bf16.msra.mxu0 0
        %879 = vmatprep.subr.bf16.mxu0 0
        %880 = vmatpush1.bf16.msra.mxu0 0
        %881 = vmatprep.subr.bf16.mxu0 0
        %882 = vmatpush1.bf16.msra.mxu0 0
        %883 = vmatprep.subr.bf16.mxu0 0
        %884 = vmatpush1.bf16.msra.mxu0 0
        %885 = vmatprep.subr.bf16.mxu0 0
        %886 = vmatpush1.bf16.msra.mxu0 0
        %887 = vmatprep.subr.bf16.mxu0 0
        %888 = vmatpush1.bf16.msra.mxu0 0
        %889 = vmatprep.subr.bf16.mxu0 0
        %890 = vmatpush1.bf16.msra.mxu0 0
        %891 = vmatprep.subr.bf16.mxu0 0
        %892 = vmatpush1.bf16.msra.mxu0 0
        %893 = vmatprep.subr.bf16.mxu0 0
        %894 = vmatpush1.bf16.msra.mxu0 0
        %895 = vmatprep.mubr.bf16.mxu0 0
        %896 = vmatmul.mubr.bf16.gmra.mrb[0].mxu0 %v861
        %v897 = vpop.f32.mrb[0].mxu0
        %v898 = vadd.f32 0.0, %v897
        %v899 = vpop.f32.mrb[0].mxu0
        %v900 = vpop.f32.mrb[0].mxu0
        %v901 = vadd.f32 0.0, %v900
        %v902 = vpop.f32.mrb[0].mxu0
        %903 = vdwg.mxu0
        %s904 = scalar_lea.vmem %s1, 64
        %v905 = vld [vmem:[%s904] sm:$0xf]
        %v906 = vld [vmem:[%s904 + $0x4] sm:$0xf]
        %v909 = vunpack.c.l.b16 %v905
        %v910 = vunpack.c.l.b16 %v906
        %v911 = vpack.c.b16 %v910, %v909
        %v913 = vsel %vm278, %v911, 0
        %915 = vmatprep.subr.bf16.mxu0 0
        %916 = vmatpush1.bf16.msra.mxu0 %v496
        %917 = vmatprep.subr.bf16.mxu0 0
        %918 = vmatpush1.bf16.msra.mxu0 %v497
        %919 = vmatprep.subr.bf16.mxu0 0
        %920 = vmatpush1.bf16.msra.mxu0 %v498
        %921 = vmatprep.subr.bf16.mxu0 0
        %922 = vmatpush1.bf16.msra.mxu0 %v499
        %923 = vmatprep.subr.bf16.mxu0 0
        %924 = vmatpush1.bf16.msra.mxu0 0
        %925 = vmatprep.subr.bf16.mxu0 0
        %926 = vmatpush1.bf16.msra.mxu0 0
        %927 = vmatprep.subr.bf16.mxu0 0
        %928 = vmatpush1.bf16.msra.mxu0 0
        %929 = vmatprep.subr.bf16.mxu0 0
        %930 = vmatpush1.bf16.msra.mxu0 0
        %931 = vmatprep.subr.bf16.mxu0 0
        %932 = vmatpush1.bf16.msra.mxu0 0
        %933 = vmatprep.subr.bf16.mxu0 0
        %934 = vmatpush1.bf16.msra.mxu0 0
        %935 = vmatprep.subr.bf16.mxu0 0
        %936 = vmatpush1.bf16.msra.mxu0 0
        %937 = vmatprep.subr.bf16.mxu0 0
        %938 = vmatpush1.bf16.msra.mxu0 0
        %939 = vmatprep.subr.bf16.mxu0 0
        %940 = vmatpush1.bf16.msra.mxu0 0
        %941 = vmatprep.subr.bf16.mxu0 0
        %942 = vmatpush1.bf16.msra.mxu0 0
        %943 = vmatprep.subr.bf16.mxu0 0
        %944 = vmatpush1.bf16.msra.mxu0 0
        %945 = vmatprep.subr.bf16.mxu0 0
        %946 = vmatpush1.bf16.msra.mxu0 0
        %947 = vmatprep.mubr.bf16.mxu0 0
        %948 = vmatmul.mubr.bf16.gmra.mrb[0].mxu0 %v913
        %v949 = vpop.f32.mrb[0].mxu0
        %v950 = vadd.f32 0.0, %v949
        %v951 = vpop.f32.mrb[0].mxu0
        %v952 = vpop.f32.mrb[0].mxu0
        %v953 = vadd.f32 0.0, %v952
        %v954 = vpop.f32.mrb[0].mxu0
        %955 = vdwg.mxu0
        %958 = vrot.lane.b32.xlu0 %v597, 16
        %v959 = vpop.permute.xlu0 %958
        %960 = vrot.lane.b32.xlu0 %v600, 16
        %v961 = vpop.permute.xlu0 %960
        %966 = vrot.lane.b32.xlu0 %v649, 32
        %v967 = vpop.permute.xlu0 %966
        %968 = vrot.lane.b32.xlu0 %v652, 32
        %v969 = vpop.permute.xlu0 %968
        %974 = vrot.lane.b32.xlu0 %v701, 48
        %v975 = vpop.permute.xlu0 %974
        %976 = vrot.lane.b32.xlu0 %v704, 48
        %v977 = vpop.permute.xlu0 %976
        %982 = vrot.lane.b32.xlu0 %v742, 64
        %v983 = vpop.permute.xlu0 %982
        %984 = vrot.lane.b32.xlu0 %v745, 64
        %v985 = vpop.permute.xlu0 %984
        %990 = vrot.lane.b32.xlu0 %v794, 80
        %v991 = vpop.permute.xlu0 %990
        %992 = vrot.lane.b32.xlu0 %v797, 80
        %v993 = vpop.permute.xlu0 %992
        %998 = vrot.lane.b32.xlu0 %v846, 96
        %v999 = vpop.permute.xlu0 %998
        %1000 = vrot.lane.b32.xlu0 %v849, 96
        %v1001 = vpop.permute.xlu0 %1000
        %1006 = vrot.lane.b32.xlu0 %v898, 112
        %v1007 = vpop.permute.xlu0 %1006
        %1008 = vrot.lane.b32.xlu0 %v901, 112
        %v1009 = vpop.permute.xlu0 %1008
        %vm1012 = vcmask 130048
        %v1013 = vsel %vm1012, %v545, %v959
        %v1014 = vsel %vm1012, %v548, %v961
        %v1015 = vsel %vm345, %v1013, %v967
        %v1016 = vsel %vm345, %v1014, %v969
        %vm1017 = vcmask 392192
        %v1018 = vsel %vm1017, %v1015, %v975
        %v1019 = vsel %vm1017, %v1016, %v977
        %v1020 = vsel %vm278, %v1018, %v983
        %v1021 = vsel %vm278, %v1019, %v985
        %vm1022 = vcmask 654336
        %v1023 = vsel %vm1022, %v1020, %v991
        %v1024 = vsel %vm1022, %v1021, %v993
        %vm1025 = vcmask 785408
        %v1026 = vsel %vm1025, %v1023, %v999
        %v1027 = vsel %vm1025, %v1024, %v1001
        %vm1028 = vcmask 916480
        %v1029 = vsel %vm1028, %v1026, %v1007
        %v1030 = vsel %vm1028, %v1027, %v1009
        %v1031 = vpack.c.bf16 %v1030, %v1029
        %v1032 = vpack.c.bf16 %v953, %v950
        %v1033 = vld [vmem:[#allocation2 + $0x10] sm:$0xf]
        %v1034 = vld [vmem:[#allocation2 + $0x14] sm:$0xf]
        %v1035 = vld [vmem:[#allocation2 + $0x18] sm:$0xf]
        %v1036 = vld [vmem:[#allocation2 + $0x1c] sm:$0xf]
        %v1037 = vld [vmem:[#allocation2 + $0x20] sm:$0xf]
        %v1038 = vld [vmem:[#allocation2 + $0x24] sm:$0xf]
        %v1039 = vld [vmem:[#allocation2 + $0x28] sm:$0xf]
        %v1040 = vld [vmem:[#allocation2 + $0x2c] sm:$0xf]
        %v1041 = vld [vmem:[#allocation2 + $0x30] sm:$0xf]
        %v1042 = vld [vmem:[#allocation2 + $0x34] sm:$0xf]
        %v1043 = vld [vmem:[#allocation2 + $0x38] sm:$0xf]
        %v1044 = vld [vmem:[#allocation2 + $0x3c] sm:$0xf]
        %v1045 = vld [vmem:[#allocation2 + $0x40] sm:$0xf]
        %v1046 = vld [vmem:[#allocation2 + $0x44] sm:$0xf]
        %v1047 = vld [vmem:[#allocation2 + $0x48] sm:$0xf]
        %v1048 = vld [vmem:[#allocation2 + $0x4c] sm:$0xf]
        %v1049 = vld [vmem:[#allocation2 + $0x50] sm:$0xf]
        %v1050 = vld [vmem:[#allocation2 + $0x54] sm:$0xf]
        %v1051 = vld [vmem:[%s4 + $0x1] sm:$0x1]
        %v1052 = vlaneseq
        %v1053 = vshrl.u32 %v1052, 7
        %v1054 = vsub.s32 0, %v1053
        %v1055 = vrot.slane %v1051, %v1054
        %v1074 = vunpack.c.l.b16 %v1033
        %v1075 = vunpack.c.l.b16 %v1034
        %v1076 = vunpack.c.l.b16 %v1035
        %v1077 = vunpack.c.l.b16 %v1036
        %v1078 = vunpack.c.l.b16 %v1037
        %v1079 = vunpack.c.l.b16 %v1038
        %v1080 = vunpack.c.l.b16 %v1039
        %v1081 = vunpack.c.l.b16 %v1040
        %v1082 = vunpack.c.l.b16 %v1041
        %v1083 = vunpack.c.l.b16 %v1042
        %v1084 = vunpack.c.l.b16 %v1043
        %v1085 = vunpack.c.l.b16 %v1044
        %v1086 = vunpack.c.l.b16 %v1045
        %v1087 = vunpack.c.l.b16 %v1046
        %v1088 = vunpack.c.l.b16 %v1047
        %v1089 = vunpack.c.l.b16 %v1048
        %v1090 = vunpack.c.l.b16 %v1049
        %v1091 = vunpack.c.l.b16 %v1050
        %v1092 = vpack.c.b16 %v1075, %v1074
        %v1093 = vpack.c.b16 %v1077, %v1076
        %v1094 = vpack.c.b16 %v1079, %v1078
        %v1095 = vpack.c.b16 %v1081, %v1080
        %v1096 = vpack.c.b16 %v1083, %v1082
        %v1097 = vpack.c.b16 %v1085, %v1084
        %v1098 = vpack.c.b16 %v1087, %v1086
        %v1099 = vpack.c.b16 %v1089, %v1088
        %v1100 = vpack.c.b16 %v1091, %v1090
        %v1111 = vsel %vm1012, %v1032, 0
        %1113 = vmatprep.subr.bf16.mxu0 0
        %1114 = vmatpush1.bf16.msra.mxu0 %v1092
        %1115 = vmatprep.subr.bf16.mxu0 0
        %1116 = vmatpush1.bf16.msra.mxu0 %v1093
        %1117 = vmatprep.subr.bf16.mxu0 0
        %1118 = vmatpush1.bf16.msra.mxu0 %v1094
        %1119 = vmatprep.subr.bf16.mxu0 0
        %1120 = vmatpush1.bf16.msra.mxu0 %v1095
        %1121 = vmatprep.subr.bf16.mxu0 0
        %1122 = vmatpush1.bf16.msra.mxu0 %v1096
        %1123 = vmatprep.subr.bf16.mxu0 0
        %1124 = vmatpush1.bf16.msra.mxu0 %v1097
        %1125 = vmatprep.subr.bf16.mxu0 0
        %1126 = vmatpush1.bf16.msra.mxu0 %v1098
        %1127 = vmatprep.subr.bf16.mxu0 0
        %1128 = vmatpush1.bf16.msra.mxu0 %v1099
        %1129 = vmatprep.subr.bf16.mxu0 0
        %1130 = vmatpush1.bf16.msra.mxu0 %v1100
        %1131 = vmatprep.subr.bf16.mxu0 0
        %1132 = vmatpush1.bf16.msra.mxu0 0
        %1133 = vmatprep.subr.bf16.mxu0 0
        %1134 = vmatpush1.bf16.msra.mxu0 0
        %1135 = vmatprep.subr.bf16.mxu0 0
        %1136 = vmatpush1.bf16.msra.mxu0 0
        %1137 = vmatprep.subr.bf16.mxu0 0
        %1138 = vmatpush1.bf16.msra.mxu0 0
        %1139 = vmatprep.subr.bf16.mxu0 0
        %1140 = vmatpush1.bf16.msra.mxu0 0
        %1141 = vmatprep.subr.bf16.mxu0 0
        %1142 = vmatpush1.bf16.msra.mxu0 0
        %1143 = vmatprep.subr.bf16.mxu0 0
        %1144 = vmatpush1.bf16.msra.mxu0 0
        %1145 = vmatprep.mubr.bf16.mxu0 %v1111
        %1146 = vmatmul.mubr.bf16.gmra.mrb[0].mxu0 %v1031
        %v1147 = vpop.f32.mrb[0].mxu0
        %v1148 = vadd.f32 %v1055, %v1147
        %v1149 = vpop.f32.mrb[0].mxu0
        %v1150 = vpop.f32.mrb[0].mxu0
        %v1151 = vadd.f32 %v1055, %v1150
        %v1152 = vpop.f32.mrb[0].mxu0
        %1153 = vdwg.mxu0
        %v1154 = vmax.f32 %v1148, 0.0
        %v1155 = vmax.f32 %v1151, 0.0
        %v1156 = vpack.c.bf16 %v1155, %v1154
        %v1157 = vld [vmem:[#allocation2 + $0x58] sm:$0xf]
        %v1158 = vld [vmem:[#allocation2 + $0x5c] sm:$0xf]
        %v1159 = vld [vmem:[%s4 + $0x2] sm:$0x1]
        %v1160 = vlaneseq
        %v1161 = vshrl.u32 %v1160, 7
        %v1162 = vsub.s32 0, %v1161
        %v1163 = vrot.slane %v1159, %v1162
        %v1166 = vunpack.c.l.b16 %v1157
        %v1167 = vunpack.c.l.b16 %v1158
        %v1168 = vpack.c.b16 %v1167, %v1166
        %v1171 = vsel %vm1012, %v1156, 0
        %1173 = vmatprep.subr.bf16.mxu0 0
        %1174 = vmatpush1.bf16.msra.mxu0 %v1168
        %1175 = vmatprep.subr.bf16.mxu0 0
        %1176 = vmatpush1.bf16.msra.mxu0 0
        %1177 = vmatprep.subr.bf16.mxu0 0
        %1178 = vmatpush1.bf16.msra.mxu0 0
        %1179 = vmatprep.subr.bf16.mxu0 0
        %1180 = vmatpush1.bf16.msra.mxu0 0
        %1181 = vmatprep.subr.bf16.mxu0 0
        %1182 = vmatpush1.bf16.msra.mxu0 0
        %1183 = vmatprep.subr.bf16.mxu0 0
        %1184 = vmatpush1.bf16.msra.mxu0 0
        %1185 = vmatprep.subr.bf16.mxu0 0
        %1186 = vmatpush1.bf16.msra.mxu0 0
        %1187 = vmatprep.subr.bf16.mxu0 0
        %1188 = vmatpush1.bf16.msra.mxu0 0
        %1189 = vmatprep.subr.bf16.mxu0 0
        %1190 = vmatpush1.bf16.msra.mxu0 0
        %1191 = vmatprep.subr.bf16.mxu0 0
        %1192 = vmatpush1.bf16.msra.mxu0 0
        %1193 = vmatprep.subr.bf16.mxu0 0
        %1194 = vmatpush1.bf16.msra.mxu0 0
        %1195 = vmatprep.subr.bf16.mxu0 0
        %1196 = vmatpush1.bf16.msra.mxu0 0
        %1197 = vmatprep.subr.bf16.mxu0 0
        %1198 = vmatpush1.bf16.msra.mxu0 0
        %1199 = vmatprep.subr.bf16.mxu0 0
        %1200 = vmatpush1.bf16.msra.mxu0 0
        %1201 = vmatprep.subr.bf16.mxu0 0
        %1202 = vmatpush1.bf16.msra.mxu0 0
        %1203 = vmatprep.subr.bf16.mxu0 0
        %1204 = vmatpush1.bf16.msra.mxu0 0
        %1205 = vmatprep.mubr.bf16.mxu0 0
        %1206 = vmatmul.mubr.bf16.gmra.mrb[0].mxu0 %v1171
        %v1207 = vpop.f32.mrb[0].mxu0
        %v1208 = vadd.f32 %v1163, %v1207
        %v1209 = vpop.f32.mrb[0].mxu0
        %v1210 = vpop.f32.mrb[0].mxu0
        %v1211 = vadd.f32 %v1163, %v1210
        %v1212 = vpop.f32.mrb[0].mxu0
        %1213 = vdwg.mxu0
        %v1214 = vadd.f32 %v1208, %v384
        %v1215 = vadd.f32 %v1211, %v387
        %v1216 = vmax.f32 %v1214, 0.0
        %v1217 = vmax.f32 %v1215, 0.0
        %v1218 = vpack.c.bf16 %v1217, %v1216
        %v1219 = vld [vmem:[#allocation2 + $0x70] sm:$0xf]
        %v1220 = vld [vmem:[#allocation2 + $0x74] sm:$0xf]
        %v1221 = vld [vmem:[#allocation2 + $0x78] sm:$0xf]
        %v1222 = vld [vmem:[#allocation2 + $0x7c] sm:$0xf]
        %v1223 = vld [vmem:[#allocation2 + $0x80] sm:$0xf]
        %v1224 = vld [vmem:[#allocation2 + $0x84] sm:$0xf]
        %v1225 = vld [vmem:[#allocation2 + $0x88] sm:$0xf]
        %v1226 = vld [vmem:[#allocation2 + $0x8c] sm:$0xf]
        %v1227 = vld [vmem:[%s4 + $0x4] sm:$0x1]
        %v1228 = vlaneseq
        %v1229 = vshrl.u32 %v1228, 7
        %v1230 = vsub.s32 0, %v1229
        %v1231 = vrot.slane %v1227, %v1230
        %v1240 = vunpack.c.l.b16 %v1219
        %v1241 = vunpack.c.l.b16 %v1220
        %v1242 = vunpack.c.l.b16 %v1221
        %v1243 = vunpack.c.l.b16 %v1222
        %v1244 = vunpack.c.l.b16 %v1223
        %v1245 = vunpack.c.l.b16 %v1224
        %v1246 = vunpack.c.l.b16 %v1225
        %v1247 = vunpack.c.l.b16 %v1226
        %v1248 = vpack.c.b16 %v1241, %v1240
        %v1249 = vpack.c.b16 %v1243, %v1242
        %v1250 = vpack.c.b16 %v1245, %v1244
        %v1251 = vpack.c.b16 %v1247, %v1246
        %v1257 = vsel %vm278, %v1218, 0
        %1259 = vmatprep.subr.bf16.mxu0 0
        %1260 = vmatpush1.bf16.msra.mxu0 %v1248
        %1261 = vmatprep.subr.bf16.mxu0 0
        %1262 = vmatpush1.bf16.msra.mxu0 %v1249
        %1263 = vmatprep.subr.bf16.mxu0 0
        %1264 = vmatpush1.bf16.msra.mxu0 %v1250
        %1265 = vmatprep.subr.bf16.mxu0 0
        %1266 = vmatpush1.bf16.msra.mxu0 %v1251
        %1267 = vmatprep.subr.bf16.mxu0 0
        %1268 = vmatpush1.bf16.msra.mxu0 0
        %1269 = vmatprep.subr.bf16.mxu0 0
        %1270 = vmatpush1.bf16.msra.mxu0 0
        %1271 = vmatprep.subr.bf16.mxu0 0
        %1272 = vmatpush1.bf16.msra.mxu0 0
        %1273 = vmatprep.subr.bf16.mxu0 0
        %1274 = vmatpush1.bf16.msra.mxu0 0
        %1275 = vmatprep.subr.bf16.mxu0 0
        %1276 = vmatpush1.bf16.msra.mxu0 0
        %1277 = vmatprep.subr.bf16.mxu0 0
        %1278 = vmatpush1.bf16.msra.mxu0 0
        %1279 = vmatprep.subr.bf16.mxu0 0
        %1280 = vmatpush1.bf16.msra.mxu0 0
        %1281 = vmatprep.subr.bf16.mxu0 0
        %1282 = vmatpush1.bf16.msra.mxu0 0
        %1283 = vmatprep.subr.bf16.mxu0 0
        %1284 = vmatpush1.bf16.msra.mxu0 0
        %1285 = vmatprep.subr.bf16.mxu0 0
        %1286 = vmatpush1.bf16.msra.mxu0 0
        %1287 = vmatprep.subr.bf16.mxu0 0
        %1288 = vmatpush1.bf16.msra.mxu0 0
        %1289 = vmatprep.subr.bf16.mxu0 0
        %1290 = vmatpush1.bf16.msra.mxu0 0
        %1291 = vmatprep.mubr.bf16.mxu0 0
        %1292 = vmatmul.mubr.bf16.gmra.mrb[0].mxu0 %v1257
        %v1293 = vpop.f32.mrb[0].mxu0
        %v1294 = vadd.f32 %v1231, %v1293
        %v1295 = vpop.f32.mrb[0].mxu0
        %v1296 = vpop.f32.mrb[0].mxu0
        %v1297 = vadd.f32 %v1231, %v1296
        %v1298 = vpop.f32.mrb[0].mxu0
        %1299 = vdwg.mxu0
        %v1300 = vmax.f32 %v1294, 0.0
        %v1301 = vmax.f32 %v1297, 0.0
        %v1302 = vpack.c.bf16 %v1301, %v1300
        %v1303 = vld [vmem:[%s2] sm:$0xf]
        %v1304 = vld [vmem:[%s2 + $0x4] sm:$0xf]
        %v1307 = vunpack.c.l.b16 %v1303
        %v1308 = vunpack.c.l.b16 %v1304
        %v1309 = vpack.c.b16 %v1308, %v1307
        %v1311 = vsel %vm1012, %v1309, 0
        %1313 = vmatprep.subr.bf16.mxu0 0
        %1314 = vmatpush1.bf16.msra.mxu0 %v1302
        %1315 = vmatprep.subr.bf16.mxu0 0
        %1316 = vmatpush1.bf16.msra.mxu0 0
        %1317 = vmatprep.subr.bf16.mxu0 0
        %1318 = vmatpush1.bf16.msra.mxu0 0
        %1319 = vmatprep.subr.bf16.mxu0 0
        %1320 = vmatpush1.bf16.msra.mxu0 0
        %1321 = vmatprep.subr.bf16.mxu0 0
        %1322 = vmatpush1.bf16.msra.mxu0 0
        %1323 = vmatprep.subr.bf16.mxu0 0
        %1324 = vmatpush1.bf16.msra.mxu0 0
        %1325 = vmatprep.subr.bf16.mxu0 0
        %1326 = vmatpush1.bf16.msra.mxu0 0
        %1327 = vmatprep.subr.bf16.mxu0 0
        %1328 = vmatpush1.bf16.msra.mxu0 0
        %1329 = vmatprep.subr.bf16.mxu0 0
        %1330 = vmatpush1.bf16.msra.mxu0 0
        %1331 = vmatprep.subr.bf16.mxu0 0
        %1332 = vmatpush1.bf16.msra.mxu0 0
        %1333 = vmatprep.subr.bf16.mxu0 0
        %1334 = vmatpush1.bf16.msra.mxu0 0
        %1335 = vmatprep.subr.bf16.mxu0 0
        %1336 = vmatpush1.bf16.msra.mxu0 0
        %1337 = vmatprep.subr.bf16.mxu0 0
        %1338 = vmatpush1.bf16.msra.mxu0 0
        %1339 = vmatprep.subr.bf16.mxu0 0
        %1340 = vmatpush1.bf16.msra.mxu0 0
        %1341 = vmatprep.subr.bf16.mxu0 0
        %1342 = vmatpush1.bf16.msra.mxu0 0
        %1343 = vmatprep.subr.bf16.mxu0 0
        %1344 = vmatpush1.bf16.msra.mxu0 0
        %1345 = vmatprep.mubr.bf16.mxu0 0
        %1346 = vmatmul.mubr.bf16.gmra.mrb[0].mxu0 %v1311
        %v1347 = vpop.f32.mrb[0].mxu0
        %v1348 = vadd.f32 0.0, %v1347
        %v1349 = vpop.f32.mrb[0].mxu0
        %v1350 = vpop.f32.mrb[0].mxu0
        %v1351 = vadd.f32 0.0, %v1350
        %v1352 = vpop.f32.mrb[0].mxu0
        %1353 = vdwg.mxu0
        %s1354 = scalar_lea.vmem %s2, 8
        %v1355 = vld [vmem:[%s1354] sm:$0xf]
        %v1356 = vld [vmem:[%s1354 + $0x4] sm:$0xf]
        %v1359 = vunpack.c.l.b16 %v1355
        %v1360 = vunpack.c.l.b16 %v1356
        %v1361 = vpack.c.b16 %v1360, %v1359
        %v1363 = vsel %vm1012, %v1361, 0
        %1365 = vmatprep.subr.bf16.mxu0 0
        %1366 = vmatpush1.bf16.msra.mxu0 %v1302
        %1367 = vmatprep.subr.bf16.mxu0 0
        %1368 = vmatpush1.bf16.msra.mxu0 0
        %1369 = vmatprep.subr.bf16.mxu0 0
        %1370 = vmatpush1.bf16.msra.mxu0 0
        %1371 = vmatprep.subr.bf16.mxu0 0
        %1372 = vmatpush1.bf16.msra.mxu0 0
        %1373 = vmatprep.subr.bf16.mxu0 0
        %1374 = vmatpush1.bf16.msra.mxu0 0
        %1375 = vmatprep.subr.bf16.mxu0 0
        %1376 = vmatpush1.bf16.msra.mxu0 0
        %1377 = vmatprep.subr.bf16.mxu0 0
        %1378 = vmatpush1.bf16.msra.mxu0 0
        %1379 = vmatprep.subr.bf16.mxu0 0
        %1380 = vmatpush1.bf16.msra.mxu0 0
        %1381 = vmatprep.subr.bf16.mxu0 0
        %1382 = vmatpush1.bf16.msra.mxu0 0
        %1383 = vmatprep.subr.bf16.mxu0 0
        %1384 = vmatpush1.bf16.msra.mxu0 0
        %1385 = vmatprep.subr.bf16.mxu0 0
        %1386 = vmatpush1.bf16.msra.mxu0 0
        %1387 = vmatprep.subr.bf16.mxu0 0
        %1388 = vmatpush1.bf16.msra.mxu0 0
        %1389 = vmatprep.subr.bf16.mxu0 0
        %1390 = vmatpush1.bf16.msra.mxu0 0
        %1391 = vmatprep.subr.bf16.mxu0 0
        %1392 = vmatpush1.bf16.msra.mxu0 0
        %1393 = vmatprep.subr.bf16.mxu0 0
        %1394 = vmatpush1.bf16.msra.mxu0 0
        %1395 = vmatprep.subr.bf16.mxu0 0
        %1396 = vmatpush1.bf16.msra.mxu0 0
        %1397 = vmatprep.mubr.bf16.mxu0 0
        %1398 = vmatmul.mubr.bf16.gmra.mrb[0].mxu0 %v1363
        %v1399 = vpop.f32.mrb[0].mxu0
        %v1400 = vadd.f32 0.0, %v1399
        %v1401 = vpop.f32.mrb[0].mxu0
        %v1402 = vpop.f32.mrb[0].mxu0
        %v1403 = vadd.f32 0.0, %v1402
        %v1404 = vpop.f32.mrb[0].mxu0
        %1405 = vdwg.mxu0
        %s1406 = scalar_lea.vmem %s2, 16
        %v1407 = vld [vmem:[%s1406] sm:$0xf]
        %v1408 = vld [vmem:[%s1406 + $0x4] sm:$0xf]
        %v1411 = vunpack.c.l.b16 %v1407
        %v1412 = vunpack.c.l.b16 %v1408
        %v1413 = vpack.c.b16 %v1412, %v1411
        %v1415 = vsel %vm1012, %v1413, 0
        %1417 = vmatprep.subr.bf16.mxu0 0
        %1418 = vmatpush1.bf16.msra.mxu0 %v1302
        %1419 = vmatprep.subr.bf16.mxu0 0
        %1420 = vmatpush1.bf16.msra.mxu0 0
        %1421 = vmatprep.subr.bf16.mxu0 0
        %1422 = vmatpush1.bf16.msra.mxu0 0
        %1423 = vmatprep.subr.bf16.mxu0 0
        %1424 = vmatpush1.bf16.msra.mxu0 0
        %1425 = vmatprep.subr.bf16.mxu0 0
        %1426 = vmatpush1.bf16.msra.mxu0 0
        %1427 = vmatprep.subr.bf16.mxu0 0
        %1428 = vmatpush1.bf16.msra.mxu0 0
        %1429 = vmatprep.subr.bf16.mxu0 0
        %1430 = vmatpush1.bf16.msra.mxu0 0
        %1431 = vmatprep.subr.bf16.mxu0 0
        %1432 = vmatpush1.bf16.msra.mxu0 0
        %1433 = vmatprep.subr.bf16.mxu0 0
        %1434 = vmatpush1.bf16.msra.mxu0 0
        %1435 = vmatprep.subr.bf16.mxu0 0
        %1436 = vmatpush1.bf16.msra.mxu0 0
        %1437 = vmatprep.subr.bf16.mxu0 0
        %1438 = vmatpush1.bf16.msra.mxu0 0
        %1439 = vmatprep.subr.bf16.mxu0 0
        %1440 = vmatpush1.bf16.msra.mxu0 0
        %1441 = vmatprep.subr.bf16.mxu0 0
        %1442 = vmatpush1.bf16.msra.mxu0 0
        %1443 = vmatprep.subr.bf16.mxu0 0
        %1444 = vmatpush1.bf16.msra.mxu0 0
        %1445 = vmatprep.subr.bf16.mxu0 0
        %1446 = vmatpush1.bf16.msra.mxu0 0
        %1447 = vmatprep.subr.bf16.mxu0 0
        %1448 = vmatpush1.bf16.msra.mxu0 0
        %1449 = vmatprep.mubr.bf16.mxu0 0
        %1450 = vmatmul.mubr.bf16.gmra.mrb[0].mxu0 %v1415
        %v1451 = vpop.f32.mrb[0].mxu0
        %v1452 = vadd.f32 0.0, %v1451
        %v1453 = vpop.f32.mrb[0].mxu0
        %v1454 = vpop.f32.mrb[0].mxu0
        %v1455 = vadd.f32 0.0, %v1454
        %v1456 = vpop.f32.mrb[0].mxu0
        %1457 = vdwg.mxu0
        %s1458 = scalar_lea.vmem %s2, 24
        %v1459 = vld [vmem:[%s1458] sm:$0xf]
        %v1460 = vld [vmem:[%s1458 + $0x4] sm:$0xf]
        %v1463 = vunpack.c.l.b16 %v1459
        %v1464 = vunpack.c.l.b16 %v1460
        %v1465 = vpack.c.b16 %v1464, %v1463
        %v1467 = vsel %vm1012, %v1465, 0
        %1469 = vmatprep.subr.bf16.mxu0 0
        %1470 = vmatpush1.bf16.msra.mxu0 %v1302
        %1471 = vmatprep.subr.bf16.mxu0 0
        %1472 = vmatpush1.bf16.msra.mxu0 0
        %1473 = vmatprep.subr.bf16.mxu0 0
        %1474 = vmatpush1.bf16.msra.mxu0 0
        %1475 = vmatprep.subr.bf16.mxu0 0
        %1476 = vmatpush1.bf16.msra.mxu0 0
        %1477 = vmatprep.subr.bf16.mxu0 0
        %1478 = vmatpush1.bf16.msra.mxu0 0
        %1479 = vmatprep.subr.bf16.mxu0 0
        %1480 = vmatpush1.bf16.msra.mxu0 0
        %1481 = vmatprep.subr.bf16.mxu0 0
        %1482 = vmatpush1.bf16.msra.mxu0 0
        %1483 = vmatprep.subr.bf16.mxu0 0
        %1484 = vmatpush1.bf16.msra.mxu0 0
        %1485 = vmatprep.subr.bf16.mxu0 0
        %1486 = vmatpush1.bf16.msra.mxu0 0
        %1487 = vmatprep.subr.bf16.mxu0 0
        %1488 = vmatpush1.bf16.msra.mxu0 0
        %1489 = vmatprep.subr.bf16.mxu0 0
        %1490 = vmatpush1.bf16.msra.mxu0 0
        %1491 = vmatprep.subr.bf16.mxu0 0
        %1492 = vmatpush1.bf16.msra.mxu0 0
        %1493 = vmatprep.subr.bf16.mxu0 0
        %1494 = vmatpush1.bf16.msra.mxu0 0
        %1495 = vmatprep.subr.bf16.mxu0 0
        %1496 = vmatpush1.bf16.msra.mxu0 0
        %1497 = vmatprep.subr.bf16.mxu0 0
        %1498 = vmatpush1.bf16.msra.mxu0 0
        %1499 = vmatprep.subr.bf16.mxu0 0
        %1500 = vmatpush1.bf16.msra.mxu0 0
        %1501 = vmatprep.mubr.bf16.mxu0 0
        %1502 = vmatmul.mubr.bf16.gmra.mrb[0].mxu0 %v1467
        %v1503 = vpop.f32.mrb[0].mxu0
        %v1504 = vadd.f32 0.0, %v1503
        %v1505 = vpop.f32.mrb[0].mxu0
        %v1506 = vpop.f32.mrb[0].mxu0
        %v1507 = vadd.f32 0.0, %v1506
        %v1508 = vpop.f32.mrb[0].mxu0
        %1509 = vdwg.mxu0
        %s1510 = scalar_lea.vmem %s2, 32
        %v1511 = vld [vmem:[%s1510] sm:$0xf]
        %v1512 = vld [vmem:[%s1510 + $0x4] sm:$0xf]
        %v1515 = vunpack.c.l.b16 %v1511
        %v1516 = vunpack.c.l.b16 %v1512
        %v1517 = vpack.c.b16 %v1516, %v1515
        %v1519 = vsel %vm1012, %v1517, 0
        %1521 = vmatprep.subr.bf16.mxu0 0
        %1522 = vmatpush1.bf16.msra.mxu0 %v1302
        %1523 = vmatprep.subr.bf16.mxu0 0
        %1524 = vmatpush1.bf16.msra.mxu0 0
        %1525 = vmatprep.subr.bf16.mxu0 0
        %1526 = vmatpush1.bf16.msra.mxu0 0
        %1527 = vmatprep.subr.bf16.mxu0 0
        %1528 = vmatpush1.bf16.msra.mxu0 0
        %1529 = vmatprep.subr.bf16.mxu0 0
        %1530 = vmatpush1.bf16.msra.mxu0 0
        %1531 = vmatprep.subr.bf16.mxu0 0
        %1532 = vmatpush1.bf16.msra.mxu0 0
        %1533 = vmatprep.subr.bf16.mxu0 0
        %1534 = vmatpush1.bf16.msra.mxu0 0
        %1535 = vmatprep.subr.bf16.mxu0 0
        %1536 = vmatpush1.bf16.msra.mxu0 0
        %1537 = vmatprep.subr.bf16.mxu0 0
        %1538 = vmatpush1.bf16.msra.mxu0 0
        %1539 = vmatprep.subr.bf16.mxu0 0
        %1540 = vmatpush1.bf16.msra.mxu0 0
        %1541 = vmatprep.subr.bf16.mxu0 0
        %1542 = vmatpush1.bf16.msra.mxu0 0
        %1543 = vmatprep.subr.bf16.mxu0 0
        %1544 = vmatpush1.bf16.msra.mxu0 0
        %1545 = vmatprep.subr.bf16.mxu0 0
        %1546 = vmatpush1.bf16.msra.mxu0 0
        %1547 = vmatprep.subr.bf16.mxu0 0
        %1548 = vmatpush1.bf16.msra.mxu0 0
        %1549 = vmatprep.subr.bf16.mxu0 0
        %1550 = vmatpush1.bf16.msra.mxu0 0
        %1551 = vmatprep.subr.bf16.mxu0 0
        %1552 = vmatpush1.bf16.msra.mxu0 0
        %1553 = vmatprep.mubr.bf16.mxu0 0
        %1554 = vmatmul.mubr.bf16.gmra.mrb[0].mxu0 %v1519
        %v1555 = vpop.f32.mrb[0].mxu0
        %v1556 = vadd.f32 0.0, %v1555
        %v1557 = vpop.f32.mrb[0].mxu0
        %v1558 = vpop.f32.mrb[0].mxu0
        %v1559 = vadd.f32 0.0, %v1558
        %v1560 = vpop.f32.mrb[0].mxu0
        %1561 = vdwg.mxu0
        %s1562 = scalar_lea.vmem %s2, 40
        %v1563 = vld [vmem:[%s1562] sm:$0xf]
        %v1564 = vld [vmem:[%s1562 + $0x4] sm:$0xf]
        %v1567 = vunpack.c.l.b16 %v1563
        %v1568 = vunpack.c.l.b16 %v1564
        %v1569 = vpack.c.b16 %v1568, %v1567
        %v1571 = vsel %vm1012, %v1569, 0
        %1573 = vmatprep.subr.bf16.mxu0 0
        %1574 = vmatpush1.bf16.msra.mxu0 %v1302
        %1575 = vmatprep.subr.bf16.mxu0 0
        %1576 = vmatpush1.bf16.msra.mxu0 0
        %1577 = vmatprep.subr.bf16.mxu0 0
        %1578 = vmatpush1.bf16.msra.mxu0 0
        %1579 = vmatprep.subr.bf16.mxu0 0
        %1580 = vmatpush1.bf16.msra.mxu0 0
        %1581 = vmatprep.subr.bf16.mxu0 0
        %1582 = vmatpush1.bf16.msra.mxu0 0
        %1583 = vmatprep.subr.bf16.mxu0 0
        %1584 = vmatpush1.bf16.msra.mxu0 0
        %1585 = vmatprep.subr.bf16.mxu0 0
        %1586 = vmatpush1.bf16.msra.mxu0 0
        %1587 = vmatprep.subr.bf16.mxu0 0
        %1588 = vmatpush1.bf16.msra.mxu0 0
        %1589 = vmatprep.subr.bf16.mxu0 0
        %1590 = vmatpush1.bf16.msra.mxu0 0
        %1591 = vmatprep.subr.bf16.mxu0 0
        %1592 = vmatpush1.bf16.msra.mxu0 0
        %1593 = vmatprep.subr.bf16.mxu0 0
        %1594 = vmatpush1.bf16.msra.mxu0 0
        %1595 = vmatprep.subr.bf16.mxu0 0
        %1596 = vmatpush1.bf16.msra.mxu0 0
        %1597 = vmatprep.subr.bf16.mxu0 0
        %1598 = vmatpush1.bf16.msra.mxu0 0
        %1599 = vmatprep.subr.bf16.mxu0 0
        %1600 = vmatpush1.bf16.msra.mxu0 0
        %1601 = vmatprep.subr.bf16.mxu0 0
        %1602 = vmatpush1.bf16.msra.mxu0 0
        %1603 = vmatprep.subr.bf16.mxu0 0
        %1604 = vmatpush1.bf16.msra.mxu0 0
        %1605 = vmatprep.mubr.bf16.mxu0 0
        %1606 = vmatmul.mubr.bf16.gmra.mrb[0].mxu0 %v1571
        %v1607 = vpop.f32.mrb[0].mxu0
        %v1608 = vadd.f32 0.0, %v1607
        %v1609 = vpop.f32.mrb[0].mxu0
        %v1610 = vpop.f32.mrb[0].mxu0
        %v1611 = vadd.f32 0.0, %v1610
        %v1612 = vpop.f32.mrb[0].mxu0
        %1613 = vdwg.mxu0
        %s1614 = scalar_lea.vmem %s2, 48
        %v1615 = vld [vmem:[%s1614] sm:$0xf]
        %v1616 = vld [vmem:[%s1614 + $0x4] sm:$0xf]
        %v1619 = vunpack.c.l.b16 %v1615
        %v1620 = vunpack.c.l.b16 %v1616
        %v1621 = vpack.c.b16 %v1620, %v1619
        %v1623 = vsel %vm1012, %v1621, 0
        %1625 = vmatprep.subr.bf16.mxu0 0
        %1626 = vmatpush1.bf16.msra.mxu0 %v1302
        %1627 = vmatprep.subr.bf16.mxu0 0
        %1628 = vmatpush1.bf16.msra.mxu0 0
        %1629 = vmatprep.subr.bf16.mxu0 0
        %1630 = vmatpush1.bf16.msra.mxu0 0
        %1631 = vmatprep.subr.bf16.mxu0 0
        %1632 = vmatpush1.bf16.msra.mxu0 0
        %1633 = vmatprep.subr.bf16.mxu0 0
        %1634 = vmatpush1.bf16.msra.mxu0 0
        %1635 = vmatprep.subr.bf16.mxu0 0
        %1636 = vmatpush1.bf16.msra.mxu0 0
        %1637 = vmatprep.subr.bf16.mxu0 0
        %1638 = vmatpush1.bf16.msra.mxu0 0
        %1639 = vmatprep.subr.bf16.mxu0 0
        %1640 = vmatpush1.bf16.msra.mxu0 0
        %1641 = vmatprep.subr.bf16.mxu0 0
        %1642 = vmatpush1.bf16.msra.mxu0 0
        %1643 = vmatprep.subr.bf16.mxu0 0
        %1644 = vmatpush1.bf16.msra.mxu0 0
        %1645 = vmatprep.subr.bf16.mxu0 0
        %1646 = vmatpush1.bf16.msra.mxu0 0
        %1647 = vmatprep.subr.bf16.mxu0 0
        %1648 = vmatpush1.bf16.msra.mxu0 0
        %1649 = vmatprep.subr.bf16.mxu0 0
        %1650 = vmatpush1.bf16.msra.mxu0 0
        %1651 = vmatprep.subr.bf16.mxu0 0
        %1652 = vmatpush1.bf16.msra.mxu0 0
        %1653 = vmatprep.subr.bf16.mxu0 0
        %1654 = vmatpush1.bf16.msra.mxu0 0
        %1655 = vmatprep.subr.bf16.mxu0 0
        %1656 = vmatpush1.bf16.msra.mxu0 0
        %1657 = vmatprep.mubr.bf16.mxu0 0
        %1658 = vmatmul.mubr.bf16.gmra.mrb[0].mxu0 %v1623
        %v1659 = vpop.f32.mrb[0].mxu0
        %v1660 = vadd.f32 0.0, %v1659
        %v1661 = vpop.f32.mrb[0].mxu0
        %v1662 = vpop.f32.mrb[0].mxu0
        %v1663 = vadd.f32 0.0, %v1662
        %v1664 = vpop.f32.mrb[0].mxu0
        %1665 = vdwg.mxu0
        %s1666 = scalar_lea.vmem %s2, 56
        %v1667 = vld [vmem:[%s1666] sm:$0xf]
        %v1668 = vld [vmem:[%s1666 + $0x4] sm:$0xf]
        %v1671 = vunpack.c.l.b16 %v1667
        %v1672 = vunpack.c.l.b16 %v1668
        %v1673 = vpack.c.b16 %v1672, %v1671
        %v1675 = vsel %vm1012, %v1673, 0
        %1677 = vmatprep.subr.bf16.mxu0 0
        %1678 = vmatpush1.bf16.msra.mxu0 %v1302
        %1679 = vmatprep.subr.bf16.mxu0 0
        %1680 = vmatpush1.bf16.msra.mxu0 0
        %1681 = vmatprep.subr.bf16.mxu0 0
        %1682 = vmatpush1.bf16.msra.mxu0 0
        %1683 = vmatprep.subr.bf16.mxu0 0
        %1684 = vmatpush1.bf16.msra.mxu0 0
        %1685 = vmatprep.subr.bf16.mxu0 0
        %1686 = vmatpush1.bf16.msra.mxu0 0
        %1687 = vmatprep.subr.bf16.mxu0 0
        %1688 = vmatpush1.bf16.msra.mxu0 0
        %1689 = vmatprep.subr.bf16.mxu0 0
        %1690 = vmatpush1.bf16.msra.mxu0 0
        %1691 = vmatprep.subr.bf16.mxu0 0
        %1692 = vmatpush1.bf16.msra.mxu0 0
        %1693 = vmatprep.subr.bf16.mxu0 0
        %1694 = vmatpush1.bf16.msra.mxu0 0
        %1695 = vmatprep.subr.bf16.mxu0 0
        %1696 = vmatpush1.bf16.msra.mxu0 0
        %1697 = vmatprep.subr.bf16.mxu0 0
        %1698 = vmatpush1.bf16.msra.mxu0 0
        %1699 = vmatprep.subr.bf16.mxu0 0
        %1700 = vmatpush1.bf16.msra.mxu0 0
        %1701 = vmatprep.subr.bf16.mxu0 0
        %1702 = vmatpush1.bf16.msra.mxu0 0
        %1703 = vmatprep.subr.bf16.mxu0 0
        %1704 = vmatpush1.bf16.msra.mxu0 0
        %1705 = vmatprep.subr.bf16.mxu0 0
        %1706 = vmatpush1.bf16.msra.mxu0 0
        %1707 = vmatprep.subr.bf16.mxu0 0
        %1708 = vmatpush1.bf16.msra.mxu0 0
        %1709 = vmatprep.mubr.bf16.mxu0 0
        %1710 = vmatmul.mubr.bf16.gmra.mrb[0].mxu0 %v1675
        %v1711 = vpop.f32.mrb[0].mxu0
        %v1712 = vadd.f32 0.0, %v1711
        %v1713 = vpop.f32.mrb[0].mxu0
        %v1714 = vpop.f32.mrb[0].mxu0
        %v1715 = vadd.f32 0.0, %v1714
        %v1716 = vpop.f32.mrb[0].mxu0
        %1717 = vdwg.mxu0
        %s1718 = scalar_lea.vmem %s2, 64
        %v1719 = vld [vmem:[%s1718] sm:$0xf]
        %v1720 = vld [vmem:[%s1718 + $0x4] sm:$0xf]
        %v1723 = vunpack.c.l.b16 %v1719
        %v1724 = vunpack.c.l.b16 %v1720
        %v1725 = vpack.c.b16 %v1724, %v1723
        %v1727 = vsel %vm1012, %v1725, 0
        %1729 = vmatprep.subr.bf16.mxu0 0
        %1730 = vmatpush1.bf16.msra.mxu0 %v1302
        %1731 = vmatprep.subr.bf16.mxu0 0
        %1732 = vmatpush1.bf16.msra.mxu0 0
        %1733 = vmatprep.subr.bf16.mxu0 0
        %1734 = vmatpush1.bf16.msra.mxu0 0
        %1735 = vmatprep.subr.bf16.mxu0 0
        %1736 = vmatpush1.bf16.msra.mxu0 0
        %1737 = vmatprep.subr.bf16.mxu0 0
        %1738 = vmatpush1.bf16.msra.mxu0 0
        %1739 = vmatprep.subr.bf16.mxu0 0
        %1740 = vmatpush1.bf16.msra.mxu0 0
        %1741 = vmatprep.subr.bf16.mxu0 0
        %1742 = vmatpush1.bf16.msra.mxu0 0
        %1743 = vmatprep.subr.bf16.mxu0 0
        %1744 = vmatpush1.bf16.msra.mxu0 0
        %1745 = vmatprep.subr.bf16.mxu0 0
        %1746 = vmatpush1.bf16.msra.mxu0 0
        %1747 = vmatprep.subr.bf16.mxu0 0
        %1748 = vmatpush1.bf16.msra.mxu0 0
        %1749 = vmatprep.subr.bf16.mxu0 0
        %1750 = vmatpush1.bf16.msra.mxu0 0
        %1751 = vmatprep.subr.bf16.mxu0 0
        %1752 = vmatpush1.bf16.msra.mxu0 0
        %1753 = vmatprep.subr.bf16.mxu0 0
        %1754 = vmatpush1.bf16.msra.mxu0 0
        %1755 = vmatprep.subr.bf16.mxu0 0
        %1756 = vmatpush1.bf16.msra.mxu0 0
        %1757 = vmatprep.subr.bf16.mxu0 0
        %1758 = vmatpush1.bf16.msra.mxu0 0
        %1759 = vmatprep.subr.bf16.mxu0 0
        %1760 = vmatpush1.bf16.msra.mxu0 0
        %1761 = vmatprep.mubr.bf16.mxu0 0
        %1762 = vmatmul.mubr.bf16.gmra.mrb[0].mxu0 %v1727
        %v1763 = vpop.f32.mrb[0].mxu0
        %v1764 = vadd.f32 0.0, %v1763
        %v1765 = vpop.f32.mrb[0].mxu0
        %v1766 = vpop.f32.mrb[0].mxu0
        %v1767 = vadd.f32 0.0, %v1766
        %v1768 = vpop.f32.mrb[0].mxu0
        %1769 = vdwg.mxu0
        %1772 = vrot.lane.b32.xlu0 %v1400, 16
        %v1773 = vpop.permute.xlu0 %1772
        %1774 = vrot.lane.b32.xlu0 %v1403, 16
        %v1775 = vpop.permute.xlu0 %1774
        %1780 = vrot.lane.b32.xlu0 %v1452, 32
        %v1781 = vpop.permute.xlu0 %1780
        %1782 = vrot.lane.b32.xlu0 %v1455, 32
        %v1783 = vpop.permute.xlu0 %1782
        %1788 = vrot.lane.b32.xlu0 %v1504, 48
        %v1789 = vpop.permute.xlu0 %1788
        %1790 = vrot.lane.b32.xlu0 %v1507, 48
        %v1791 = vpop.permute.xlu0 %1790
        %1796 = vrot.lane.b32.xlu0 %v1556, 64
        %v1797 = vpop.permute.xlu0 %1796
        %1798 = vrot.lane.b32.xlu0 %v1559, 64
        %v1799 = vpop.permute.xlu0 %1798
        %1804 = vrot.lane.b32.xlu0 %v1608, 80
        %v1805 = vpop.permute.xlu0 %1804
        %1806 = vrot.lane.b32.xlu0 %v1611, 80
        %v1807 = vpop.permute.xlu0 %1806
        %1812 = vrot.lane.b32.xlu0 %v1660, 96
        %v1813 = vpop.permute.xlu0 %1812
        %1814 = vrot.lane.b32.xlu0 %v1663, 96
        %v1815 = vpop.permute.xlu0 %1814
        %1820 = vrot.lane.b32.xlu0 %v1712, 112
        %v1821 = vpop.permute.xlu0 %1820
        %1822 = vrot.lane.b32.xlu0 %v1715, 112
        %v1823 = vpop.permute.xlu0 %1822
        %v1826 = vsel %vm1012, %v1348, %v1773
        %v1827 = vsel %vm1012, %v1351, %v1775
        %v1828 = vsel %vm345, %v1826, %v1781
        %v1829 = vsel %vm345, %v1827, %v1783
        %v1830 = vsel %vm1017, %v1828, %v1789
        %v1831 = vsel %vm1017, %v1829, %v1791
        %v1832 = vsel %vm278, %v1830, %v1797
        %v1833 = vsel %vm278, %v1831, %v1799
        %v1834 = vsel %vm1022, %v1832, %v1805
        %v1835 = vsel %vm1022, %v1833, %v1807
        %v1836 = vsel %vm1025, %v1834, %v1813
        %v1837 = vsel %vm1025, %v1835, %v1815
        %v1838 = vsel %vm1028, %v1836, %v1821
        %v1839 = vsel %vm1028, %v1837, %v1823
        %v1840 = vpack.c.bf16 %v1839, %v1838
        %v1841 = vpack.c.bf16 %v1767, %v1764
        %v1842 = vld [vmem:[#allocation2 + $0x90] sm:$0xf]
        %v1843 = vld [vmem:[#allocation2 + $0x94] sm:$0xf]
        %v1844 = vld [vmem:[#allocation2 + $0x98] sm:$0xf]
        %v1845 = vld [vmem:[#allocation2 + $0x9c] sm:$0xf]
        %v1846 = vld [vmem:[#allocation2 + $0xa0] sm:$0xf]
        %v1847 = vld [vmem:[#allocation2 + $0xa4] sm:$0xf]
        %v1848 = vld [vmem:[#allocation2 + $0xa8] sm:$0xf]
        %v1849 = vld [vmem:[#allocation2 + $0xac] sm:$0xf]
        %v1850 = vld [vmem:[#allocation2 + $0xb0] sm:$0xf]
        %v1851 = vld [vmem:[#allocation2 + $0xb4] sm:$0xf]
        %v1852 = vld [vmem:[#allocation2 + $0xb8] sm:$0xf]
        %v1853 = vld [vmem:[#allocation2 + $0xbc] sm:$0xf]
        %v1854 = vld [vmem:[#allocation2 + $0xc0] sm:$0xf]
        %v1855 = vld [vmem:[#allocation2 + $0xc4] sm:$0xf]
        %v1856 = vld [vmem:[#allocation2 + $0xc8] sm:$0xf]
        %v1857 = vld [vmem:[#allocation2 + $0xcc] sm:$0xf]
        %v1858 = vld [vmem:[#allocation2 + $0xd0] sm:$0xf]
        %v1859 = vld [vmem:[#allocation2 + $0xd4] sm:$0xf]
        %v1860 = vld [vmem:[%s4 + $0x5] sm:$0x1]
        %v1861 = vlaneseq
        %v1862 = vshrl.u32 %v1861, 7
        %v1863 = vsub.s32 0, %v1862
        %v1864 = vrot.slane %v1860, %v1863
        %v1883 = vunpack.c.l.b16 %v1842
        %v1884 = vunpack.c.l.b16 %v1843
        %v1885 = vunpack.c.l.b16 %v1844
        %v1886 = vunpack.c.l.b16 %v1845
        %v1887 = vunpack.c.l.b16 %v1846
        %v1888 = vunpack.c.l.b16 %v1847
        %v1889 = vunpack.c.l.b16 %v1848
        %v1890 = vunpack.c.l.b16 %v1849
        %v1891 = vunpack.c.l.b16 %v1850
        %v1892 = vunpack.c.l.b16 %v1851
        %v1893 = vunpack.c.l.b16 %v1852
        %v1894 = vunpack.c.l.b16 %v1853
        %v1895 = vunpack.c.l.b16 %v1854
        %v1896 = vunpack.c.l.b16 %v1855
        %v1897 = vunpack.c.l.b16 %v1856
        %v1898 = vunpack.c.l.b16 %v1857
        %v1899 = vunpack.c.l.b16 %v1858
        %v1900 = vunpack.c.l.b16 %v1859
        %v1901 = vpack.c.b16 %v1884, %v1883
        %v1902 = vpack.c.b16 %v1886, %v1885
        %v1903 = vpack.c.b16 %v1888, %v1887
        %v1904 = vpack.c.b16 %v1890, %v1889
        %v1905 = vpack.c.b16 %v1892, %v1891
        %v1906 = vpack.c.b16 %v1894, %v1893
        %v1907 = vpack.c.b16 %v1896, %v1895
        %v1908 = vpack.c.b16 %v1898, %v1897
        %v1909 = vpack.c.b16 %v1900, %v1899
        %v1920 = vsel %vm1012, %v1841, 0
        %1922 = vmatprep.subr.bf16.mxu0 0
        %1923 = vmatpush1.bf16.msra.mxu0 %v1901
        %1924 = vmatprep.subr.bf16.mxu0 0
        %1925 = vmatpush1.bf16.msra.mxu0 %v1902
        %1926 = vmatprep.subr.bf16.mxu0 0
        %1927 = vmatpush1.bf16.msra.mxu0 %v1903
        %1928 = vmatprep.subr.bf16.mxu0 0
        %1929 = vmatpush1.bf16.msra.mxu0 %v1904
        %1930 = vmatprep.subr.bf16.mxu0 0
        %1931 = vmatpush1.bf16.msra.mxu0 %v1905
        %1932 = vmatprep.subr.bf16.mxu0 0
        %1933 = vmatpush1.bf16.msra.mxu0 %v1906
        %1934 = vmatprep.subr.bf16.mxu0 0
        %1935 = vmatpush1.bf16.msra.mxu0 %v1907
        %1936 = vmatprep.subr.bf16.mxu0 0
        %1937 = vmatpush1.bf16.msra.mxu0 %v1908
        %1938 = vmatprep.subr.bf16.mxu0 0
        %1939 = vmatpush1.bf16.msra.mxu0 %v1909
        %1940 = vmatprep.subr.bf16.mxu0 0
        %1941 = vmatpush1.bf16.msra.mxu0 0
        %1942 = vmatprep.subr.bf16.mxu0 0
        %1943 = vmatpush1.bf16.msra.mxu0 0
        %1944 = vmatprep.subr.bf16.mxu0 0
        %1945 = vmatpush1.bf16.msra.mxu0 0
        %1946 = vmatprep.subr.bf16.mxu0 0
        %1947 = vmatpush1.bf16.msra.mxu0 0
        %1948 = vmatprep.subr.bf16.mxu0 0
        %1949 = vmatpush1.bf16.msra.mxu0 0
        %1950 = vmatprep.subr.bf16.mxu0 0
        %1951 = vmatpush1.bf16.msra.mxu0 0
        %1952 = vmatprep.subr.bf16.mxu0 0
        %1953 = vmatpush1.bf16.msra.mxu0 0
        %1954 = vmatprep.mubr.bf16.mxu0 %v1920
        %1955 = vmatmul.mubr.bf16.gmra.mrb[0].mxu0 %v1840
        %v1956 = vpop.f32.mrb[0].mxu0
        %v1957 = vadd.f32 %v1864, %v1956
        %v1958 = vpop.f32.mrb[0].mxu0
        %v1959 = vpop.f32.mrb[0].mxu0
        %v1960 = vadd.f32 %v1864, %v1959
        %v1961 = vpop.f32.mrb[0].mxu0
        %1962 = vdwg.mxu0
        %v1963 = vmax.f32 %v1957, 0.0
        %v1964 = vmax.f32 %v1960, 0.0
        %v1965 = vpack.c.bf16 %v1964, %v1963
        %v1966 = vld [vmem:[#allocation2 + $0xd8] sm:$0xf]
        %v1967 = vld [vmem:[#allocation2 + $0xdc] sm:$0xf]
        %v1968 = vld [vmem:[%s4 + $0x6] sm:$0x1]
        %v1969 = vlaneseq
        %v1970 = vshrl.u32 %v1969, 7
        %v1971 = vsub.s32 0, %v1970
        %v1972 = vrot.slane %v1968, %v1971
        %v1975 = vunpack.c.l.b16 %v1966
        %v1976 = vunpack.c.l.b16 %v1967
        %v1977 = vpack.c.b16 %v1976, %v1975
        %v1980 = vsel %vm1012, %v1965, 0
        %1982 = vmatprep.subr.bf16.mxu0 0
        %1983 = vmatpush1.bf16.msra.mxu0 %v1977
        %1984 = vmatprep.subr.bf16.mxu0 0
        %1985 = vmatpush1.bf16.msra.mxu0 0
        %1986 = vmatprep.subr.bf16.mxu0 0
        %1987 = vmatpush1.bf16.msra.mxu0 0
        %1988 = vmatprep.subr.bf16.mxu0 0
        %1989 = vmatpush1.bf16.msra.mxu0 0
        %1990 = vmatprep.subr.bf16.mxu0 0
        %1991 = vmatpush1.bf16.msra.mxu0 0
        %1992 = vmatprep.subr.bf16.mxu0 0
        %1993 = vmatpush1.bf16.msra.mxu0 0
        %1994 = vmatprep.subr.bf16.mxu0 0
        %1995 = vmatpush1.bf16.msra.mxu0 0
        %1996 = vmatprep.subr.bf16.mxu0 0
        %1997 = vmatpush1.bf16.msra.mxu0 0
        %1998 = vmatprep.subr.bf16.mxu0 0
        %1999 = vmatpush1.bf16.msra.mxu0 0
        %2000 = vmatprep.subr.bf16.mxu0 0
        %2001 = vmatpush1.bf16.msra.mxu0 0
        %2002 = vmatprep.subr.bf16.mxu0 0
        %2003 = vmatpush1.bf16.msra.mxu0 0
        %2004 = vmatprep.subr.bf16.mxu0 0
        %2005 = vmatpush1.bf16.msra.mxu0 0
        %2006 = vmatprep.subr.bf16.mxu0 0
        %2007 = vmatpush1.bf16.msra.mxu0 0
        %2008 = vmatprep.subr.bf16.mxu0 0
        %2009 = vmatpush1.bf16.msra.mxu0 0
        %2010 = vmatprep.subr.bf16.mxu0 0
        %2011 = vmatpush1.bf16.msra.mxu0 0
        %2012 = vmatprep.subr.bf16.mxu0 0
        %2013 = vmatpush1.bf16.msra.mxu0 0
        %2014 = vmatprep.mubr.bf16.mxu0 0
        %2015 = vmatmul.mubr.bf16.gmra.mrb[0].mxu0 %v1980
        %v2016 = vpop.f32.mrb[0].mxu0
        %v2017 = vadd.f32 %v1972, %v2016
        %v2018 = vpop.f32.mrb[0].mxu0
        %v2019 = vpop.f32.mrb[0].mxu0
        %v2020 = vadd.f32 %v1972, %v2019
        %v2021 = vpop.f32.mrb[0].mxu0
        %2022 = vdwg.mxu0
        %v2023 = vadd.f32 %v2017, %v1216
        %v2024 = vadd.f32 %v2020, %v1217
        %v2025 = vmax.f32 %v2023, 0.0
        %v2026 = vmax.f32 %v2024, 0.0
        %v2027 = vpack.c.bf16 %v2026, %v2025
        %v2028 = vld [vmem:[#allocation2 + $0xe0] sm:$0xf]
        %v2029 = vld [vmem:[#allocation2 + $0xe4] sm:$0xf]
        %v2030 = vld [vmem:[#allocation2 + $0xe8] sm:$0xf]
        %v2031 = vld [vmem:[#allocation2 + $0xec] sm:$0xf]
        %v2032 = vld [vmem:[#allocation2 + $0xf0] sm:$0xf]
        %v2033 = vld [vmem:[#allocation2 + $0xf4] sm:$0xf]
        %v2034 = vld [vmem:[#allocation2 + $0xf8] sm:$0xf]
        %v2035 = vld [vmem:[#allocation2 + $0xfc] sm:$0xf]
        %v2036 = vld [vmem:[%s4 + $0x7] sm:$0x1]
        %v2037 = vlaneseq
        %v2038 = vshrl.u32 %v2037, 7
        %v2039 = vsub.s32 0, %v2038
        %v2040 = vrot.slane %v2036, %v2039
        %v2049 = vunpack.c.l.b16 %v2028
        %v2050 = vunpack.c.l.b16 %v2029
        %v2051 = vunpack.c.l.b16 %v2030
        %v2052 = vunpack.c.l.b16 %v2031
        %v2053 = vunpack.c.l.b16 %v2032
        %v2054 = vunpack.c.l.b16 %v2033
        %v2055 = vunpack.c.l.b16 %v2034
        %v2056 = vunpack.c.l.b16 %v2035
        %v2057 = vpack.c.b16 %v2050, %v2049
        %v2058 = vpack.c.b16 %v2052, %v2051
        %v2059 = vpack.c.b16 %v2054, %v2053
        %v2060 = vpack.c.b16 %v2056, %v2055
        %v2066 = vsel %vm278, %v2027, 0
        %2068 = vmatprep.subr.bf16.mxu0 0
        %2069 = vmatpush1.bf16.msra.mxu0 %v2057
        %2070 = vmatprep.subr.bf16.mxu0 0
        %2071 = vmatpush1.bf16.msra.mxu0 %v2058
        %2072 = vmatprep.subr.bf16.mxu0 0
        %2073 = vmatpush1.bf16.msra.mxu0 %v2059
        %2074 = vmatprep.subr.bf16.mxu0 0
        %2075 = vmatpush1.bf16.msra.mxu0 %v2060
        %2076 = vmatprep.subr.bf16.mxu0 0
        %2077 = vmatpush1.bf16.msra.mxu0 0
        %2078 = vmatprep.subr.bf16.mxu0 0
        %2079 = vmatpush1.bf16.msra.mxu0 0
        %2080 = vmatprep.subr.bf16.mxu0 0
        %2081 = vmatpush1.bf16.msra.mxu0 0
        %2082 = vmatprep.subr.bf16.mxu0 0
        %2083 = vmatpush1.bf16.msra.mxu0 0
        %2084 = vmatprep.subr.bf16.mxu0 0
        %2085 = vmatpush1.bf16.msra.mxu0 0
        %2086 = vmatprep.subr.bf16.mxu0 0
        %2087 = vmatpush1.bf16.msra.mxu0 0
        %2088 = vmatprep.subr.bf16.mxu0 0
        %2089 = vmatpush1.bf16.msra.mxu0 0
        %2090 = vmatprep.subr.bf16.mxu0 0
        %2091 = vmatpush1.bf16.msra.mxu0 0
        %2092 = vmatprep.subr.bf16.mxu0 0
        %2093 = vmatpush1.bf16.msra.mxu0 0
        %2094 = vmatprep.subr.bf16.mxu0 0
        %2095 = vmatpush1.bf16.msra.mxu0 0
        %2096 = vmatprep.subr.bf16.mxu0 0
        %2097 = vmatpush1.bf16.msra.mxu0 0
        %2098 = vmatprep.subr.bf16.mxu0 0
        %2099 = vmatpush1.bf16.msra.mxu0 0
        %2100 = vmatprep.mubr.bf16.mxu0 0
        %2101 = vmatmul.mubr.bf16.gmra.mrb[0].mxu0 %v2066
        %v2102 = vpop.f32.mrb[0].mxu0
        %v2103 = vadd.f32 %v2040, %v2102
        %v2104 = vpop.f32.mrb[0].mxu0
        %v2105 = vpop.f32.mrb[0].mxu0
        %v2106 = vadd.f32 %v2040, %v2105
        %v2107 = vpop.f32.mrb[0].mxu0
        %2108 = vdwg.mxu0
        %v2109 = vmax.f32 %v2103, 0.0
        %v2110 = vmax.f32 %v2106, 0.0
        %v2111 = vpack.c.bf16 %v2110, %v2109
        %2112 = vmatprep.subr.bf16.mxu0 0
        %2113 = vmatpush1.bf16.msra.mxu0 %v2111
        %2114 = vmatprep.subr.bf16.mxu0 0
        %2115 = vmatpush1.bf16.msra.mxu0 0
        %2116 = vmatprep.subr.bf16.mxu0 0
        %2117 = vmatpush1.bf16.msra.mxu0 0
        %2118 = vmatprep.subr.bf16.mxu0 0
        %2119 = vmatpush1.bf16.msra.mxu0 0
        %2120 = vmatprep.subr.bf16.mxu0 0
        %2121 = vmatpush1.bf16.msra.mxu0 0
        %2122 = vmatprep.subr.bf16.mxu0 0
        %2123 = vmatpush1.bf16.msra.mxu0 0
        %2124 = vmatprep.subr.bf16.mxu0 0
        %2125 = vmatpush1.bf16.msra.mxu0 0
        %2126 = vmatprep.subr.bf16.mxu0 0
        %2127 = vmatpush1.bf16.msra.mxu0 0
        %2128 = vmatprep.subr.bf16.mxu0 0
        %2129 = vmatpush1.bf16.msra.mxu0 0
        %2130 = vmatprep.subr.bf16.mxu0 0
        %2131 = vmatpush1.bf16.msra.mxu0 0
        %2132 = vmatprep.subr.bf16.mxu0 0
        %2133 = vmatpush1.bf16.msra.mxu0 0
        %2134 = vmatprep.subr.bf16.mxu0 0
        %2135 = vmatpush1.bf16.msra.mxu0 0
        %2136 = vmatprep.subr.bf16.mxu0 0
        %2137 = vmatpush1.bf16.msra.mxu0 0
        %2138 = vmatprep.subr.bf16.mxu0 0
        %2139 = vmatpush1.bf16.msra.mxu0 0
        %2140 = vmatprep.subr.bf16.mxu0 0
        %2141 = vmatpush1.bf16.msra.mxu0 0
        %2142 = vmatprep.subr.bf16.mxu0 0
        %2143 = vmatpush1.bf16.msra.mxu0 0
        %2144 = vmatprep.mubr.bf16.mxu0 0
        %2145 = vmatmul.mubr.bf16.gmra.mrb[0].mxu0 %v1311
        %v2146 = vpop.f32.mrb[0].mxu0
        %v2147 = vadd.f32 0.0, %v2146
        %v2148 = vpop.f32.mrb[0].mxu0
        %v2149 = vpop.f32.mrb[0].mxu0
        %v2150 = vadd.f32 0.0, %v2149
        %v2151 = vpop.f32.mrb[0].mxu0
        %2152 = vdwg.mxu0
        %2153 = vmatprep.subr.bf16.mxu0 0
        %2154 = vmatpush1.bf16.msra.mxu0 %v2111
        %2155 = vmatprep.subr.bf16.mxu0 0
        %2156 = vmatpush1.bf16.msra.mxu0 0
        %2157 = vmatprep.subr.bf16.mxu0 0
        %2158 = vmatpush1.bf16.msra.mxu0 0
        %2159 = vmatprep.subr.bf16.mxu0 0
        %2160 = vmatpush1.bf16.msra.mxu0 0
        %2161 = vmatprep.subr.bf16.mxu0 0
        %2162 = vmatpush1.bf16.msra.mxu0 0
        %2163 = vmatprep.subr.bf16.mxu0 0
        %2164 = vmatpush1.bf16.msra.mxu0 0
        %2165 = vmatprep.subr.bf16.mxu0 0
        %2166 = vmatpush1.bf16.msra.mxu0 0
        %2167 = vmatprep.subr.bf16.mxu0 0
        %2168 = vmatpush1.bf16.msra.mxu0 0
        %2169 = vmatprep.subr.bf16.mxu0 0
        %2170 = vmatpush1.bf16.msra.mxu0 0
        %2171 = vmatprep.subr.bf16.mxu0 0
        %2172 = vmatpush1.bf16.msra.mxu0 0
        %2173 = vmatprep.subr.bf16.mxu0 0
        %2174 = vmatpush1.bf16.msra.mxu0 0
        %2175 = vmatprep.subr.bf16.mxu0 0
        %2176 = vmatpush1.bf16.msra.mxu0 0
        %2177 = vmatprep.subr.bf16.mxu0 0
        %2178 = vmatpush1.bf16.msra.mxu0 0
        %2179 = vmatprep.subr.bf16.mxu0 0
        %2180 = vmatpush1.bf16.msra.mxu0 0
        %2181 = vmatprep.subr.bf16.mxu0 0
        %2182 = vmatpush1.bf16.msra.mxu0 0
        %2183 = vmatprep.subr.bf16.mxu0 0
        %2184 = vmatpush1.bf16.msra.mxu0 0
        %2185 = vmatprep.mubr.bf16.mxu0 0
        %2186 = vmatmul.mubr.bf16.gmra.mrb[0].mxu0 %v1363
        %v2187 = vpop.f32.mrb[0].mxu0
        %v2188 = vadd.f32 0.0, %v2187
        %v2189 = vpop.f32.mrb[0].mxu0
        %v2190 = vpop.f32.mrb[0].mxu0
        %v2191 = vadd.f32 0.0, %v2190
        %v2192 = vpop.f32.mrb[0].mxu0
        %2193 = vdwg.mxu0
        %2194 = vmatprep.subr.bf16.mxu0 0
        %2195 = vmatpush1.bf16.msra.mxu0 %v2111
        %2196 = vmatprep.subr.bf16.mxu0 0
        %2197 = vmatpush1.bf16.msra.mxu0 0
        %2198 = vmatprep.subr.bf16.mxu0 0
        %2199 = vmatpush1.bf16.msra.mxu0 0
        %2200 = vmatprep.subr.bf16.mxu0 0
        %2201 = vmatpush1.bf16.msra.mxu0 0
        %2202 = vmatprep.subr.bf16.mxu0 0
        %2203 = vmatpush1.bf16.msra.mxu0 0
        %2204 = vmatprep.subr.bf16.mxu0 0
        %2205 = vmatpush1.bf16.msra.mxu0 0
        %2206 = vmatprep.subr.bf16.mxu0 0
        %2207 = vmatpush1.bf16.msra.mxu0 0
        %2208 = vmatprep.subr.bf16.mxu0 0
        %2209 = vmatpush1.bf16.msra.mxu0 0
        %2210 = vmatprep.subr.bf16.mxu0 0
        %2211 = vmatpush1.bf16.msra.mxu0 0
        %2212 = vmatprep.subr.bf16.mxu0 0
        %2213 = vmatpush1.bf16.msra.mxu0 0
        %2214 = vmatprep.subr.bf16.mxu0 0
        %2215 = vmatpush1.bf16.msra.mxu0 0
        %2216 = vmatprep.subr.bf16.mxu0 0
        %2217 = vmatpush1.bf16.msra.mxu0 0
        %2218 = vmatprep.subr.bf16.mxu0 0
        %2219 = vmatpush1.bf16.msra.mxu0 0
        %2220 = vmatprep.subr.bf16.mxu0 0
        %2221 = vmatpush1.bf16.msra.mxu0 0
        %2222 = vmatprep.subr.bf16.mxu0 0
        %2223 = vmatpush1.bf16.msra.mxu0 0
        %2224 = vmatprep.subr.bf16.mxu0 0
        %2225 = vmatpush1.bf16.msra.mxu0 0
        %2226 = vmatprep.mubr.bf16.mxu0 0
        %2227 = vmatmul.mubr.bf16.gmra.mrb[0].mxu0 %v1415
        %v2228 = vpop.f32.mrb[0].mxu0
        %v2229 = vadd.f32 0.0, %v2228
        %v2230 = vpop.f32.mrb[0].mxu0
        %v2231 = vpop.f32.mrb[0].mxu0
        %v2232 = vadd.f32 0.0, %v2231
        %v2233 = vpop.f32.mrb[0].mxu0
        %2234 = vdwg.mxu0
        %2235 = vmatprep.subr.bf16.mxu0 0
        %2236 = vmatpush1.bf16.msra.mxu0 %v2111
        %2237 = vmatprep.subr.bf16.mxu0 0
        %2238 = vmatpush1.bf16.msra.mxu0 0
        %2239 = vmatprep.subr.bf16.mxu0 0
        %2240 = vmatpush1.bf16.msra.mxu0 0
        %2241 = vmatprep.subr.bf16.mxu0 0
        %2242 = vmatpush1.bf16.msra.mxu0 0
        %2243 = vmatprep.subr.bf16.mxu0 0
        %2244 = vmatpush1.bf16.msra.mxu0 0
        %2245 = vmatprep.subr.bf16.mxu0 0
        %2246 = vmatpush1.bf16.msra.mxu0 0
        %2247 = vmatprep.subr.bf16.mxu0 0
        %2248 = vmatpush1.bf16.msra.mxu0 0
        %2249 = vmatprep.subr.bf16.mxu0 0
        %2250 = vmatpush1.bf16.msra.mxu0 0
        %2251 = vmatprep.subr.bf16.mxu0 0
        %2252 = vmatpush1.bf16.msra.mxu0 0
        %2253 = vmatprep.subr.bf16.mxu0 0
        %2254 = vmatpush1.bf16.msra.mxu0 0
        %2255 = vmatprep.subr.bf16.mxu0 0
        %2256 = vmatpush1.bf16.msra.mxu0 0
        %2257 = vmatprep.subr.bf16.mxu0 0
        %2258 = vmatpush1.bf16.msra.mxu0 0
        %2259 = vmatprep.subr.bf16.mxu0 0
        %2260 = vmatpush1.bf16.msra.mxu0 0
        %2261 = vmatprep.subr.bf16.mxu0 0
        %2262 = vmatpush1.bf16.msra.mxu0 0
        %2263 = vmatprep.subr.bf16.mxu0 0
        %2264 = vmatpush1.bf16.msra.mxu0 0
        %2265 = vmatprep.subr.bf16.mxu0 0
        %2266 = vmatpush1.bf16.msra.mxu0 0
        %2267 = vmatprep.mubr.bf16.mxu0 0
        %2268 = vmatmul.mubr.bf16.gmra.mrb[0].mxu0 %v1467
        %v2269 = vpop.f32.mrb[0].mxu0
        %v2270 = vadd.f32 0.0, %v2269
        %v2271 = vpop.f32.mrb[0].mxu0
        %v2272 = vpop.f32.mrb[0].mxu0
        %v2273 = vadd.f32 0.0, %v2272
        %v2274 = vpop.f32.mrb[0].mxu0
        %2275 = vdwg.mxu0
        %2276 = vmatprep.subr.bf16.mxu0 0
        %2277 = vmatpush1.bf16.msra.mxu0 %v2111
        %2278 = vmatprep.subr.bf16.mxu0 0
        %2279 = vmatpush1.bf16.msra.mxu0 0
        %2280 = vmatprep.subr.bf16.mxu0 0
        %2281 = vmatpush1.bf16.msra.mxu0 0
        %2282 = vmatprep.subr.bf16.mxu0 0
        %2283 = vmatpush1.bf16.msra.mxu0 0
        %2284 = vmatprep.subr.bf16.mxu0 0
        %2285 = vmatpush1.bf16.msra.mxu0 0
        %2286 = vmatprep.subr.bf16.mxu0 0
        %2287 = vmatpush1.bf16.msra.mxu0 0
        %2288 = vmatprep.subr.bf16.mxu0 0
        %2289 = vmatpush1.bf16.msra.mxu0 0
        %2290 = vmatprep.subr.bf16.mxu0 0
        %2291 = vmatpush1.bf16.msra.mxu0 0
        %2292 = vmatprep.subr.bf16.mxu0 0
        %2293 = vmatpush1.bf16.msra.mxu0 0
        %2294 = vmatprep.subr.bf16.mxu0 0
        %2295 = vmatpush1.bf16.msra.mxu0 0
        %2296 = vmatprep.subr.bf16.mxu0 0
        %2297 = vmatpush1.bf16.msra.mxu0 0
        %2298 = vmatprep.subr.bf16.mxu0 0
        %2299 = vmatpush1.bf16.msra.mxu0 0
        %2300 = vmatprep.subr.bf16.mxu0 0
        %2301 = vmatpush1.bf16.msra.mxu0 0
        %2302 = vmatprep.subr.bf16.mxu0 0
        %2303 = vmatpush1.bf16.msra.mxu0 0
        %2304 = vmatprep.subr.bf16.mxu0 0
        %2305 = vmatpush1.bf16.msra.mxu0 0
        %2306 = vmatprep.subr.bf16.mxu0 0
        %2307 = vmatpush1.bf16.msra.mxu0 0
        %2308 = vmatprep.mubr.bf16.mxu0 0
        %2309 = vmatmul.mubr.bf16.gmra.mrb[0].mxu0 %v1519
        %v2310 = vpop.f32.mrb[0].mxu0
        %v2311 = vadd.f32 0.0, %v2310
        %v2312 = vpop.f32.mrb[0].mxu0
        %v2313 = vpop.f32.mrb[0].mxu0
        %v2314 = vadd.f32 0.0, %v2313
        %v2315 = vpop.f32.mrb[0].mxu0
        %2316 = vdwg.mxu0
        %2317 = vmatprep.subr.bf16.mxu0 0
        %2318 = vmatpush1.bf16.msra.mxu0 %v2111
        %2319 = vmatprep.subr.bf16.mxu0 0
        %2320 = vmatpush1.bf16.msra.mxu0 0
        %2321 = vmatprep.subr.bf16.mxu0 0
        %2322 = vmatpush1.bf16.msra.mxu0 0
        %2323 = vmatprep.subr.bf16.mxu0 0
        %2324 = vmatpush1.bf16.msra.mxu0 0
        %2325 = vmatprep.subr.bf16.mxu0 0
        %2326 = vmatpush1.bf16.msra.mxu0 0
        %2327 = vmatprep.subr.bf16.mxu0 0
        %2328 = vmatpush1.bf16.msra.mxu0 0
        %2329 = vmatprep.subr.bf16.mxu0 0
        %2330 = vmatpush1.bf16.msra.mxu0 0
        %2331 = vmatprep.subr.bf16.mxu0 0
        %2332 = vmatpush1.bf16.msra.mxu0 0
        %2333 = vmatprep.subr.bf16.mxu0 0
        %2334 = vmatpush1.bf16.msra.mxu0 0
        %2335 = vmatprep.subr.bf16.mxu0 0
        %2336 = vmatpush1.bf16.msra.mxu0 0
        %2337 = vmatprep.subr.bf16.mxu0 0
        %2338 = vmatpush1.bf16.msra.mxu0 0
        %2339 = vmatprep.subr.bf16.mxu0 0
        %2340 = vmatpush1.bf16.msra.mxu0 0
        %2341 = vmatprep.subr.bf16.mxu0 0
        %2342 = vmatpush1.bf16.msra.mxu0 0
        %2343 = vmatprep.subr.bf16.mxu0 0
        %2344 = vmatpush1.bf16.msra.mxu0 0
        %2345 = vmatprep.subr.bf16.mxu0 0
        %2346 = vmatpush1.bf16.msra.mxu0 0
        %2347 = vmatprep.subr.bf16.mxu0 0
        %2348 = vmatpush1.bf16.msra.mxu0 0
        %2349 = vmatprep.mubr.bf16.mxu0 0
        %2350 = vmatmul.mubr.bf16.gmra.mrb[0].mxu0 %v1571
        %v2351 = vpop.f32.mrb[0].mxu0
        %v2352 = vadd.f32 0.0, %v2351
        %v2353 = vpop.f32.mrb[0].mxu0
        %v2354 = vpop.f32.mrb[0].mxu0
        %v2355 = vadd.f32 0.0, %v2354
        %v2356 = vpop.f32.mrb[0].mxu0
        %2357 = vdwg.mxu0
        %2358 = vmatprep.subr.bf16.mxu0 0
        %2359 = vmatpush1.bf16.msra.mxu0 %v2111
        %2360 = vmatprep.subr.bf16.mxu0 0
        %2361 = vmatpush1.bf16.msra.mxu0 0
        %2362 = vmatprep.subr.bf16.mxu0 0
        %2363 = vmatpush1.bf16.msra.mxu0 0
        %2364 = vmatprep.subr.bf16.mxu0 0
        %2365 = vmatpush1.bf16.msra.mxu0 0
        %2366 = vmatprep.subr.bf16.mxu0 0
        %2367 = vmatpush1.bf16.msra.mxu0 0
        %2368 = vmatprep.subr.bf16.mxu0 0
        %2369 = vmatpush1.bf16.msra.mxu0 0
        %2370 = vmatprep.subr.bf16.mxu0 0
        %2371 = vmatpush1.bf16.msra.mxu0 0
        %2372 = vmatprep.subr.bf16.mxu0 0
        %2373 = vmatpush1.bf16.msra.mxu0 0
        %2374 = vmatprep.subr.bf16.mxu0 0
        %2375 = vmatpush1.bf16.msra.mxu0 0
        %2376 = vmatprep.subr.bf16.mxu0 0
        %2377 = vmatpush1.bf16.msra.mxu0 0
        %2378 = vmatprep.subr.bf16.mxu0 0
        %2379 = vmatpush1.bf16.msra.mxu0 0
        %2380 = vmatprep.subr.bf16.mxu0 0
        %2381 = vmatpush1.bf16.msra.mxu0 0
        %2382 = vmatprep.subr.bf16.mxu0 0
        %2383 = vmatpush1.bf16.msra.mxu0 0
        %2384 = vmatprep.subr.bf16.mxu0 0
        %2385 = vmatpush1.bf16.msra.mxu0 0
        %2386 = vmatprep.subr.bf16.mxu0 0
        %2387 = vmatpush1.bf16.msra.mxu0 0
        %2388 = vmatprep.subr.bf16.mxu0 0
        %2389 = vmatpush1.bf16.msra.mxu0 0
        %2390 = vmatprep.mubr.bf16.mxu0 0
        %2391 = vmatmul.mubr.bf16.gmra.mrb[0].mxu0 %v1623
        %v2392 = vpop.f32.mrb[0].mxu0
        %v2393 = vadd.f32 0.0, %v2392
        %v2394 = vpop.f32.mrb[0].mxu0
        %v2395 = vpop.f32.mrb[0].mxu0
        %v2396 = vadd.f32 0.0, %v2395
        %v2397 = vpop.f32.mrb[0].mxu0
        %2398 = vdwg.mxu0
        %2399 = vmatprep.subr.bf16.mxu0 0
        %2400 = vmatpush1.bf16.msra.mxu0 %v2111
        %2401 = vmatprep.subr.bf16.mxu0 0
        %2402 = vmatpush1.bf16.msra.mxu0 0
        %2403 = vmatprep.subr.bf16.mxu0 0
        %2404 = vmatpush1.bf16.msra.mxu0 0
        %2405 = vmatprep.subr.bf16.mxu0 0
        %2406 = vmatpush1.bf16.msra.mxu0 0
        %2407 = vmatprep.subr.bf16.mxu0 0
        %2408 = vmatpush1.bf16.msra.mxu0 0
        %2409 = vmatprep.subr.bf16.mxu0 0
        %2410 = vmatpush1.bf16.msra.mxu0 0
        %2411 = vmatprep.subr.bf16.mxu0 0
        %2412 = vmatpush1.bf16.msra.mxu0 0
        %2413 = vmatprep.subr.bf16.mxu0 0
        %2414 = vmatpush1.bf16.msra.mxu0 0
        %2415 = vmatprep.subr.bf16.mxu0 0
        %2416 = vmatpush1.bf16.msra.mxu0 0
        %2417 = vmatprep.subr.bf16.mxu0 0
        %2418 = vmatpush1.bf16.msra.mxu0 0
        %2419 = vmatprep.subr.bf16.mxu0 0
        %2420 = vmatpush1.bf16.msra.mxu0 0
        %2421 = vmatprep.subr.bf16.mxu0 0
        %2422 = vmatpush1.bf16.msra.mxu0 0
        %2423 = vmatprep.subr.bf16.mxu0 0
        %2424 = vmatpush1.bf16.msra.mxu0 0
        %2425 = vmatprep.subr.bf16.mxu0 0
        %2426 = vmatpush1.bf16.msra.mxu0 0
        %2427 = vmatprep.subr.bf16.mxu0 0
        %2428 = vmatpush1.bf16.msra.mxu0 0
        %2429 = vmatprep.subr.bf16.mxu0 0
        %2430 = vmatpush1.bf16.msra.mxu0 0
        %2431 = vmatprep.mubr.bf16.mxu0 0
        %2432 = vmatmul.mubr.bf16.gmra.mrb[0].mxu0 %v1675
        %v2433 = vpop.f32.mrb[0].mxu0
        %v2434 = vadd.f32 0.0, %v2433
        %v2435 = vpop.f32.mrb[0].mxu0
        %v2436 = vpop.f32.mrb[0].mxu0
        %v2437 = vadd.f32 0.0, %v2436
        %v2438 = vpop.f32.mrb[0].mxu0
        %2439 = vdwg.mxu0
        %2440 = vmatprep.subr.bf16.mxu0 0
        %2441 = vmatpush1.bf16.msra.mxu0 %v2111
        %2442 = vmatprep.subr.bf16.mxu0 0
        %2443 = vmatpush1.bf16.msra.mxu0 0
        %2444 = vmatprep.subr.bf16.mxu0 0
        %2445 = vmatpush1.bf16.msra.mxu0 0
        %2446 = vmatprep.subr.bf16.mxu0 0
        %2447 = vmatpush1.bf16.msra.mxu0 0
        %2448 = vmatprep.subr.bf16.mxu0 0
        %2449 = vmatpush1.bf16.msra.mxu0 0
        %2450 = vmatprep.subr.bf16.mxu0 0
        %2451 = vmatpush1.bf16.msra.mxu0 0
        %2452 = vmatprep.subr.bf16.mxu0 0
        %2453 = vmatpush1.bf16.msra.mxu0 0
        %2454 = vmatprep.subr.bf16.mxu0 0
        %2455 = vmatpush1.bf16.msra.mxu0 0
        %2456 = vmatprep.subr.bf16.mxu0 0
        %2457 = vmatpush1.bf16.msra.mxu0 0
        %2458 = vmatprep.subr.bf16.mxu0 0
        %2459 = vmatpush1.bf16.msra.mxu0 0
        %2460 = vmatprep.subr.bf16.mxu0 0
        %2461 = vmatpush1.bf16.msra.mxu0 0
        %2462 = vmatprep.subr.bf16.mxu0 0
        %2463 = vmatpush1.bf16.msra.mxu0 0
        %2464 = vmatprep.subr.bf16.mxu0 0
        %2465 = vmatpush1.bf16.msra.mxu0 0
        %2466 = vmatprep.subr.bf16.mxu0 0
        %2467 = vmatpush1.bf16.msra.mxu0 0
        %2468 = vmatprep.subr.bf16.mxu0 0
        %2469 = vmatpush1.bf16.msra.mxu0 0
        %2470 = vmatprep.subr.bf16.mxu0 0
        %2471 = vmatpush1.bf16.msra.mxu0 0
        %2472 = vmatprep.mubr.bf16.mxu0 0
        %2473 = vmatmul.mubr.bf16.gmra.mrb[0].mxu0 %v1727
        %v2474 = vpop.f32.mrb[0].mxu0
        %v2475 = vadd.f32 0.0, %v2474
        %v2476 = vpop.f32.mrb[0].mxu0
        %v2477 = vpop.f32.mrb[0].mxu0
        %v2478 = vadd.f32 0.0, %v2477
        %v2479 = vpop.f32.mrb[0].mxu0
        %2480 = vdwg.mxu0
        %2483 = vrot.lane.b32.xlu0 %v2188, 16
        %v2484 = vpop.permute.xlu0 %2483
        %2485 = vrot.lane.b32.xlu0 %v2191, 16
        %v2486 = vpop.permute.xlu0 %2485
        %2491 = vrot.lane.b32.xlu0 %v2229, 32
        %v2492 = vpop.permute.xlu0 %2491
        %2493 = vrot.lane.b32.xlu0 %v2232, 32
        %v2494 = vpop.permute.xlu0 %2493
        %2499 = vrot.lane.b32.xlu0 %v2270, 48
        %v2500 = vpop.permute.xlu0 %2499
        %2501 = vrot.lane.b32.xlu0 %v2273, 48
        %v2502 = vpop.permute.xlu0 %2501
        %2507 = vrot.lane.b32.xlu0 %v2311, 64
        %v2508 = vpop.permute.xlu0 %2507
        %2509 = vrot.lane.b32.xlu0 %v2314, 64
        %v2510 = vpop.permute.xlu0 %2509
        %2515 = vrot.lane.b32.xlu0 %v2352, 80
        %v2516 = vpop.permute.xlu0 %2515
        %2517 = vrot.lane.b32.xlu0 %v2355, 80
        %v2518 = vpop.permute.xlu0 %2517
        %2523 = vrot.lane.b32.xlu0 %v2393, 96
        %v2524 = vpop.permute.xlu0 %2523
        %2525 = vrot.lane.b32.xlu0 %v2396, 96
        %v2526 = vpop.permute.xlu0 %2525
        %2531 = vrot.lane.b32.xlu0 %v2434, 112
        %v2532 = vpop.permute.xlu0 %2531
        %2533 = vrot.lane.b32.xlu0 %v2437, 112
        %v2534 = vpop.permute.xlu0 %2533
        %v2537 = vsel %vm1012, %v2147, %v2484
        %v2538 = vsel %vm1012, %v2150, %v2486
        %v2539 = vsel %vm345, %v2537, %v2492
        %v2540 = vsel %vm345, %v2538, %v2494
        %v2541 = vsel %vm1017, %v2539, %v2500
        %v2542 = vsel %vm1017, %v2540, %v2502
        %v2543 = vsel %vm278, %v2541, %v2508
        %v2544 = vsel %vm278, %v2542, %v2510
        %v2545 = vsel %vm1022, %v2543, %v2516
        %v2546 = vsel %vm1022, %v2544, %v2518
        %v2547 = vsel %vm1025, %v2545, %v2524
        %v2548 = vsel %vm1025, %v2546, %v2526
        %v2549 = vsel %vm1028, %v2547, %v2532
        %v2550 = vsel %vm1028, %v2548, %v2534
        %v2551 = vpack.c.bf16 %v2550, %v2549
        %v2552 = vpack.c.bf16 %v2478, %v2475
        %v2553 = vld [vmem:[#allocation2 + $0x100] sm:$0xf]
        %v2554 = vld [vmem:[#allocation2 + $0x104] sm:$0xf]
        %v2555 = vld [vmem:[#allocation2 + $0x108] sm:$0xf]
        %v2556 = vld [vmem:[#allocation2 + $0x10c] sm:$0xf]
        %v2557 = vld [vmem:[#allocation2 + $0x110] sm:$0xf]
        %v2558 = vld [vmem:[#allocation2 + $0x114] sm:$0xf]
        %v2559 = vld [vmem:[#allocation2 + $0x118] sm:$0xf]
        %v2560 = vld [vmem:[#allocation2 + $0x11c] sm:$0xf]
        %v2561 = vld [vmem:[#allocation2 + $0x120] sm:$0xf]
        %v2562 = vld [vmem:[#allocation2 + $0x124] sm:$0xf]
        %v2563 = vld [vmem:[#allocation2 + $0x128] sm:$0xf]
        %v2564 = vld [vmem:[#allocation2 + $0x12c] sm:$0xf]
        %v2565 = vld [vmem:[#allocation2 + $0x130] sm:$0xf]
        %v2566 = vld [vmem:[#allocation2 + $0x134] sm:$0xf]
        %v2567 = vld [vmem:[#allocation2 + $0x138] sm:$0xf]
        %v2568 = vld [vmem:[#allocation2 + $0x13c] sm:$0xf]
        %v2569 = vld [vmem:[#allocation2 + $0x140] sm:$0xf]
        %v2570 = vld [vmem:[#allocation2 + $0x144] sm:$0xf]
        %v2571 = vld [vmem:[%s4 + $0x8] sm:$0x1]
        %v2572 = vlaneseq
        %v2573 = vshrl.u32 %v2572, 7
        %v2574 = vsub.s32 0, %v2573
        %v2575 = vrot.slane %v2571, %v2574
        %v2594 = vunpack.c.l.b16 %v2553
        %v2595 = vunpack.c.l.b16 %v2554
        %v2596 = vunpack.c.l.b16 %v2555
        %v2597 = vunpack.c.l.b16 %v2556
        %v2598 = vunpack.c.l.b16 %v2557
        %v2599 = vunpack.c.l.b16 %v2558
        %v2600 = vunpack.c.l.b16 %v2559
        %v2601 = vunpack.c.l.b16 %v2560
        %v2602 = vunpack.c.l.b16 %v2561
        %v2603 = vunpack.c.l.b16 %v2562
        %v2604 = vunpack.c.l.b16 %v2563
        %v2605 = vunpack.c.l.b16 %v2564
        %v2606 = vunpack.c.l.b16 %v2565
        %v2607 = vunpack.c.l.b16 %v2566
        %v2608 = vunpack.c.l.b16 %v2567
        %v2609 = vunpack.c.l.b16 %v2568
        %v2610 = vunpack.c.l.b16 %v2569
        %v2611 = vunpack.c.l.b16 %v2570
        %v2612 = vpack.c.b16 %v2595, %v2594
        %v2613 = vpack.c.b16 %v2597, %v2596
        %v2614 = vpack.c.b16 %v2599, %v2598
        %v2615 = vpack.c.b16 %v2601, %v2600
        %v2616 = vpack.c.b16 %v2603, %v2602
        %v2617 = vpack.c.b16 %v2605, %v2604
        %v2618 = vpack.c.b16 %v2607, %v2606
        %v2619 = vpack.c.b16 %v2609, %v2608
        %v2620 = vpack.c.b16 %v2611, %v2610
        %v2631 = vsel %vm1012, %v2552, 0
        %2633 = vmatprep.subr.bf16.mxu0 0
        %2634 = vmatpush1.bf16.msra.mxu0 %v2612
        %2635 = vmatprep.subr.bf16.mxu0 0
        %2636 = vmatpush1.bf16.msra.mxu0 %v2613
        %2637 = vmatprep.subr.bf16.mxu0 0
        %2638 = vmatpush1.bf16.msra.mxu0 %v2614
        %2639 = vmatprep.subr.bf16.mxu0 0
        %2640 = vmatpush1.bf16.msra.mxu0 %v2615
        %2641 = vmatprep.subr.bf16.mxu0 0
        %2642 = vmatpush1.bf16.msra.mxu0 %v2616
        %2643 = vmatprep.subr.bf16.mxu0 0
        %2644 = vmatpush1.bf16.msra.mxu0 %v2617
        %2645 = vmatprep.subr.bf16.mxu0 0
        %2646 = vmatpush1.bf16.msra.mxu0 %v2618
        %2647 = vmatprep.subr.bf16.mxu0 0
        %2648 = vmatpush1.bf16.msra.mxu0 %v2619
        %2649 = vmatprep.subr.bf16.mxu0 0
        %2650 = vmatpush1.bf16.msra.mxu0 %v2620
        %2651 = vmatprep.subr.bf16.mxu0 0
        %2652 = vmatpush1.bf16.msra.mxu0 0
        %2653 = vmatprep.subr.bf16.mxu0 0
        %2654 = vmatpush1.bf16.msra.mxu0 0
        %2655 = vmatprep.subr.bf16.mxu0 0
        %2656 = vmatpush1.bf16.msra.mxu0 0
        %2657 = vmatprep.subr.bf16.mxu0 0
        %2658 = vmatpush1.bf16.msra.mxu0 0
        %2659 = vmatprep.subr.bf16.mxu0 0
        %2660 = vmatpush1.bf16.msra.mxu0 0
        %2661 = vmatprep.subr.bf16.mxu0 0
        %2662 = vmatpush1.bf16.msra.mxu0 0
        %2663 = vmatprep.subr.bf16.mxu0 0
        %2664 = vmatpush1.bf16.msra.mxu0 0
        %2665 = vmatprep.mubr.bf16.mxu0 %v2631
        %2666 = vmatmul.mubr.bf16.gmra.mrb[0].mxu0 %v2551
        %v2667 = vpop.f32.mrb[0].mxu0
        %v2668 = vadd.f32 %v2575, %v2667
        %v2669 = vpop.f32.mrb[0].mxu0
        %v2670 = vpop.f32.mrb[0].mxu0
        %v2671 = vadd.f32 %v2575, %v2670
        %v2672 = vpop.f32.mrb[0].mxu0
        %2673 = vdwg.mxu0
        %v2674 = vmax.f32 %v2668, 0.0
        %v2675 = vmax.f32 %v2671, 0.0
        %v2676 = vpack.c.bf16 %v2675, %v2674
        %v2677 = vld [vmem:[#allocation2 + $0x148] sm:$0xf]
        %v2678 = vld [vmem:[#allocation2 + $0x14c] sm:$0xf]
        %v2679 = vld [vmem:[%s4 + $0x9] sm:$0x1]
        %v2680 = vlaneseq
        %v2681 = vshrl.u32 %v2680, 7
        %v2682 = vsub.s32 0, %v2681
        %v2683 = vrot.slane %v2679, %v2682
        %v2686 = vunpack.c.l.b16 %v2677
        %v2687 = vunpack.c.l.b16 %v2678
        %v2688 = vpack.c.b16 %v2687, %v2686
        %v2691 = vsel %vm1012, %v2676, 0
        %2693 = vmatprep.subr.bf16.mxu0 0
        %2694 = vmatpush1.bf16.msra.mxu0 %v2688
        %2695 = vmatprep.subr.bf16.mxu0 0
        %2696 = vmatpush1.bf16.msra.mxu0 0
        %2697 = vmatprep.subr.bf16.mxu0 0
        %2698 = vmatpush1.bf16.msra.mxu0 0
        %2699 = vmatprep.subr.bf16.mxu0 0
        %2700 = vmatpush1.bf16.msra.mxu0 0
        %2701 = vmatprep.subr.bf16.mxu0 0
        %2702 = vmatpush1.bf16.msra.mxu0 0
        %2703 = vmatprep.subr.bf16.mxu0 0
        %2704 = vmatpush1.bf16.msra.mxu0 0
        %2705 = vmatprep.subr.bf16.mxu0 0
        %2706 = vmatpush1.bf16.msra.mxu0 0
        %2707 = vmatprep.subr.bf16.mxu0 0
        %2708 = vmatpush1.bf16.msra.mxu0 0
        %2709 = vmatprep.subr.bf16.mxu0 0
        %2710 = vmatpush1.bf16.msra.mxu0 0
        %2711 = vmatprep.subr.bf16.mxu0 0
        %2712 = vmatpush1.bf16.msra.mxu0 0
        %2713 = vmatprep.subr.bf16.mxu0 0
        %2714 = vmatpush1.bf16.msra.mxu0 0
        %2715 = vmatprep.subr.bf16.mxu0 0
        %2716 = vmatpush1.bf16.msra.mxu0 0
        %2717 = vmatprep.subr.bf16.mxu0 0
        %2718 = vmatpush1.bf16.msra.mxu0 0
        %2719 = vmatprep.subr.bf16.mxu0 0
        %2720 = vmatpush1.bf16.msra.mxu0 0
        %2721 = vmatprep.subr.bf16.mxu0 0
        %2722 = vmatpush1.bf16.msra.mxu0 0
        %2723 = vmatprep.subr.bf16.mxu0 0
        %2724 = vmatpush1.bf16.msra.mxu0 0
        %2725 = vmatprep.mubr.bf16.mxu0 0
        %2726 = vmatmul.mubr.bf16.gmra.mrb[0].mxu0 %v2691
        %v2727 = vpop.f32.mrb[0].mxu0
        %v2728 = vadd.f32 %v2683, %v2727
        %v2729 = vpop.f32.mrb[0].mxu0
        %v2730 = vpop.f32.mrb[0].mxu0
        %v2731 = vadd.f32 %v2683, %v2730
        %v2732 = vpop.f32.mrb[0].mxu0
        %2733 = vdwg.mxu0
        %v2734 = vadd.f32 %v2728, %v2025
        %v2735 = vadd.f32 %v2731, %v2026
        %v2736 = vmax.f32 %v2734, 0.0
        %v2737 = vmax.f32 %v2735, 0.0
        %v2738 = vsel %vm278, %v2736, 0.0
        %v2739 = vsel %vm278, %v2737, 0.0
        %v2740 = vadd.f32 %v2738, %v2739
        %v2741 = vrot.slane %v2740, 4
        %v2742 = vadd.f32 %v2740, %v2741
        %v2743 = vrot.slane %v2742, 2
        %v2744 = vadd.f32 %v2742, %v2743
        %v2745 = vrot.slane %v2744, 1
        %v2746 = vadd.f32 %v2744, %v2745
        %v2747 = vrcp.pop 16.0
        %v2748 = vmul.f32 %v2746, %v2747
        %v2749 = vpack.c.bf16 %v2748, %v2748
        %v2750 = vld [vmem:[#allocation2 + $0x150] sm:$0xf]
        %v2751 = vld [vmem:[#allocation2 + $0x154] sm:$0xf]
        %v2752 = vld [vmem:[#allocation2 + $0x158] sm:$0xf]
        %v2753 = vld [vmem:[#allocation2 + $0x15c] sm:$0xf]
        %v2754 = vld [vmem:[#allocation2 + $0x160] sm:$0xf]
        %v2755 = vld [vmem:[#allocation2 + $0x164] sm:$0xf]
        %v2756 = vld [vmem:[#allocation2 + $0x168] sm:$0xf]
        %v2757 = vld [vmem:[#allocation2 + $0x16c] sm:$0xf]
        %v2758 = vld [vmem:[%s4 + $0xa] sm:$0x1]
        %v2767 = vunpack.c.l.b16 %v2750
        %v2768 = vunpack.c.l.b16 %v2751
        %v2769 = vunpack.c.l.b16 %v2752
        %v2770 = vunpack.c.l.b16 %v2753
        %v2771 = vunpack.c.l.b16 %v2754
        %v2772 = vunpack.c.l.b16 %v2755
        %v2773 = vunpack.c.l.b16 %v2756
        %v2774 = vunpack.c.l.b16 %v2757
        %v2775 = vpack.c.b16 %v2768, %v2767
        %v2776 = vpack.c.b16 %v2770, %v2769
        %v2777 = vpack.c.b16 %v2772, %v2771
        %v2778 = vpack.c.b16 %v2774, %v2773
        %v2784 = vsel %vm278, %v2749, 0
        %2786 = vmatprep.subr.bf16.mxu0 0
        %2787 = vmatpush1.bf16.msra.mxu0 %v2775
        %2788 = vmatprep.subr.bf16.mxu0 0
        %2789 = vmatpush1.bf16.msra.mxu0 %v2776
        %2790 = vmatprep.subr.bf16.mxu0 0
        %2791 = vmatpush1.bf16.msra.mxu0 %v2777
        %2792 = vmatprep.subr.bf16.mxu0 0
        %2793 = vmatpush1.bf16.msra.mxu0 %v2778
        %2794 = vmatprep.subr.bf16.mxu0 0
        %2795 = vmatpush1.bf16.msra.mxu0 0
        %2796 = vmatprep.subr.bf16.mxu0 0
        %2797 = vmatpush1.bf16.msra.mxu0 0
        %2798 = vmatprep.subr.bf16.mxu0 0
        %2799 = vmatpush1.bf16.msra.mxu0 0
        %2800 = vmatprep.subr.bf16.mxu0 0
        %2801 = vmatpush1.bf16.msra.mxu0 0
        %2802 = vmatprep.subr.bf16.mxu0 0
        %2803 = vmatpush1.bf16.msra.mxu0 0
        %2804 = vmatprep.subr.bf16.mxu0 0
        %2805 = vmatpush1.bf16.msra.mxu0 0
        %2806 = vmatprep.subr.bf16.mxu0 0
        %2807 = vmatpush1.bf16.msra.mxu0 0
        %2808 = vmatprep.subr.bf16.mxu0 0
        %2809 = vmatpush1.bf16.msra.mxu0 0
        %2810 = vmatprep.subr.bf16.mxu0 0
        %2811 = vmatpush1.bf16.msra.mxu0 0
        %2812 = vmatprep.subr.bf16.mxu0 0
        %2813 = vmatpush1.bf16.msra.mxu0 0
        %2814 = vmatprep.subr.bf16.mxu0 0
        %2815 = vmatpush1.bf16.msra.mxu0 0
        %2816 = vmatprep.subr.bf16.mxu0 0
        %2817 = vmatpush1.bf16.msra.mxu0 0
        %2818 = vmatprep.mubr.bf16.mxu0 0
        %2819 = vmatmul.mubr.bf16.gmra.mrb[0].mxu0 %v2784
        %v2820 = vpop.f32.mrb[0].mxu0
        %v2821 = vadd.f32 %v2758, %v2820
        %v2822 = vpop.f32.mrb[0].mxu0
        %v2823 = vpop.f32.mrb[0].mxu0
        %v2824 = vpop.f32.mrb[0].mxu0
        %2825 = vdwg.mxu0
        %2826 = vst [vmem:[%s231] sm:$0x1] %v2821
        %s2827 = sand.u32 %s138, 1
        %s2828 = scalar_lea.sflag [#allocation4], %s2827
        %s2829 = sand.u32 %s138, 1
        %s2830 = scalar_lea.vmem [#allocation5], %s2829
        // Predicated region
        $region45: #{_lambda_.1} parent=39 // pred_check
          %p2831 = pneg %p148
        $region46: #{_lambda_.1} parent=39 // pred_check_branch
          %2833 = sbr.rel (%p2831) target = $region48
        $region47: #{_lambda_.1} parent=39 // pred_region
          %s2835 = ssub.s32 16, 16
          %2836 = vsyncadd %s2828, %s2835
          %s2837 = smul.addr %s20, 16
          %s2838 = scalar_lea.hbm %s5, %s2837
          %s2840 = sshll.u32 %s2830, 4
          %s2841 = int_to_ptr.vmem [resolvable:$true] %s2840
          %2843 = dma.vmem_to_hbm [thread:$0]  %s2841, 16, %s2838, %s2828
        $region48: #{_lambda_.1} parent=39 // pred_fallthru
          _
      $region40: #{_lambda_.1} parent=5 // pred_fallthru
        _
      %p2844 = scmp.le.s32.totalorder 2, %s15
      // Predicated region
      $region49: #{_lambda_.1} parent=5 // pred_check
        %p2845 = pneg %p2844
      $region50: #{_lambda_.1} parent=5 // pred_check_branch
        %2847 = sbr.rel (%p2845) target = $region52
      $region51: #{_lambda_.1} parent=5 // pred_region
        %s2848 = ssub.s32 %s15, 2
        // Predicated region
        $region53: #{_lambda_.1} parent=51 // pred_check
          %p2849 = pneg %p154
        $region54: #{_lambda_.1} parent=51 // pred_check_branch
          %2851 = sbr.rel (%p2849) target = $region56
        $region55: #{_lambda_.1} parent=51 // pred_region
          %s2852 = sand.u32 %s139, 1
          %s2853 = scalar_lea.sflag [#allocation4], %s2852
          %s2854 = sand.u32 %s139, 1
          %s2855 = scalar_lea.vmem [#allocation5], %s2854
          %2856 = dma.done %s2853, 16
        $region56: #{_lambda_.1} parent=51 // pred_fallthru
          _
      $region52: #{_lambda_.1} parent=5 // pred_fallthru
        _
    $region6: #{_lambda_.1} parent=1 // loop_footer
      %s19 = sadd.s32 1, %s15
    $region7: #{_lambda_.1} parent=1 // loop_footer_branch
      %14 = sbr.rel target = $region3
    $region8: #{_lambda_.1} parent=1 // loop_exit
      _
    %2857 = vsyncpa [#allocation3], 1
    %s2858 = scalar_lea.sflag [#allocation3], 1
    %2859 = vsyncpa %s2858, 1
    %2860 = vsyncpa [#allocation4], 1
    %s2861 = scalar_lea.sflag [#allocation4], 1
    %2862 = vsyncpa %s2861, 1

</llo_original>
